<compile_context>
chip_gen: v7x
topology: tpu7x:2x2x1
jax: 0.10.0
libtpu: 0.0.40
codegen_flags: <defaults>
</compile_context>

<pallas_src>
import functools

import jax
import jax.numpy as jnp
from jax.experimental import pallas as pl
from jax.experimental.pallas import tpu as pltpu


# ----------------------------- config (small) -------------------------------
VOCAB = 100
MAX_POS = 16
HIDDEN = 32          # embed_dim
NUM_HEADS = 4
HEAD_DIM = HIDDEN // NUM_HEADS
INTERMEDIATE = 64
NUM_LAYERS = 2
LN_EPS = 1e-5
EOS_TOKEN_ID = 2     # -> HF legacy pooling path: argmax over token ids

BATCH = 2
SEQ = 8


# ------------------------------ Pallas kernel --------------------------------
def _layernorm(x, w, b, eps):
    mean = jnp.mean(x, axis=-1, keepdims=True)
    var = jnp.mean((x - mean) ** 2, axis=-1, keepdims=True)
    return (x - mean) * jax.lax.rsqrt(var + eps) * w + b


def clip_text_kernel(
    x_ref,
    ln1w_ref, ln1b_ref,
    wqkv_ref, bqkv_ref,
    wo_ref, bo_ref,
    ln2w_ref, ln2b_ref,
    w1_ref, b1_ref, w2_ref, b2_ref,
    flnw_ref, flnb_ref,
    out_ref,
    *, num_layers, num_heads, eps,
):
    """One grid program == the full forward pass for ONE batch element.

    x_ref : (T, D) f32 activations, VMEM-resident for all layers.
    wqkv  : (L*3H, D, hd) bf16  -- per-head Q/K/V weights on a leading axis
            (layer-major, then Q heads, K heads, V heads; Q pre-scaled).
    wo    : (L*H, hd, D)  bf16  -- per-head out-projection rows.
    All matmuls are rank-2 MXU dots with bf16 operands / f32 accumulation.
    LayerNorm, softmax and quick_gelu run in f32 on the VPU/EUP.
    """
    f32 = jnp.float32
    bf16 = jnp.bfloat16

    x = x_ref[...]                                   # (T, D) f32
    t, d = x.shape

    # Plain per-batch (T, T) causal additive mask (every row keeps at least
    # the diagonal unmasked, so the finite dtype-min sentinel is safe).
    row = jax.lax.broadcasted_iota(jnp.int32, (t, t), 0)
    col = jax.lax.broadcasted_iota(jnp.int32, (t, t), 1)
    mask = jnp.where(col <= row, f32(0.0), jnp.finfo(f32).min)

    for l in range(num_layers):                      # static unroll (L = 2)
        # ---- LayerNorm 1 (f32 element-wise) ----
        h = _layernorm(x, ln1w_ref[l], ln1b_ref[l], eps)
        hb = h.astype(bf16)                          # bf16 matmul operand

        # ---- attention: per-head rank-2 dots, heads indexed on leading axes ----
        attn = jnp.zeros((t, d), f32)
        base = l * 3 * num_heads
        for hh in range(num_heads):
            qi = base + hh
            ki = base + num_heads + hh
            vi = base + 2 * num_heads + hh
            # 1/sqrt(head_dim) already folded into Q weights/bias at pack time.
            q_h = jnp.dot(hb, wqkv_ref[qi], preferred_element_type=f32) + bqkv_ref[qi]
            k_h = jnp.dot(hb, wqkv_ref[ki], preferred_element_type=f32) + bqkv_ref[ki]
            v_h = jnp.dot(hb, wqkv_ref[vi], preferred_element_type=f32) + bqkv_ref[vi]

            s = jax.lax.dot_general(
                q_h.astype(bf16), k_h.astype(bf16),
                (((1,), (1,)), ((), ())),
                preferred_element_type=f32) + mask          # (T, T)
            s = s - jnp.max(s, axis=-1, keepdims=True)
            p = jnp.exp(s)
            # exact reciprocal (approx=False): tight softmax numerics
            p = p * pl.reciprocal(jnp.sum(p, axis=-1, keepdims=True), approx=False)

            o_h = jnp.dot(p.astype(bf16), v_h.astype(bf16),
                          preferred_element_type=f32)       # (T, hd)
            # per-head output projection accumulated on the MXU (no concat)
            attn = attn + jnp.dot(o_h.astype(bf16), wo_ref[l * num_heads + hh],
                                  preferred_element_type=f32)

        x = x + attn + bo_ref[l]

        # ---- LayerNorm 2 + MLP (quick_gelu, f32 element-wise) ----
        h2 = _layernorm(x, ln2w_ref[l], ln2b_ref[l], eps)
        f = jnp.dot(h2.astype(bf16), w1_ref[l], preferred_element_type=f32) + b1_ref[l]
        f = f * jax.nn.sigmoid(1.702 * f)            # quick_gelu (CLIP default)
        x = x + jnp.dot(f.astype(bf16), w2_ref[l], preferred_element_type=f32) + b2_ref[l]

    # ---- final LayerNorm ----
    out_ref[...] = _layernorm(x, flnw_ref[...], flnb_ref[...], eps)


# ------------------------------ Python wrappers ------------------------------
def _full_spec(shape):
    nd = len(shape)
    return pl.BlockSpec(shape, lambda b, _nd=nd: (0,) * _nd)


def pack_params(params):
    """Pack per-layer weights for the kernel:

    * Q/K/V split per head along a flattened leading axis (L*3H, D, hd); the
      attention scale is folded into Q weights/bias before the bf16 cast.
    * out_proj split per head as (L*H, hd, D).
    * All matmul weights cast to bf16; biases and LayerNorm params stay f32.
    """
    layers = params["layers"]
    scale = HEAD_DIM ** -0.5
    H, hd = NUM_HEADS, HEAD_DIM
    bf16 = jnp.bfloat16

    wqkv, bqkv, wo = [], [], []
    for p in layers:
        for w, b, s in ((p["wq"], p["bq"], scale),
                        (p["wk"], p["bk"], 1.0),
                        (p["wv"], p["bv"], 1.0)):
            for h in range(H):
                wqkv.append((w[:, h * hd:(h + 1) * hd] * s).astype(bf16))
                bqkv.append((b[:, h * hd:(h + 1) * hd] * s).astype(jnp.float32))
        for h in range(H):
            wo.append(p["wo"][h * hd:(h + 1) * hd, :].astype(bf16))

    def st(key):
        return jnp.stack([p[key] for p in layers], axis=0)

    return dict(
        ln1w=st("ln1_w"), ln1b=st("ln1_b"),
        wqkv=jnp.stack(wqkv),          # (L*3H, D, hd) bf16
        bqkv=jnp.stack(bqkv),          # (L*3H, 1, hd) f32
        wo=jnp.stack(wo),              # (L*H, hd, D) bf16
        bo=st("bo"),
        ln2w=st("ln2_w"), ln2b=st("ln2_b"),
        w1=st("w1").astype(bf16), b1=st("b1"),
        w2=st("w2").astype(bf16), b2=st("b2"),
    )


def clip_text_transformer(input_ids, params):
    """Full CLIPTextTransformer forward (is_causal=True, no attention_mask,
    no conditional hidden states, inference mode)."""
    B, T = input_ids.shape
    D, I, L, H = HIDDEN, INTERMEDIATE, NUM_LAYERS, NUM_HEADS

    # --- embeddings (data-dependent gather -> plain JAX) ---
    tok = params["token_embedding"][input_ids]              # (B, T, D)
    pos = params["position_embedding"][:T][None, :, :]      # (1, T, D)
    hidden = (tok + pos).astype(jnp.float32).reshape(B * T, D)

    pk = pack_params(params)

    kern = functools.partial(
        clip_text_kernel, num_layers=L, num_heads=H, eps=LN_EPS,
    )

    in_specs = [
        pl.BlockSpec((T, D), lambda b: (b, 0)),                  # per-batch activations
        _full_spec((L, 1, D)), _full_spec((L, 1, D)),            # ln1 w, b
        _full_spec((L * 3 * H, D, HEAD_DIM)),                    # per-head qkv weights
        _full_spec((L * 3 * H, 1, HEAD_DIM)),                    # per-head qkv biases
        _full_spec((L * H, HEAD_DIM, D)), _full_spec((L, 1, D)), # per-head wo, bo
        _full_spec((L, 1, D)), _full_spec((L, 1, D)),            # ln2 w, b
        _full_spec((L, D, I)), _full_spec((L, 1, I)),            # fc1
        _full_spec((L, I, D)), _full_spec((L, 1, D)),            # fc2
        _full_spec((1, D)), _full_spec((1, D)),                  # final LN w, b
    ]

    out = pl.pallas_call(
        kern,
        out_shape=jax.ShapeDtypeStruct((B * T, D), jnp.float32),
        grid_spec=pltpu.PrefetchScalarGridSpec(
            num_scalar_prefetch=0,
            grid=(B,),                       # one program per batch element
            in_specs=in_specs,
            out_specs=pl.BlockSpec((T, D), lambda b: (b, 0)),
        ),
        # At this tiny size a cross-TC split costs more than the work; mark
        # "parallel" (and stream layer weights via a grid=(L,) axis) only when
        # scaling to real CLIP sizes / v7x.
        compiler_params=pltpu.CompilerParams(dimension_semantics=("arbitrary",)),
    )(
        hidden,
        pk["ln1w"], pk["ln1b"],
        pk["wqkv"], pk["bqkv"],
        pk["wo"], pk["bo"],
        pk["ln2w"], pk["ln2b"],
        pk["w1"], pk["b1"], pk["w2"], pk["b2"],
        params["final_ln_w"], params["final_ln_b"],
    )

    last_hidden = out.reshape(B, T, D)

    # --- pooled output: eos_token_id == 2 legacy path -> argmax over token ids
    # (data-dependent gather -> plain JAX) ---
    eos_pos = jnp.argmax(input_ids.astype(jnp.int32), axis=-1)
    pooled = last_hidden[jnp.arange(B), eos_pos]
    return last_hidden, pooled


# ------------------------------- param init ---------------------------------
def init_params(key):
    def nrm(k, shape, scale=0.02):
        return jax.random.normal(k, shape, dtype=jnp.float32) * scale

    keys = jax.random.split(key, 4 + NUM_LAYERS)
    params = {
        "token_embedding": nrm(keys[0], (VOCAB, HIDDEN)),
        "position_embedding": nrm(keys[1], (MAX_POS, HIDDEN)),
        "final_ln_w": jnp.ones((1, HIDDEN), jnp.float32),
        "final_ln_b": jnp.zeros((1, HIDDEN), jnp.float32),
        "layers": [],
    }
    for li in range(NUM_LAYERS):
        lk = jax.random.split(keys[4 + li], 8)
        params["layers"].append({
            "ln1_w": jnp.ones((1, HIDDEN), jnp.float32),
            "ln1_b": jnp.zeros((1, HIDDEN), jnp.float32),
            # weights stored as (in, out): y = x @ W + b
            "wq": nrm(lk[0], (HIDDEN, HIDDEN)), "bq": jnp.zeros((1, HIDDEN), jnp.float32),
            "wk": nrm(lk[1], (HIDDEN, HIDDEN)), "bk": jnp.zeros((1, HIDDEN), jnp.float32),
            "wv": nrm(lk[2], (HIDDEN, HIDDEN)), "bv": jnp.zeros((1, HIDDEN), jnp.float32),
            "wo": nrm(lk[3], (HIDDEN, HIDDEN)), "bo": jnp.zeros((1, HIDDEN), jnp.float32),
            "ln2_w": jnp.ones((1, HIDDEN), jnp.float32),
            "ln2_b": jnp.zeros((1, HIDDEN), jnp.float32),
            "w1": nrm(lk[4], (HIDDEN, INTERMEDIATE)),
            "b1": jnp.zeros((1, INTERMEDIATE), jnp.float32),
            "w2": nrm(lk[5], (INTERMEDIATE, HIDDEN)),
            "b2": jnp.zeros((1, HIDDEN), jnp.float32),
        })
    return params


# ----------------------------- pure-JAX reference ----------------------------
def _reference(input_ids, params, matmul_dtype=jnp.float32):
    """CLIPTextTransformer reference matching the original module structure.

    matmul_dtype=jnp.bfloat16 mirrors the kernel's deployed matmul numerics
    (bf16 operands, f32 accumulation); jnp.float32 is the exact original
    f32 module arithmetic.
    """
    def c(a):
        return a.astype(matmul_dtype).astype(jnp.float32)

    B, T = input_ids.shape
    tok = params["token_embedding"][input_ids]
    pos = params["position_embedding"][:T][None]
    x = (tok + pos).astype(jnp.float32)
    neg = jnp.finfo(jnp.float32).min
    mask = jnp.triu(jnp.full((T, T), neg, jnp.float32), k=1)

    def ln(v, w, b):
        m = v.mean(-1, keepdims=True)
        var = ((v - m) ** 2).mean(-1, keepdims=True)
        return (v - m) * jax.lax.rsqrt(var + LN_EPS) * w[0] + b[0]

    for p in params["layers"]:
        h = ln(x, p["ln1_w"], p["ln1_b"])
        q = (jnp.einsum("btd,de->bte", c(h), c(p["wq"])) + p["bq"][0]) * (HEAD_DIM ** -0.5)
        k = jnp.einsum("btd,de->bte", c(h), c(p["wk"])) + p["bk"][0]
        v = jnp.einsum("btd,de->bte", c(h), c(p["wv"])) + p["bv"][0]
        q = q.reshape(B, T, NUM_HEADS, HEAD_DIM).transpose(0, 2, 1, 3)
        k = k.reshape(B, T, NUM_HEADS, HEAD_DIM).transpose(0, 2, 1, 3)
        v = v.reshape(B, T, NUM_HEADS, HEAD_DIM).transpose(0, 2, 1, 3)
        s = jnp.einsum("bhqd,bhkd->bhqk", c(q), c(k)) + mask
        a = jax.nn.softmax(s, axis=-1)
        o = jnp.einsum("bhqk,bhkd->bhqd", c(a), c(v))
        o = o.transpose(0, 2, 1, 3).reshape(B, T, HIDDEN)
        x = x + (jnp.einsum("btd,de->bte", c(o), c(p["wo"])) + p["bo"][0])
        h = ln(x, p["ln2_w"], p["ln2_b"])
        h = jnp.einsum("btd,di->bti", c(h), c(p["w1"])) + p["b1"][0]
        h = h * jax.nn.sigmoid(1.702 * h)
        x = x + (jnp.einsum("bti,id->btd", c(h), c(p["w2"])) + p["b2"][0])
    last = ln(x, params["final_ln_w"], params["final_ln_b"])
    pooled = last[jnp.arange(B), jnp.argmax(input_ids.astype(jnp.int32), axis=-1)]
    return last, pooled


# ---------------------------------- main -------------------------------------
if __name__ == "__main__":
    key = jax.random.PRNGKey(0)
    pkey, ikey = jax.random.split(key)
    params = init_params(pkey)

    input_ids = jax.random.randint(ikey, (BATCH, SEQ), 3, VOCAB, dtype=jnp.int32)
    # Pooling uses HF's legacy eos_token_id==2 path: argmax over token ids.

    last_hidden, pooled = clip_text_transformer(input_ids, params)
    jax.block_until_ready(last_hidden)
    jax.block_until_ready(pooled)

    # Tight check: reference using the kernel's deployed matmul numerics
    # (bf16 operands, f32 accumulation); exact reciprocal keeps this tight.
    ref_last, ref_pooled = _reference(input_ids, params, matmul_dtype=jnp.bfloat16)
    assert jnp.allclose(last_hidden, ref_last, atol=2e-3, rtol=2e-3)
    assert jnp.allclose(pooled, ref_pooled, atol=2e-3, rtol=2e-3)

    # Loose check vs the exact f32 module arithmetic: bounds the bf16
    # weight-quantization drift sanctioned by the perf review.
    ref32_last, ref32_pooled = _reference(input_ids, params, matmul_dtype=jnp.float32)
    assert jnp.allclose(last_hidden, ref32_last, atol=5e-2, rtol=5e-2)
    assert jnp.allclose(pooled, ref32_pooled, atol=5e-2, rtol=5e-2)

    print("KERNEL_OK")
</pallas_src>

<mosaic_0001>
module attributes {stable_mosaic.version = 11 : i64} {
  func.func @clip_text_kernel(%arg0: i32, %arg1: memref<8x32xf32, #tpu.memory_space<vmem>>, %arg2: memref<2x1x32xf32, #tpu.memory_space<vmem>>, %arg3: memref<2x1x32xf32, #tpu.memory_space<vmem>>, %arg4: memref<24x32x8xbf16, #tpu.memory_space<vmem>>, %arg5: memref<24x1x8xf32, #tpu.memory_space<vmem>>, %arg6: memref<8x8x32xbf16, #tpu.memory_space<vmem>>, %arg7: memref<2x1x32xf32, #tpu.memory_space<vmem>>, %arg8: memref<2x1x32xf32, #tpu.memory_space<vmem>>, %arg9: memref<2x1x32xf32, #tpu.memory_space<vmem>>, %arg10: memref<2x32x64xbf16, #tpu.memory_space<vmem>>, %arg11: memref<2x1x64xf32, #tpu.memory_space<vmem>>, %arg12: memref<2x64x32xbf16, #tpu.memory_space<vmem>>, %arg13: memref<2x1x32xf32, #tpu.memory_space<vmem>>, %arg14: memref<1x32xf32, #tpu.memory_space<vmem>>, %arg15: memref<1x32xf32, #tpu.memory_space<vmem>>, %arg16: memref<8x32xf32, #tpu.memory_space<vmem>>) attributes {dimension_semantics = [#tpu.dimension_semantics<arbitrary>], iteration_bounds = array<i64: 2>, scalar_prefetch = 0 : i64, scratch_operands = 0 : i64, tpu.core_type = #tpu.core_type<tc>, window_params = [{transform_indices = @transform_0, window_bounds = array<i64: 8, 32>}, {pipeline_mode = #tpu.pipeline_mode<synchronous>, transform_indices = @transform_1, window_bounds = array<i64: 2, 1, 32>}, {pipeline_mode = #tpu.pipeline_mode<synchronous>, transform_indices = @transform_2, window_bounds = array<i64: 2, 1, 32>}, {pipeline_mode = #tpu.pipeline_mode<synchronous>, transform_indices = @transform_3, window_bounds = array<i64: 24, 32, 8>}, {pipeline_mode = #tpu.pipeline_mode<synchronous>, transform_indices = @transform_4, window_bounds = array<i64: 24, 1, 8>}, {pipeline_mode = #tpu.pipeline_mode<synchronous>, transform_indices = @transform_5, window_bounds = array<i64: 8, 8, 32>}, {pipeline_mode = #tpu.pipeline_mode<synchronous>, transform_indices = @transform_6, window_bounds = array<i64: 2, 1, 32>}, {pipeline_mode = #tpu.pipeline_mode<synchronous>, transform_indices = @transform_7, window_bounds = array<i64: 2, 1, 32>}, {pipeline_mode = #tpu.pipeline_mode<synchronous>, transform_indices = @transform_8, window_bounds = array<i64: 2, 1, 32>}, {pipeline_mode = #tpu.pipeline_mode<synchronous>, transform_indices = @transform_9, window_bounds = array<i64: 2, 32, 64>}, {pipeline_mode = #tpu.pipeline_mode<synchronous>, transform_indices = @transform_10, window_bounds = array<i64: 2, 1, 64>}, {pipeline_mode = #tpu.pipeline_mode<synchronous>, transform_indices = @transform_11, window_bounds = array<i64: 2, 64, 32>}, {pipeline_mode = #tpu.pipeline_mode<synchronous>, transform_indices = @transform_12, window_bounds = array<i64: 2, 1, 32>}, {pipeline_mode = #tpu.pipeline_mode<synchronous>, transform_indices = @transform_13, window_bounds = array<i64: 1, 32>}, {pipeline_mode = #tpu.pipeline_mode<synchronous>, transform_indices = @transform_14, window_bounds = array<i64: 1, 32>}, {transform_indices = @transform_15, window_bounds = array<i64: 8, 32>}]} {
    %c0 = arith.constant 0 : index
    %c0_0 = arith.constant 0 : index
    %0 = vector.load %arg1[%c0, %c0_0] : memref<8x32xf32, #tpu.memory_space<vmem>>, vector<8x32xf32>
    %1 = tpu.iota {dimensions = array<i32: 0>} : vector<8x8xi32>
    %2 = tpu.iota {dimensions = array<i32: 1>} : vector<8x8xi32>
    %3 = arith.cmpi sle, %2, %1 : vector<8x8xi32>
    %cst = arith.constant 0.000000e+00 : f32
    %cst_1 = arith.constant -3.40282347E+38 : f32
    %4 = vector.broadcast %cst : f32 to vector<8x8xf32>
    %5 = vector.broadcast %cst_1 : f32 to vector<8x8xf32>
    %6 = arith.select %3, %4, %5 : vector<8x8xi1>, vector<8x8xf32>
    %c0_2 = arith.constant 0 : index
    %c0_3 = arith.constant 0 : index
    %c0_4 = arith.constant 0 : index
    %7 = vector.load %arg2[%c0_2, %c0_3, %c0_4] : memref<2x1x32xf32, #tpu.memory_space<vmem>>, vector<1x1x32xf32>
    %8 = vector.shape_cast %7 : vector<1x1x32xf32> to vector<1x32xf32>
    %c0_5 = arith.constant 0 : index
    %c0_6 = arith.constant 0 : index
    %c0_7 = arith.constant 0 : index
    %9 = vector.load %arg3[%c0_5, %c0_6, %c0_7] : memref<2x1x32xf32, #tpu.memory_space<vmem>>, vector<1x1x32xf32>
    %10 = vector.shape_cast %9 : vector<1x1x32xf32> to vector<1x32xf32>
    %cst_8 = arith.constant dense<0.000000e+00> : vector<8xf32>
    %11 = vector.multi_reduction <add>, %0, %cst_8 [1] : vector<8x32xf32> to vector<8xf32>
    %12 = vector.shape_cast %11 : vector<8xf32> to vector<8x1xf32>
    %cst_9 = arith.constant 3.200000e+01 : f32
    %13 = vector.broadcast %cst_9 : f32 to vector<8x1xf32>
    %14 = arith.divf %12, %13 : vector<8x1xf32>
    %15 = vector.broadcast %14 : vector<8x1xf32> to vector<8x32xf32>
    %16 = arith.subf %0, %15 : vector<8x32xf32>
    %17 = arith.mulf %16, %16 : vector<8x32xf32>
    %cst_10 = arith.constant dense<0.000000e+00> : vector<8xf32>
    %18 = vector.multi_reduction <add>, %17, %cst_10 [1] : vector<8x32xf32> to vector<8xf32>
    %19 = vector.shape_cast %18 : vector<8xf32> to vector<8x1xf32>
    %cst_11 = arith.constant 3.200000e+01 : f32
    %20 = vector.broadcast %cst_11 : f32 to vector<8x1xf32>
    %21 = arith.divf %19, %20 : vector<8x1xf32>
    %22 = vector.broadcast %14 : vector<8x1xf32> to vector<8x32xf32>
    %23 = arith.subf %0, %22 : vector<8x32xf32>
    %cst_12 = arith.constant 9.99999974E-6 : f32
    %24 = vector.broadcast %cst_12 : f32 to vector<8x1xf32>
    %25 = arith.addf %21, %24 : vector<8x1xf32>
    %26 = math.rsqrt %25 : vector<8x1xf32>
    %27 = vector.broadcast %26 : vector<8x1xf32> to vector<8x32xf32>
    %28 = arith.mulf %23, %27 : vector<8x32xf32>
    %29 = vector.broadcast %8 : vector<1x32xf32> to vector<8x32xf32>
    %30 = arith.mulf %28, %29 : vector<8x32xf32>
    %31 = vector.broadcast %10 : vector<1x32xf32> to vector<8x32xf32>
    %32 = arith.addf %30, %31 : vector<8x32xf32>
    %33 = arith.truncf %32 : vector<8x32xf32> to vector<8x32xbf16>
    %cst_13 = arith.constant 0.000000e+00 : f32
    %34 = vector.broadcast %cst_13 : f32 to vector<8x32xf32>
    %c0_14 = arith.constant 0 : index
    %c0_15 = arith.constant 0 : index
    %c0_16 = arith.constant 0 : index
    %35 = vector.load %arg4[%c0_14, %c0_15, %c0_16] : memref<24x32x8xbf16, #tpu.memory_space<vmem>>, vector<1x32x8xbf16>
    %36 = vector.shape_cast %35 : vector<1x32x8xbf16> to vector<32x8xbf16>
    %cst_17 = arith.constant dense<0.000000e+00> : vector<8x8xf32>
    %37 = tpu.matmul %33, %36, %cst_17 {dimension_numbers = #tpu.dot_dimension_numbers<[1], [0], [0], [1], [0, 0, 1, 1], [], []>} : vector<8x32xbf16>, vector<32x8xbf16>, vector<8x8xf32> -> vector<8x8xf32>
    %c0_18 = arith.constant 0 : index
    %c0_19 = arith.constant 0 : index
    %c0_20 = arith.constant 0 : index
    %38 = vector.load %arg5[%c0_18, %c0_19, %c0_20] : memref<24x1x8xf32, #tpu.memory_space<vmem>>, vector<1x1x8xf32>
    %39 = vector.shape_cast %38 : vector<1x1x8xf32> to vector<1x8xf32>
    %40 = vector.broadcast %39 : vector<1x8xf32> to vector<8x8xf32>
    %41 = arith.addf %37, %40 : vector<8x8xf32>
    %c4 = arith.constant 4 : index
    %c0_21 = arith.constant 0 : index
    %c0_22 = arith.constant 0 : index
    %42 = vector.load %arg4[%c4, %c0_21, %c0_22] : memref<24x32x8xbf16, #tpu.memory_space<vmem>>, vector<1x32x8xbf16>
    %43 = vector.shape_cast %42 : vector<1x32x8xbf16> to vector<32x8xbf16>
    %cst_23 = arith.constant dense<0.000000e+00> : vector<8x8xf32>
    %44 = tpu.matmul %33, %43, %cst_23 {dimension_numbers = #tpu.dot_dimension_numbers<[1], [0], [0], [1], [0, 0, 1, 1], [], []>} : vector<8x32xbf16>, vector<32x8xbf16>, vector<8x8xf32> -> vector<8x8xf32>
    %c4_24 = arith.constant 4 : index
    %c0_25 = arith.constant 0 : index
    %c0_26 = arith.constant 0 : index
    %45 = vector.load %arg5[%c4_24, %c0_25, %c0_26] : memref<24x1x8xf32, #tpu.memory_space<vmem>>, vector<1x1x8xf32>
    %46 = vector.shape_cast %45 : vector<1x1x8xf32> to vector<1x8xf32>
    %47 = vector.broadcast %46 : vector<1x8xf32> to vector<8x8xf32>
    %48 = arith.addf %44, %47 : vector<8x8xf32>
    %c8 = arith.constant 8 : index
    %c0_27 = arith.constant 0 : index
    %c0_28 = arith.constant 0 : index
    %49 = vector.load %arg4[%c8, %c0_27, %c0_28] : memref<24x32x8xbf16, #tpu.memory_space<vmem>>, vector<1x32x8xbf16>
    %50 = vector.shape_cast %49 : vector<1x32x8xbf16> to vector<32x8xbf16>
    %cst_29 = arith.constant dense<0.000000e+00> : vector<8x8xf32>
    %51 = tpu.matmul %33, %50, %cst_29 {dimension_numbers = #tpu.dot_dimension_numbers<[1], [0], [0], [1], [0, 0, 1, 1], [], []>} : vector<8x32xbf16>, vector<32x8xbf16>, vector<8x8xf32> -> vector<8x8xf32>
    %c8_30 = arith.constant 8 : index
    %c0_31 = arith.constant 0 : index
    %c0_32 = arith.constant 0 : index
    %52 = vector.load %arg5[%c8_30, %c0_31, %c0_32] : memref<24x1x8xf32, #tpu.memory_space<vmem>>, vector<1x1x8xf32>
    %53 = vector.shape_cast %52 : vector<1x1x8xf32> to vector<1x8xf32>
    %54 = vector.broadcast %53 : vector<1x8xf32> to vector<8x8xf32>
    %55 = arith.addf %51, %54 : vector<8x8xf32>
    %56 = arith.truncf %41 : vector<8x8xf32> to vector<8x8xbf16>
    %57 = arith.truncf %48 : vector<8x8xf32> to vector<8x8xbf16>
    %cst_33 = arith.constant dense<0.000000e+00> : vector<8x8xf32>
    %58 = tpu.matmul %56, %57, %cst_33 {dimension_numbers = #tpu.dot_dimension_numbers<[1], [1], [0], [0], [0, 0, 1, 0], [], []>} : vector<8x8xbf16>, vector<8x8xbf16>, vector<8x8xf32> -> vector<8x8xf32>
    %59 = arith.addf %58, %6 : vector<8x8xf32>
    %cst_34 = arith.constant dense<0xFF800000> : vector<8xf32>
    %60 = vector.multi_reduction <maximumf>, %59, %cst_34 [1] : vector<8x8xf32> to vector<8xf32>
    %61 = vector.shape_cast %60 : vector<8xf32> to vector<8x1xf32>
    %62 = vector.broadcast %61 : vector<8x1xf32> to vector<8x8xf32>
    %63 = arith.subf %59, %62 : vector<8x8xf32>
    %64 = math.exp %63 : vector<8x8xf32>
    %cst_35 = arith.constant dense<0.000000e+00> : vector<8xf32>
    %65 = vector.multi_reduction <add>, %64, %cst_35 [1] : vector<8x8xf32> to vector<8xf32>
    %66 = vector.shape_cast %65 : vector<8xf32> to vector<8x1xf32>
    %67 = tpu.reciprocal %66 : vector<8x1xf32> -> vector<8x1xf32>
    %68 = vector.broadcast %67 : vector<8x1xf32> to vector<8x8xf32>
    %69 = arith.mulf %64, %68 : vector<8x8xf32>
    %70 = arith.truncf %69 : vector<8x8xf32> to vector<8x8xbf16>
    %71 = arith.truncf %55 : vector<8x8xf32> to vector<8x8xbf16>
    %cst_36 = arith.constant dense<0.000000e+00> : vector<8x8xf32>
    %72 = tpu.matmul %70, %71, %cst_36 {dimension_numbers = #tpu.dot_dimension_numbers<[1], [0], [0], [1], [0, 0, 1, 1], [], []>} : vector<8x8xbf16>, vector<8x8xbf16>, vector<8x8xf32> -> vector<8x8xf32>
    %73 = arith.truncf %72 : vector<8x8xf32> to vector<8x8xbf16>
    %c0_37 = arith.constant 0 : index
    %c0_38 = arith.constant 0 : index
    %c0_39 = arith.constant 0 : index
    %74 = vector.load %arg6[%c0_37, %c0_38, %c0_39] : memref<8x8x32xbf16, #tpu.memory_space<vmem>>, vector<1x8x32xbf16>
    %75 = vector.shape_cast %74 : vector<1x8x32xbf16> to vector<8x32xbf16>
    %cst_40 = arith.constant dense<0.000000e+00> : vector<8x32xf32>
    %76 = tpu.matmul %73, %75, %cst_40 {dimension_numbers = #tpu.dot_dimension_numbers<[1], [0], [0], [1], [0, 0, 1, 1], [], []>} : vector<8x8xbf16>, vector<8x32xbf16>, vector<8x32xf32> -> vector<8x32xf32>
    %77 = arith.addf %34, %76 : vector<8x32xf32>
    %c1 = arith.constant 1 : index
    %c0_41 = arith.constant 0 : index
    %c0_42 = arith.constant 0 : index
    %78 = vector.load %arg4[%c1, %c0_41, %c0_42] : memref<24x32x8xbf16, #tpu.memory_space<vmem>>, vector<1x32x8xbf16>
    %79 = vector.shape_cast %78 : vector<1x32x8xbf16> to vector<32x8xbf16>
    %cst_43 = arith.constant dense<0.000000e+00> : vector<8x8xf32>
    %80 = tpu.matmul %33, %79, %cst_43 {dimension_numbers = #tpu.dot_dimension_numbers<[1], [0], [0], [1], [0, 0, 1, 1], [], []>} : vector<8x32xbf16>, vector<32x8xbf16>, vector<8x8xf32> -> vector<8x8xf32>
    %c1_44 = arith.constant 1 : index
    %c0_45 = arith.constant 0 : index
    %c0_46 = arith.constant 0 : index
    %81 = vector.load %arg5[%c1_44, %c0_45, %c0_46] : memref<24x1x8xf32, #tpu.memory_space<vmem>>, vector<1x1x8xf32>
    %82 = vector.shape_cast %81 : vector<1x1x8xf32> to vector<1x8xf32>
    %83 = vector.broadcast %82 : vector<1x8xf32> to vector<8x8xf32>
    %84 = arith.addf %80, %83 : vector<8x8xf32>
    %c5 = arith.constant 5 : index
    %c0_47 = arith.constant 0 : index
    %c0_48 = arith.constant 0 : index
    %85 = vector.load %arg4[%c5, %c0_47, %c0_48] : memref<24x32x8xbf16, #tpu.memory_space<vmem>>, vector<1x32x8xbf16>
    %86 = vector.shape_cast %85 : vector<1x32x8xbf16> to vector<32x8xbf16>
    %cst_49 = arith.constant dense<0.000000e+00> : vector<8x8xf32>
    %87 = tpu.matmul %33, %86, %cst_49 {dimension_numbers = #tpu.dot_dimension_numbers<[1], [0], [0], [1], [0, 0, 1, 1], [], []>} : vector<8x32xbf16>, vector<32x8xbf16>, vector<8x8xf32> -> vector<8x8xf32>
    %c5_50 = arith.constant 5 : index
    %c0_51 = arith.constant 0 : index
    %c0_52 = arith.constant 0 : index
    %88 = vector.load %arg5[%c5_50, %c0_51, %c0_52] : memref<24x1x8xf32, #tpu.memory_space<vmem>>, vector<1x1x8xf32>
    %89 = vector.shape_cast %88 : vector<1x1x8xf32> to vector<1x8xf32>
    %90 = vector.broadcast %89 : vector<1x8xf32> to vector<8x8xf32>
    %91 = arith.addf %87, %90 : vector<8x8xf32>
    %c9 = arith.constant 9 : index
    %c0_53 = arith.constant 0 : index
    %c0_54 = arith.constant 0 : index
    %92 = vector.load %arg4[%c9, %c0_53, %c0_54] : memref<24x32x8xbf16, #tpu.memory_space<vmem>>, vector<1x32x8xbf16>
    %93 = vector.shape_cast %92 : vector<1x32x8xbf16> to vector<32x8xbf16>
    %cst_55 = arith.constant dense<0.000000e+00> : vector<8x8xf32>
    %94 = tpu.matmul %33, %93, %cst_55 {dimension_numbers = #tpu.dot_dimension_numbers<[1], [0], [0], [1], [0, 0, 1, 1], [], []>} : vector<8x32xbf16>, vector<32x8xbf16>, vector<8x8xf32> -> vector<8x8xf32>
    %c9_56 = arith.constant 9 : index
    %c0_57 = arith.constant 0 : index
    %c0_58 = arith.constant 0 : index
    %95 = vector.load %arg5[%c9_56, %c0_57, %c0_58] : memref<24x1x8xf32, #tpu.memory_space<vmem>>, vector<1x1x8xf32>
    %96 = vector.shape_cast %95 : vector<1x1x8xf32> to vector<1x8xf32>
    %97 = vector.broadcast %96 : vector<1x8xf32> to vector<8x8xf32>
    %98 = arith.addf %94, %97 : vector<8x8xf32>
    %99 = arith.truncf %84 : vector<8x8xf32> to vector<8x8xbf16>
    %100 = arith.truncf %91 : vector<8x8xf32> to vector<8x8xbf16>
    %cst_59 = arith.constant dense<0.000000e+00> : vector<8x8xf32>
    %101 = tpu.matmul %99, %100, %cst_59 {dimension_numbers = #tpu.dot_dimension_numbers<[1], [1], [0], [0], [0, 0, 1, 0], [], []>} : vector<8x8xbf16>, vector<8x8xbf16>, vector<8x8xf32> -> vector<8x8xf32>
    %102 = arith.addf %101, %6 : vector<8x8xf32>
    %cst_60 = arith.constant dense<0xFF800000> : vector<8xf32>
    %103 = vector.multi_reduction <maximumf>, %102, %cst_60 [1] : vector<8x8xf32> to vector<8xf32>
    %104 = vector.shape_cast %103 : vector<8xf32> to vector<8x1xf32>
    %105 = vector.broadcast %104 : vector<8x1xf32> to vector<8x8xf32>
    %106 = arith.subf %102, %105 : vector<8x8xf32>
    %107 = math.exp %106 : vector<8x8xf32>
    %cst_61 = arith.constant dense<0.000000e+00> : vector<8xf32>
    %108 = vector.multi_reduction <add>, %107, %cst_61 [1] : vector<8x8xf32> to vector<8xf32>
    %109 = vector.shape_cast %108 : vector<8xf32> to vector<8x1xf32>
    %110 = tpu.reciprocal %109 : vector<8x1xf32> -> vector<8x1xf32>
    %111 = vector.broadcast %110 : vector<8x1xf32> to vector<8x8xf32>
    %112 = arith.mulf %107, %111 : vector<8x8xf32>
    %113 = arith.truncf %112 : vector<8x8xf32> to vector<8x8xbf16>
    %114 = arith.truncf %98 : vector<8x8xf32> to vector<8x8xbf16>
    %cst_62 = arith.constant dense<0.000000e+00> : vector<8x8xf32>
    %115 = tpu.matmul %113, %114, %cst_62 {dimension_numbers = #tpu.dot_dimension_numbers<[1], [0], [0], [1], [0, 0, 1, 1], [], []>} : vector<8x8xbf16>, vector<8x8xbf16>, vector<8x8xf32> -> vector<8x8xf32>
    %116 = arith.truncf %115 : vector<8x8xf32> to vector<8x8xbf16>
    %c1_63 = arith.constant 1 : index
    %c0_64 = arith.constant 0 : index
    %c0_65 = arith.constant 0 : index
    %117 = vector.load %arg6[%c1_63, %c0_64, %c0_65] : memref<8x8x32xbf16, #tpu.memory_space<vmem>>, vector<1x8x32xbf16>
    %118 = vector.shape_cast %117 : vector<1x8x32xbf16> to vector<8x32xbf16>
    %cst_66 = arith.constant dense<0.000000e+00> : vector<8x32xf32>
    %119 = tpu.matmul %116, %118, %cst_66 {dimension_numbers = #tpu.dot_dimension_numbers<[1], [0], [0], [1], [0, 0, 1, 1], [], []>} : vector<8x8xbf16>, vector<8x32xbf16>, vector<8x32xf32> -> vector<8x32xf32>
    %120 = arith.addf %77, %119 : vector<8x32xf32>
    %c2 = arith.constant 2 : index
    %c0_67 = arith.constant 0 : index
    %c0_68 = arith.constant 0 : index
    %121 = vector.load %arg4[%c2, %c0_67, %c0_68] : memref<24x32x8xbf16, #tpu.memory_space<vmem>>, vector<1x32x8xbf16>
    %122 = vector.shape_cast %121 : vector<1x32x8xbf16> to vector<32x8xbf16>
    %cst_69 = arith.constant dense<0.000000e+00> : vector<8x8xf32>
    %123 = tpu.matmul %33, %122, %cst_69 {dimension_numbers = #tpu.dot_dimension_numbers<[1], [0], [0], [1], [0, 0, 1, 1], [], []>} : vector<8x32xbf16>, vector<32x8xbf16>, vector<8x8xf32> -> vector<8x8xf32>
    %c2_70 = arith.constant 2 : index
    %c0_71 = arith.constant 0 : index
    %c0_72 = arith.constant 0 : index
    %124 = vector.load %arg5[%c2_70, %c0_71, %c0_72] : memref<24x1x8xf32, #tpu.memory_space<vmem>>, vector<1x1x8xf32>
    %125 = vector.shape_cast %124 : vector<1x1x8xf32> to vector<1x8xf32>
    %126 = vector.broadcast %125 : vector<1x8xf32> to vector<8x8xf32>
    %127 = arith.addf %123, %126 : vector<8x8xf32>
    %c6 = arith.constant 6 : index
    %c0_73 = arith.constant 0 : index
    %c0_74 = arith.constant 0 : index
    %128 = vector.load %arg4[%c6, %c0_73, %c0_74] : memref<24x32x8xbf16, #tpu.memory_space<vmem>>, vector<1x32x8xbf16>
    %129 = vector.shape_cast %128 : vector<1x32x8xbf16> to vector<32x8xbf16>
    %cst_75 = arith.constant dense<0.000000e+00> : vector<8x8xf32>
    %130 = tpu.matmul %33, %129, %cst_75 {dimension_numbers = #tpu.dot_dimension_numbers<[1], [0], [0], [1], [0, 0, 1, 1], [], []>} : vector<8x32xbf16>, vector<32x8xbf16>, vector<8x8xf32> -> vector<8x8xf32>
    %c6_76 = arith.constant 6 : index
    %c0_77 = arith.constant 0 : index
    %c0_78 = arith.constant 0 : index
    %131 = vector.load %arg5[%c6_76, %c0_77, %c0_78] : memref<24x1x8xf32, #tpu.memory_space<vmem>>, vector<1x1x8xf32>
    %132 = vector.shape_cast %131 : vector<1x1x8xf32> to vector<1x8xf32>
    %133 = vector.broadcast %132 : vector<1x8xf32> to vector<8x8xf32>
    %134 = arith.addf %130, %133 : vector<8x8xf32>
    %c10 = arith.constant 10 : index
    %c0_79 = arith.constant 0 : index
    %c0_80 = arith.constant 0 : index
    %135 = vector.load %arg4[%c10, %c0_79, %c0_80] : memref<24x32x8xbf16, #tpu.memory_space<vmem>>, vector<1x32x8xbf16>
    %136 = vector.shape_cast %135 : vector<1x32x8xbf16> to vector<32x8xbf16>
    %cst_81 = arith.constant dense<0.000000e+00> : vector<8x8xf32>
    %137 = tpu.matmul %33, %136, %cst_81 {dimension_numbers = #tpu.dot_dimension_numbers<[1], [0], [0], [1], [0, 0, 1, 1], [], []>} : vector<8x32xbf16>, vector<32x8xbf16>, vector<8x8xf32> -> vector<8x8xf32>
    %c10_82 = arith.constant 10 : index
    %c0_83 = arith.constant 0 : index
    %c0_84 = arith.constant 0 : index
    %138 = vector.load %arg5[%c10_82, %c0_83, %c0_84] : memref<24x1x8xf32, #tpu.memory_space<vmem>>, vector<1x1x8xf32>
    %139 = vector.shape_cast %138 : vector<1x1x8xf32> to vector<1x8xf32>
    %140 = vector.broadcast %139 : vector<1x8xf32> to vector<8x8xf32>
    %141 = arith.addf %137, %140 : vector<8x8xf32>
    %142 = arith.truncf %127 : vector<8x8xf32> to vector<8x8xbf16>
    %143 = arith.truncf %134 : vector<8x8xf32> to vector<8x8xbf16>
    %cst_85 = arith.constant dense<0.000000e+00> : vector<8x8xf32>
    %144 = tpu.matmul %142, %143, %cst_85 {dimension_numbers = #tpu.dot_dimension_numbers<[1], [1], [0], [0], [0, 0, 1, 0], [], []>} : vector<8x8xbf16>, vector<8x8xbf16>, vector<8x8xf32> -> vector<8x8xf32>
    %145 = arith.addf %144, %6 : vector<8x8xf32>
    %cst_86 = arith.constant dense<0xFF800000> : vector<8xf32>
    %146 = vector.multi_reduction <maximumf>, %145, %cst_86 [1] : vector<8x8xf32> to vector<8xf32>
    %147 = vector.shape_cast %146 : vector<8xf32> to vector<8x1xf32>
    %148 = vector.broadcast %147 : vector<8x1xf32> to vector<8x8xf32>
    %149 = arith.subf %145, %148 : vector<8x8xf32>
    %150 = math.exp %149 : vector<8x8xf32>
    %cst_87 = arith.constant dense<0.000000e+00> : vector<8xf32>
    %151 = vector.multi_reduction <add>, %150, %cst_87 [1] : vector<8x8xf32> to vector<8xf32>
    %152 = vector.shape_cast %151 : vector<8xf32> to vector<8x1xf32>
    %153 = tpu.reciprocal %152 : vector<8x1xf32> -> vector<8x1xf32>
    %154 = vector.broadcast %153 : vector<8x1xf32> to vector<8x8xf32>
    %155 = arith.mulf %150, %154 : vector<8x8xf32>
    %156 = arith.truncf %155 : vector<8x8xf32> to vector<8x8xbf16>
    %157 = arith.truncf %141 : vector<8x8xf32> to vector<8x8xbf16>
    %cst_88 = arith.constant dense<0.000000e+00> : vector<8x8xf32>
    %158 = tpu.matmul %156, %157, %cst_88 {dimension_numbers = #tpu.dot_dimension_numbers<[1], [0], [0], [1], [0, 0, 1, 1], [], []>} : vector<8x8xbf16>, vector<8x8xbf16>, vector<8x8xf32> -> vector<8x8xf32>
    %159 = arith.truncf %158 : vector<8x8xf32> to vector<8x8xbf16>
    %c2_89 = arith.constant 2 : index
    %c0_90 = arith.constant 0 : index
    %c0_91 = arith.constant 0 : index
    %160 = vector.load %arg6[%c2_89, %c0_90, %c0_91] : memref<8x8x32xbf16, #tpu.memory_space<vmem>>, vector<1x8x32xbf16>
    %161 = vector.shape_cast %160 : vector<1x8x32xbf16> to vector<8x32xbf16>
    %cst_92 = arith.constant dense<0.000000e+00> : vector<8x32xf32>
    %162 = tpu.matmul %159, %161, %cst_92 {dimension_numbers = #tpu.dot_dimension_numbers<[1], [0], [0], [1], [0, 0, 1, 1], [], []>} : vector<8x8xbf16>, vector<8x32xbf16>, vector<8x32xf32> -> vector<8x32xf32>
    %163 = arith.addf %120, %162 : vector<8x32xf32>
    %c3 = arith.constant 3 : index
    %c0_93 = arith.constant 0 : index
    %c0_94 = arith.constant 0 : index
    %164 = vector.load %arg4[%c3, %c0_93, %c0_94] : memref<24x32x8xbf16, #tpu.memory_space<vmem>>, vector<1x32x8xbf16>
    %165 = vector.shape_cast %164 : vector<1x32x8xbf16> to vector<32x8xbf16>
    %cst_95 = arith.constant dense<0.000000e+00> : vector<8x8xf32>
    %166 = tpu.matmul %33, %165, %cst_95 {dimension_numbers = #tpu.dot_dimension_numbers<[1], [0], [0], [1], [0, 0, 1, 1], [], []>} : vector<8x32xbf16>, vector<32x8xbf16>, vector<8x8xf32> -> vector<8x8xf32>
    %c3_96 = arith.constant 3 : index
    %c0_97 = arith.constant 0 : index
    %c0_98 = arith.constant 0 : index
    %167 = vector.load %arg5[%c3_96, %c0_97, %c0_98] : memref<24x1x8xf32, #tpu.memory_space<vmem>>, vector<1x1x8xf32>
    %168 = vector.shape_cast %167 : vector<1x1x8xf32> to vector<1x8xf32>
    %169 = vector.broadcast %168 : vector<1x8xf32> to vector<8x8xf32>
    %170 = arith.addf %166, %169 : vector<8x8xf32>
    %c7 = arith.constant 7 : index
    %c0_99 = arith.constant 0 : index
    %c0_100 = arith.constant 0 : index
    %171 = vector.load %arg4[%c7, %c0_99, %c0_100] : memref<24x32x8xbf16, #tpu.memory_space<vmem>>, vector<1x32x8xbf16>
    %172 = vector.shape_cast %171 : vector<1x32x8xbf16> to vector<32x8xbf16>
    %cst_101 = arith.constant dense<0.000000e+00> : vector<8x8xf32>
    %173 = tpu.matmul %33, %172, %cst_101 {dimension_numbers = #tpu.dot_dimension_numbers<[1], [0], [0], [1], [0, 0, 1, 1], [], []>} : vector<8x32xbf16>, vector<32x8xbf16>, vector<8x8xf32> -> vector<8x8xf32>
    %c7_102 = arith.constant 7 : index
    %c0_103 = arith.constant 0 : index
    %c0_104 = arith.constant 0 : index
    %174 = vector.load %arg5[%c7_102, %c0_103, %c0_104] : memref<24x1x8xf32, #tpu.memory_space<vmem>>, vector<1x1x8xf32>
    %175 = vector.shape_cast %174 : vector<1x1x8xf32> to vector<1x8xf32>
    %176 = vector.broadcast %175 : vector<1x8xf32> to vector<8x8xf32>
    %177 = arith.addf %173, %176 : vector<8x8xf32>
    %c11 = arith.constant 11 : index
    %c0_105 = arith.constant 0 : index
    %c0_106 = arith.constant 0 : index
    %178 = vector.load %arg4[%c11, %c0_105, %c0_106] : memref<24x32x8xbf16, #tpu.memory_space<vmem>>, vector<1x32x8xbf16>
    %179 = vector.shape_cast %178 : vector<1x32x8xbf16> to vector<32x8xbf16>
    %cst_107 = arith.constant dense<0.000000e+00> : vector<8x8xf32>
    %180 = tpu.matmul %33, %179, %cst_107 {dimension_numbers = #tpu.dot_dimension_numbers<[1], [0], [0], [1], [0, 0, 1, 1], [], []>} : vector<8x32xbf16>, vector<32x8xbf16>, vector<8x8xf32> -> vector<8x8xf32>
    %c11_108 = arith.constant 11 : index
    %c0_109 = arith.constant 0 : index
    %c0_110 = arith.constant 0 : index
    %181 = vector.load %arg5[%c11_108, %c0_109, %c0_110] : memref<24x1x8xf32, #tpu.memory_space<vmem>>, vector<1x1x8xf32>
    %182 = vector.shape_cast %181 : vector<1x1x8xf32> to vector<1x8xf32>
    %183 = vector.broadcast %182 : vector<1x8xf32> to vector<8x8xf32>
    %184 = arith.addf %180, %183 : vector<8x8xf32>
    %185 = arith.truncf %170 : vector<8x8xf32> to vector<8x8xbf16>
    %186 = arith.truncf %177 : vector<8x8xf32> to vector<8x8xbf16>
    %cst_111 = arith.constant dense<0.000000e+00> : vector<8x8xf32>
    %187 = tpu.matmul %185, %186, %cst_111 {dimension_numbers = #tpu.dot_dimension_numbers<[1], [1], [0], [0], [0, 0, 1, 0], [], []>} : vector<8x8xbf16>, vector<8x8xbf16>, vector<8x8xf32> -> vector<8x8xf32>
    %188 = arith.addf %187, %6 : vector<8x8xf32>
    %cst_112 = arith.constant dense<0xFF800000> : vector<8xf32>
    %189 = vector.multi_reduction <maximumf>, %188, %cst_112 [1] : vector<8x8xf32> to vector<8xf32>
    %190 = vector.shape_cast %189 : vector<8xf32> to vector<8x1xf32>
    %191 = vector.broadcast %190 : vector<8x1xf32> to vector<8x8xf32>
    %192 = arith.subf %188, %191 : vector<8x8xf32>
    %193 = math.exp %192 : vector<8x8xf32>
    %cst_113 = arith.constant dense<0.000000e+00> : vector<8xf32>
    %194 = vector.multi_reduction <add>, %193, %cst_113 [1] : vector<8x8xf32> to vector<8xf32>
    %195 = vector.shape_cast %194 : vector<8xf32> to vector<8x1xf32>
    %196 = tpu.reciprocal %195 : vector<8x1xf32> -> vector<8x1xf32>
    %197 = vector.broadcast %196 : vector<8x1xf32> to vector<8x8xf32>
    %198 = arith.mulf %193, %197 : vector<8x8xf32>
    %199 = arith.truncf %198 : vector<8x8xf32> to vector<8x8xbf16>
    %200 = arith.truncf %184 : vector<8x8xf32> to vector<8x8xbf16>
    %cst_114 = arith.constant dense<0.000000e+00> : vector<8x8xf32>
    %201 = tpu.matmul %199, %200, %cst_114 {dimension_numbers = #tpu.dot_dimension_numbers<[1], [0], [0], [1], [0, 0, 1, 1], [], []>} : vector<8x8xbf16>, vector<8x8xbf16>, vector<8x8xf32> -> vector<8x8xf32>
    %202 = arith.truncf %201 : vector<8x8xf32> to vector<8x8xbf16>
    %c3_115 = arith.constant 3 : index
    %c0_116 = arith.constant 0 : index
    %c0_117 = arith.constant 0 : index
    %203 = vector.load %arg6[%c3_115, %c0_116, %c0_117] : memref<8x8x32xbf16, #tpu.memory_space<vmem>>, vector<1x8x32xbf16>
    %204 = vector.shape_cast %203 : vector<1x8x32xbf16> to vector<8x32xbf16>
    %cst_118 = arith.constant dense<0.000000e+00> : vector<8x32xf32>
    %205 = tpu.matmul %202, %204, %cst_118 {dimension_numbers = #tpu.dot_dimension_numbers<[1], [0], [0], [1], [0, 0, 1, 1], [], []>} : vector<8x8xbf16>, vector<8x32xbf16>, vector<8x32xf32> -> vector<8x32xf32>
    %206 = arith.addf %163, %205 : vector<8x32xf32>
    %207 = arith.addf %0, %206 : vector<8x32xf32>
    %c0_119 = arith.constant 0 : index
    %c0_120 = arith.constant 0 : index
    %c0_121 = arith.constant 0 : index
    %208 = vector.load %arg7[%c0_119, %c0_120, %c0_121] : memref<2x1x32xf32, #tpu.memory_space<vmem>>, vector<1x1x32xf32>
    %209 = vector.shape_cast %208 : vector<1x1x32xf32> to vector<1x32xf32>
    %210 = vector.broadcast %209 : vector<1x32xf32> to vector<8x32xf32>
    %211 = arith.addf %207, %210 : vector<8x32xf32>
    %c0_122 = arith.constant 0 : index
    %c0_123 = arith.constant 0 : index
    %c0_124 = arith.constant 0 : index
    %212 = vector.load %arg8[%c0_122, %c0_123, %c0_124] : memref<2x1x32xf32, #tpu.memory_space<vmem>>, vector<1x1x32xf32>
    %213 = vector.shape_cast %212 : vector<1x1x32xf32> to vector<1x32xf32>
    %c0_125 = arith.constant 0 : index
    %c0_126 = arith.constant 0 : index
    %c0_127 = arith.constant 0 : index
    %214 = vector.load %arg9[%c0_125, %c0_126, %c0_127] : memref<2x1x32xf32, #tpu.memory_space<vmem>>, vector<1x1x32xf32>
    %215 = vector.shape_cast %214 : vector<1x1x32xf32> to vector<1x32xf32>
    %cst_128 = arith.constant dense<0.000000e+00> : vector<8xf32>
    %216 = vector.multi_reduction <add>, %211, %cst_128 [1] : vector<8x32xf32> to vector<8xf32>
    %217 = vector.shape_cast %216 : vector<8xf32> to vector<8x1xf32>
    %cst_129 = arith.constant 3.200000e+01 : f32
    %218 = vector.broadcast %cst_129 : f32 to vector<8x1xf32>
    %219 = arith.divf %217, %218 : vector<8x1xf32>
    %220 = vector.broadcast %219 : vector<8x1xf32> to vector<8x32xf32>
    %221 = arith.subf %211, %220 : vector<8x32xf32>
    %222 = arith.mulf %221, %221 : vector<8x32xf32>
    %cst_130 = arith.constant dense<0.000000e+00> : vector<8xf32>
    %223 = vector.multi_reduction <add>, %222, %cst_130 [1] : vector<8x32xf32> to vector<8xf32>
    %224 = vector.shape_cast %223 : vector<8xf32> to vector<8x1xf32>
    %cst_131 = arith.constant 3.200000e+01 : f32
    %225 = vector.broadcast %cst_131 : f32 to vector<8x1xf32>
    %226 = arith.divf %224, %225 : vector<8x1xf32>
    %227 = vector.broadcast %219 : vector<8x1xf32> to vector<8x32xf32>
    %228 = arith.subf %211, %227 : vector<8x32xf32>
    %cst_132 = arith.constant 9.99999974E-6 : f32
    %229 = vector.broadcast %cst_132 : f32 to vector<8x1xf32>
    %230 = arith.addf %226, %229 : vector<8x1xf32>
    %231 = math.rsqrt %230 : vector<8x1xf32>
    %232 = vector.broadcast %231 : vector<8x1xf32> to vector<8x32xf32>
    %233 = arith.mulf %228, %232 : vector<8x32xf32>
    %234 = vector.broadcast %213 : vector<1x32xf32> to vector<8x32xf32>
    %235 = arith.mulf %233, %234 : vector<8x32xf32>
    %236 = vector.broadcast %215 : vector<1x32xf32> to vector<8x32xf32>
    %237 = arith.addf %235, %236 : vector<8x32xf32>
    %238 = arith.truncf %237 : vector<8x32xf32> to vector<8x32xbf16>
    %c0_133 = arith.constant 0 : index
    %c0_134 = arith.constant 0 : index
    %c0_135 = arith.constant 0 : index
    %239 = vector.load %arg10[%c0_133, %c0_134, %c0_135] : memref<2x32x64xbf16, #tpu.memory_space<vmem>>, vector<1x32x64xbf16>
    %240 = vector.shape_cast %239 : vector<1x32x64xbf16> to vector<32x64xbf16>
    %cst_136 = arith.constant dense<0.000000e+00> : vector<8x64xf32>
    %241 = tpu.matmul %238, %240, %cst_136 {dimension_numbers = #tpu.dot_dimension_numbers<[1], [0], [0], [1], [0, 0, 1, 1], [], []>} : vector<8x32xbf16>, vector<32x64xbf16>, vector<8x64xf32> -> vector<8x64xf32>
    %c0_137 = arith.constant 0 : index
    %c0_138 = arith.constant 0 : index
    %c0_139 = arith.constant 0 : index
    %242 = vector.load %arg11[%c0_137, %c0_138, %c0_139] : memref<2x1x64xf32, #tpu.memory_space<vmem>>, vector<1x1x64xf32>
    %243 = vector.shape_cast %242 : vector<1x1x64xf32> to vector<1x64xf32>
    %244 = vector.broadcast %243 : vector<1x64xf32> to vector<8x64xf32>
    %245 = arith.addf %241, %244 : vector<8x64xf32>
    %cst_140 = arith.constant 1.702000e+00 : f32
    %246 = vector.broadcast %cst_140 : f32 to vector<8x64xf32>
    %247 = arith.mulf %246, %245 : vector<8x64xf32>
    %248 = arith.negf %247 : vector<8x64xf32>
    %249 = math.exp %248 : vector<8x64xf32>
    %cst_141 = arith.constant 1.000000e+00 : f32
    %250 = vector.broadcast %cst_141 : f32 to vector<8x64xf32>
    %251 = arith.addf %250, %249 : vector<8x64xf32>
    %252 = arith.divf %250, %251 : vector<8x64xf32>
    %253 = arith.mulf %245, %252 : vector<8x64xf32>
    %254 = arith.truncf %253 : vector<8x64xf32> to vector<8x64xbf16>
    %c0_142 = arith.constant 0 : index
    %c0_143 = arith.constant 0 : index
    %c0_144 = arith.constant 0 : index
    %255 = vector.load %arg12[%c0_142, %c0_143, %c0_144] : memref<2x64x32xbf16, #tpu.memory_space<vmem>>, vector<1x64x32xbf16>
    %256 = vector.shape_cast %255 : vector<1x64x32xbf16> to vector<64x32xbf16>
    %cst_145 = arith.constant dense<0.000000e+00> : vector<8x32xf32>
    %257 = tpu.matmul %254, %256, %cst_145 {dimension_numbers = #tpu.dot_dimension_numbers<[1], [0], [0], [1], [0, 0, 1, 1], [], []>} : vector<8x64xbf16>, vector<64x32xbf16>, vector<8x32xf32> -> vector<8x32xf32>
    %258 = arith.addf %211, %257 : vector<8x32xf32>
    %c0_146 = arith.constant 0 : index
    %c0_147 = arith.constant 0 : index
    %c0_148 = arith.constant 0 : index
    %259 = vector.load %arg13[%c0_146, %c0_147, %c0_148] : memref<2x1x32xf32, #tpu.memory_space<vmem>>, vector<1x1x32xf32>
    %260 = vector.shape_cast %259 : vector<1x1x32xf32> to vector<1x32xf32>
    %261 = vector.broadcast %260 : vector<1x32xf32> to vector<8x32xf32>
    %262 = arith.addf %258, %261 : vector<8x32xf32>
    %c1_149 = arith.constant 1 : index
    %c0_150 = arith.constant 0 : index
    %c0_151 = arith.constant 0 : index
    %263 = vector.load %arg2[%c1_149, %c0_150, %c0_151] : memref<2x1x32xf32, #tpu.memory_space<vmem>>, vector<1x1x32xf32>
    %264 = vector.shape_cast %263 : vector<1x1x32xf32> to vector<1x32xf32>
    %c1_152 = arith.constant 1 : index
    %c0_153 = arith.constant 0 : index
    %c0_154 = arith.constant 0 : index
    %265 = vector.load %arg3[%c1_152, %c0_153, %c0_154] : memref<2x1x32xf32, #tpu.memory_space<vmem>>, vector<1x1x32xf32>
    %266 = vector.shape_cast %265 : vector<1x1x32xf32> to vector<1x32xf32>
    %cst_155 = arith.constant dense<0.000000e+00> : vector<8xf32>
    %267 = vector.multi_reduction <add>, %262, %cst_155 [1] : vector<8x32xf32> to vector<8xf32>
    %268 = vector.shape_cast %267 : vector<8xf32> to vector<8x1xf32>
    %cst_156 = arith.constant 3.200000e+01 : f32
    %269 = vector.broadcast %cst_156 : f32 to vector<8x1xf32>
    %270 = arith.divf %268, %269 : vector<8x1xf32>
    %271 = vector.broadcast %270 : vector<8x1xf32> to vector<8x32xf32>
    %272 = arith.subf %262, %271 : vector<8x32xf32>
    %273 = arith.mulf %272, %272 : vector<8x32xf32>
    %cst_157 = arith.constant dense<0.000000e+00> : vector<8xf32>
    %274 = vector.multi_reduction <add>, %273, %cst_157 [1] : vector<8x32xf32> to vector<8xf32>
    %275 = vector.shape_cast %274 : vector<8xf32> to vector<8x1xf32>
    %cst_158 = arith.constant 3.200000e+01 : f32
    %276 = vector.broadcast %cst_158 : f32 to vector<8x1xf32>
    %277 = arith.divf %275, %276 : vector<8x1xf32>
    %278 = vector.broadcast %270 : vector<8x1xf32> to vector<8x32xf32>
    %279 = arith.subf %262, %278 : vector<8x32xf32>
    %cst_159 = arith.constant 9.99999974E-6 : f32
    %280 = vector.broadcast %cst_159 : f32 to vector<8x1xf32>
    %281 = arith.addf %277, %280 : vector<8x1xf32>
    %282 = math.rsqrt %281 : vector<8x1xf32>
    %283 = vector.broadcast %282 : vector<8x1xf32> to vector<8x32xf32>
    %284 = arith.mulf %279, %283 : vector<8x32xf32>
    %285 = vector.broadcast %264 : vector<1x32xf32> to vector<8x32xf32>
    %286 = arith.mulf %284, %285 : vector<8x32xf32>
    %287 = vector.broadcast %266 : vector<1x32xf32> to vector<8x32xf32>
    %288 = arith.addf %286, %287 : vector<8x32xf32>
    %289 = arith.truncf %288 : vector<8x32xf32> to vector<8x32xbf16>
    %cst_160 = arith.constant 0.000000e+00 : f32
    %290 = vector.broadcast %cst_160 : f32 to vector<8x32xf32>
    %c12 = arith.constant 12 : index
    %c0_161 = arith.constant 0 : index
    %c0_162 = arith.constant 0 : index
    %291 = vector.load %arg4[%c12, %c0_161, %c0_162] : memref<24x32x8xbf16, #tpu.memory_space<vmem>>, vector<1x32x8xbf16>
    %292 = vector.shape_cast %291 : vector<1x32x8xbf16> to vector<32x8xbf16>
    %cst_163 = arith.constant dense<0.000000e+00> : vector<8x8xf32>
    %293 = tpu.matmul %289, %292, %cst_163 {dimension_numbers = #tpu.dot_dimension_numbers<[1], [0], [0], [1], [0, 0, 1, 1], [], []>} : vector<8x32xbf16>, vector<32x8xbf16>, vector<8x8xf32> -> vector<8x8xf32>
    %c12_164 = arith.constant 12 : index
    %c0_165 = arith.constant 0 : index
    %c0_166 = arith.constant 0 : index
    %294 = vector.load %arg5[%c12_164, %c0_165, %c0_166] : memref<24x1x8xf32, #tpu.memory_space<vmem>>, vector<1x1x8xf32>
    %295 = vector.shape_cast %294 : vector<1x1x8xf32> to vector<1x8xf32>
    %296 = vector.broadcast %295 : vector<1x8xf32> to vector<8x8xf32>
    %297 = arith.addf %293, %296 : vector<8x8xf32>
    %c16 = arith.constant 16 : index
    %c0_167 = arith.constant 0 : index
    %c0_168 = arith.constant 0 : index
    %298 = vector.load %arg4[%c16, %c0_167, %c0_168] : memref<24x32x8xbf16, #tpu.memory_space<vmem>>, vector<1x32x8xbf16>
    %299 = vector.shape_cast %298 : vector<1x32x8xbf16> to vector<32x8xbf16>
    %cst_169 = arith.constant dense<0.000000e+00> : vector<8x8xf32>
    %300 = tpu.matmul %289, %299, %cst_169 {dimension_numbers = #tpu.dot_dimension_numbers<[1], [0], [0], [1], [0, 0, 1, 1], [], []>} : vector<8x32xbf16>, vector<32x8xbf16>, vector<8x8xf32> -> vector<8x8xf32>
    %c16_170 = arith.constant 16 : index
    %c0_171 = arith.constant 0 : index
    %c0_172 = arith.constant 0 : index
    %301 = vector.load %arg5[%c16_170, %c0_171, %c0_172] : memref<24x1x8xf32, #tpu.memory_space<vmem>>, vector<1x1x8xf32>
    %302 = vector.shape_cast %301 : vector<1x1x8xf32> to vector<1x8xf32>
    %303 = vector.broadcast %302 : vector<1x8xf32> to vector<8x8xf32>
    %304 = arith.addf %300, %303 : vector<8x8xf32>
    %c20 = arith.constant 20 : index
    %c0_173 = arith.constant 0 : index
    %c0_174 = arith.constant 0 : index
    %305 = vector.load %arg4[%c20, %c0_173, %c0_174] : memref<24x32x8xbf16, #tpu.memory_space<vmem>>, vector<1x32x8xbf16>
    %306 = vector.shape_cast %305 : vector<1x32x8xbf16> to vector<32x8xbf16>
    %cst_175 = arith.constant dense<0.000000e+00> : vector<8x8xf32>
    %307 = tpu.matmul %289, %306, %cst_175 {dimension_numbers = #tpu.dot_dimension_numbers<[1], [0], [0], [1], [0, 0, 1, 1], [], []>} : vector<8x32xbf16>, vector<32x8xbf16>, vector<8x8xf32> -> vector<8x8xf32>
    %c20_176 = arith.constant 20 : index
    %c0_177 = arith.constant 0 : index
    %c0_178 = arith.constant 0 : index
    %308 = vector.load %arg5[%c20_176, %c0_177, %c0_178] : memref<24x1x8xf32, #tpu.memory_space<vmem>>, vector<1x1x8xf32>
    %309 = vector.shape_cast %308 : vector<1x1x8xf32> to vector<1x8xf32>
    %310 = vector.broadcast %309 : vector<1x8xf32> to vector<8x8xf32>
    %311 = arith.addf %307, %310 : vector<8x8xf32>
    %312 = arith.truncf %297 : vector<8x8xf32> to vector<8x8xbf16>
    %313 = arith.truncf %304 : vector<8x8xf32> to vector<8x8xbf16>
    %cst_179 = arith.constant dense<0.000000e+00> : vector<8x8xf32>
    %314 = tpu.matmul %312, %313, %cst_179 {dimension_numbers = #tpu.dot_dimension_numbers<[1], [1], [0], [0], [0, 0, 1, 0], [], []>} : vector<8x8xbf16>, vector<8x8xbf16>, vector<8x8xf32> -> vector<8x8xf32>
    %315 = arith.addf %314, %6 : vector<8x8xf32>
    %cst_180 = arith.constant dense<0xFF800000> : vector<8xf32>
    %316 = vector.multi_reduction <maximumf>, %315, %cst_180 [1] : vector<8x8xf32> to vector<8xf32>
    %317 = vector.shape_cast %316 : vector<8xf32> to vector<8x1xf32>
    %318 = vector.broadcast %317 : vector<8x1xf32> to vector<8x8xf32>
    %319 = arith.subf %315, %318 : vector<8x8xf32>
    %320 = math.exp %319 : vector<8x8xf32>
    %cst_181 = arith.constant dense<0.000000e+00> : vector<8xf32>
    %321 = vector.multi_reduction <add>, %320, %cst_181 [1] : vector<8x8xf32> to vector<8xf32>
    %322 = vector.shape_cast %321 : vector<8xf32> to vector<8x1xf32>
    %323 = tpu.reciprocal %322 : vector<8x1xf32> -> vector<8x1xf32>
    %324 = vector.broadcast %323 : vector<8x1xf32> to vector<8x8xf32>
    %325 = arith.mulf %320, %324 : vector<8x8xf32>
    %326 = arith.truncf %325 : vector<8x8xf32> to vector<8x8xbf16>
    %327 = arith.truncf %311 : vector<8x8xf32> to vector<8x8xbf16>
    %cst_182 = arith.constant dense<0.000000e+00> : vector<8x8xf32>
    %328 = tpu.matmul %326, %327, %cst_182 {dimension_numbers = #tpu.dot_dimension_numbers<[1], [0], [0], [1], [0, 0, 1, 1], [], []>} : vector<8x8xbf16>, vector<8x8xbf16>, vector<8x8xf32> -> vector<8x8xf32>
    %329 = arith.truncf %328 : vector<8x8xf32> to vector<8x8xbf16>
    %c4_183 = arith.constant 4 : index
    %c0_184 = arith.constant 0 : index
    %c0_185 = arith.constant 0 : index
    %330 = vector.load %arg6[%c4_183, %c0_184, %c0_185] : memref<8x8x32xbf16, #tpu.memory_space<vmem>>, vector<1x8x32xbf16>
    %331 = vector.shape_cast %330 : vector<1x8x32xbf16> to vector<8x32xbf16>
    %cst_186 = arith.constant dense<0.000000e+00> : vector<8x32xf32>
    %332 = tpu.matmul %329, %331, %cst_186 {dimension_numbers = #tpu.dot_dimension_numbers<[1], [0], [0], [1], [0, 0, 1, 1], [], []>} : vector<8x8xbf16>, vector<8x32xbf16>, vector<8x32xf32> -> vector<8x32xf32>
    %333 = arith.addf %290, %332 : vector<8x32xf32>
    %c13 = arith.constant 13 : index
    %c0_187 = arith.constant 0 : index
    %c0_188 = arith.constant 0 : index
    %334 = vector.load %arg4[%c13, %c0_187, %c0_188] : memref<24x32x8xbf16, #tpu.memory_space<vmem>>, vector<1x32x8xbf16>
    %335 = vector.shape_cast %334 : vector<1x32x8xbf16> to vector<32x8xbf16>
    %cst_189 = arith.constant dense<0.000000e+00> : vector<8x8xf32>
    %336 = tpu.matmul %289, %335, %cst_189 {dimension_numbers = #tpu.dot_dimension_numbers<[1], [0], [0], [1], [0, 0, 1, 1], [], []>} : vector<8x32xbf16>, vector<32x8xbf16>, vector<8x8xf32> -> vector<8x8xf32>
    %c13_190 = arith.constant 13 : index
    %c0_191 = arith.constant 0 : index
    %c0_192 = arith.constant 0 : index
    %337 = vector.load %arg5[%c13_190, %c0_191, %c0_192] : memref<24x1x8xf32, #tpu.memory_space<vmem>>, vector<1x1x8xf32>
    %338 = vector.shape_cast %337 : vector<1x1x8xf32> to vector<1x8xf32>
    %339 = vector.broadcast %338 : vector<1x8xf32> to vector<8x8xf32>
    %340 = arith.addf %336, %339 : vector<8x8xf32>
    %c17 = arith.constant 17 : index
    %c0_193 = arith.constant 0 : index
    %c0_194 = arith.constant 0 : index
    %341 = vector.load %arg4[%c17, %c0_193, %c0_194] : memref<24x32x8xbf16, #tpu.memory_space<vmem>>, vector<1x32x8xbf16>
    %342 = vector.shape_cast %341 : vector<1x32x8xbf16> to vector<32x8xbf16>
    %cst_195 = arith.constant dense<0.000000e+00> : vector<8x8xf32>
    %343 = tpu.matmul %289, %342, %cst_195 {dimension_numbers = #tpu.dot_dimension_numbers<[1], [0], [0], [1], [0, 0, 1, 1], [], []>} : vector<8x32xbf16>, vector<32x8xbf16>, vector<8x8xf32> -> vector<8x8xf32>
    %c17_196 = arith.constant 17 : index
    %c0_197 = arith.constant 0 : index
    %c0_198 = arith.constant 0 : index
    %344 = vector.load %arg5[%c17_196, %c0_197, %c0_198] : memref<24x1x8xf32, #tpu.memory_space<vmem>>, vector<1x1x8xf32>
    %345 = vector.shape_cast %344 : vector<1x1x8xf32> to vector<1x8xf32>
    %346 = vector.broadcast %345 : vector<1x8xf32> to vector<8x8xf32>
    %347 = arith.addf %343, %346 : vector<8x8xf32>
    %c21 = arith.constant 21 : index
    %c0_199 = arith.constant 0 : index
    %c0_200 = arith.constant 0 : index
    %348 = vector.load %arg4[%c21, %c0_199, %c0_200] : memref<24x32x8xbf16, #tpu.memory_space<vmem>>, vector<1x32x8xbf16>
    %349 = vector.shape_cast %348 : vector<1x32x8xbf16> to vector<32x8xbf16>
    %cst_201 = arith.constant dense<0.000000e+00> : vector<8x8xf32>
    %350 = tpu.matmul %289, %349, %cst_201 {dimension_numbers = #tpu.dot_dimension_numbers<[1], [0], [0], [1], [0, 0, 1, 1], [], []>} : vector<8x32xbf16>, vector<32x8xbf16>, vector<8x8xf32> -> vector<8x8xf32>
    %c21_202 = arith.constant 21 : index
    %c0_203 = arith.constant 0 : index
    %c0_204 = arith.constant 0 : index
    %351 = vector.load %arg5[%c21_202, %c0_203, %c0_204] : memref<24x1x8xf32, #tpu.memory_space<vmem>>, vector<1x1x8xf32>
    %352 = vector.shape_cast %351 : vector<1x1x8xf32> to vector<1x8xf32>
    %353 = vector.broadcast %352 : vector<1x8xf32> to vector<8x8xf32>
    %354 = arith.addf %350, %353 : vector<8x8xf32>
    %355 = arith.truncf %340 : vector<8x8xf32> to vector<8x8xbf16>
    %356 = arith.truncf %347 : vector<8x8xf32> to vector<8x8xbf16>
    %cst_205 = arith.constant dense<0.000000e+00> : vector<8x8xf32>
    %357 = tpu.matmul %355, %356, %cst_205 {dimension_numbers = #tpu.dot_dimension_numbers<[1], [1], [0], [0], [0, 0, 1, 0], [], []>} : vector<8x8xbf16>, vector<8x8xbf16>, vector<8x8xf32> -> vector<8x8xf32>
    %358 = arith.addf %357, %6 : vector<8x8xf32>
    %cst_206 = arith.constant dense<0xFF800000> : vector<8xf32>
    %359 = vector.multi_reduction <maximumf>, %358, %cst_206 [1] : vector<8x8xf32> to vector<8xf32>
    %360 = vector.shape_cast %359 : vector<8xf32> to vector<8x1xf32>
    %361 = vector.broadcast %360 : vector<8x1xf32> to vector<8x8xf32>
    %362 = arith.subf %358, %361 : vector<8x8xf32>
    %363 = math.exp %362 : vector<8x8xf32>
    %cst_207 = arith.constant dense<0.000000e+00> : vector<8xf32>
    %364 = vector.multi_reduction <add>, %363, %cst_207 [1] : vector<8x8xf32> to vector<8xf32>
    %365 = vector.shape_cast %364 : vector<8xf32> to vector<8x1xf32>
    %366 = tpu.reciprocal %365 : vector<8x1xf32> -> vector<8x1xf32>
    %367 = vector.broadcast %366 : vector<8x1xf32> to vector<8x8xf32>
    %368 = arith.mulf %363, %367 : vector<8x8xf32>
    %369 = arith.truncf %368 : vector<8x8xf32> to vector<8x8xbf16>
    %370 = arith.truncf %354 : vector<8x8xf32> to vector<8x8xbf16>
    %cst_208 = arith.constant dense<0.000000e+00> : vector<8x8xf32>
    %371 = tpu.matmul %369, %370, %cst_208 {dimension_numbers = #tpu.dot_dimension_numbers<[1], [0], [0], [1], [0, 0, 1, 1], [], []>} : vector<8x8xbf16>, vector<8x8xbf16>, vector<8x8xf32> -> vector<8x8xf32>
    %372 = arith.truncf %371 : vector<8x8xf32> to vector<8x8xbf16>
    %c5_209 = arith.constant 5 : index
    %c0_210 = arith.constant 0 : index
    %c0_211 = arith.constant 0 : index
    %373 = vector.load %arg6[%c5_209, %c0_210, %c0_211] : memref<8x8x32xbf16, #tpu.memory_space<vmem>>, vector<1x8x32xbf16>
    %374 = vector.shape_cast %373 : vector<1x8x32xbf16> to vector<8x32xbf16>
    %cst_212 = arith.constant dense<0.000000e+00> : vector<8x32xf32>
    %375 = tpu.matmul %372, %374, %cst_212 {dimension_numbers = #tpu.dot_dimension_numbers<[1], [0], [0], [1], [0, 0, 1, 1], [], []>} : vector<8x8xbf16>, vector<8x32xbf16>, vector<8x32xf32> -> vector<8x32xf32>
    %376 = arith.addf %333, %375 : vector<8x32xf32>
    %c14 = arith.constant 14 : index
    %c0_213 = arith.constant 0 : index
    %c0_214 = arith.constant 0 : index
    %377 = vector.load %arg4[%c14, %c0_213, %c0_214] : memref<24x32x8xbf16, #tpu.memory_space<vmem>>, vector<1x32x8xbf16>
    %378 = vector.shape_cast %377 : vector<1x32x8xbf16> to vector<32x8xbf16>
    %cst_215 = arith.constant dense<0.000000e+00> : vector<8x8xf32>
    %379 = tpu.matmul %289, %378, %cst_215 {dimension_numbers = #tpu.dot_dimension_numbers<[1], [0], [0], [1], [0, 0, 1, 1], [], []>} : vector<8x32xbf16>, vector<32x8xbf16>, vector<8x8xf32> -> vector<8x8xf32>
    %c14_216 = arith.constant 14 : index
    %c0_217 = arith.constant 0 : index
    %c0_218 = arith.constant 0 : index
    %380 = vector.load %arg5[%c14_216, %c0_217, %c0_218] : memref<24x1x8xf32, #tpu.memory_space<vmem>>, vector<1x1x8xf32>
    %381 = vector.shape_cast %380 : vector<1x1x8xf32> to vector<1x8xf32>
    %382 = vector.broadcast %381 : vector<1x8xf32> to vector<8x8xf32>
    %383 = arith.addf %379, %382 : vector<8x8xf32>
    %c18 = arith.constant 18 : index
    %c0_219 = arith.constant 0 : index
    %c0_220 = arith.constant 0 : index
    %384 = vector.load %arg4[%c18, %c0_219, %c0_220] : memref<24x32x8xbf16, #tpu.memory_space<vmem>>, vector<1x32x8xbf16>
    %385 = vector.shape_cast %384 : vector<1x32x8xbf16> to vector<32x8xbf16>
    %cst_221 = arith.constant dense<0.000000e+00> : vector<8x8xf32>
    %386 = tpu.matmul %289, %385, %cst_221 {dimension_numbers = #tpu.dot_dimension_numbers<[1], [0], [0], [1], [0, 0, 1, 1], [], []>} : vector<8x32xbf16>, vector<32x8xbf16>, vector<8x8xf32> -> vector<8x8xf32>
    %c18_222 = arith.constant 18 : index
    %c0_223 = arith.constant 0 : index
    %c0_224 = arith.constant 0 : index
    %387 = vector.load %arg5[%c18_222, %c0_223, %c0_224] : memref<24x1x8xf32, #tpu.memory_space<vmem>>, vector<1x1x8xf32>
    %388 = vector.shape_cast %387 : vector<1x1x8xf32> to vector<1x8xf32>
    %389 = vector.broadcast %388 : vector<1x8xf32> to vector<8x8xf32>
    %390 = arith.addf %386, %389 : vector<8x8xf32>
    %c22 = arith.constant 22 : index
    %c0_225 = arith.constant 0 : index
    %c0_226 = arith.constant 0 : index
    %391 = vector.load %arg4[%c22, %c0_225, %c0_226] : memref<24x32x8xbf16, #tpu.memory_space<vmem>>, vector<1x32x8xbf16>
    %392 = vector.shape_cast %391 : vector<1x32x8xbf16> to vector<32x8xbf16>
    %cst_227 = arith.constant dense<0.000000e+00> : vector<8x8xf32>
    %393 = tpu.matmul %289, %392, %cst_227 {dimension_numbers = #tpu.dot_dimension_numbers<[1], [0], [0], [1], [0, 0, 1, 1], [], []>} : vector<8x32xbf16>, vector<32x8xbf16>, vector<8x8xf32> -> vector<8x8xf32>
    %c22_228 = arith.constant 22 : index
    %c0_229 = arith.constant 0 : index
    %c0_230 = arith.constant 0 : index
    %394 = vector.load %arg5[%c22_228, %c0_229, %c0_230] : memref<24x1x8xf32, #tpu.memory_space<vmem>>, vector<1x1x8xf32>
    %395 = vector.shape_cast %394 : vector<1x1x8xf32> to vector<1x8xf32>
    %396 = vector.broadcast %395 : vector<1x8xf32> to vector<8x8xf32>
    %397 = arith.addf %393, %396 : vector<8x8xf32>
    %398 = arith.truncf %383 : vector<8x8xf32> to vector<8x8xbf16>
    %399 = arith.truncf %390 : vector<8x8xf32> to vector<8x8xbf16>
    %cst_231 = arith.constant dense<0.000000e+00> : vector<8x8xf32>
    %400 = tpu.matmul %398, %399, %cst_231 {dimension_numbers = #tpu.dot_dimension_numbers<[1], [1], [0], [0], [0, 0, 1, 0], [], []>} : vector<8x8xbf16>, vector<8x8xbf16>, vector<8x8xf32> -> vector<8x8xf32>
    %401 = arith.addf %400, %6 : vector<8x8xf32>
    %cst_232 = arith.constant dense<0xFF800000> : vector<8xf32>
    %402 = vector.multi_reduction <maximumf>, %401, %cst_232 [1] : vector<8x8xf32> to vector<8xf32>
    %403 = vector.shape_cast %402 : vector<8xf32> to vector<8x1xf32>
    %404 = vector.broadcast %403 : vector<8x1xf32> to vector<8x8xf32>
    %405 = arith.subf %401, %404 : vector<8x8xf32>
    %406 = math.exp %405 : vector<8x8xf32>
    %cst_233 = arith.constant dense<0.000000e+00> : vector<8xf32>
    %407 = vector.multi_reduction <add>, %406, %cst_233 [1] : vector<8x8xf32> to vector<8xf32>
    %408 = vector.shape_cast %407 : vector<8xf32> to vector<8x1xf32>
    %409 = tpu.reciprocal %408 : vector<8x1xf32> -> vector<8x1xf32>
    %410 = vector.broadcast %409 : vector<8x1xf32> to vector<8x8xf32>
    %411 = arith.mulf %406, %410 : vector<8x8xf32>
    %412 = arith.truncf %411 : vector<8x8xf32> to vector<8x8xbf16>
    %413 = arith.truncf %397 : vector<8x8xf32> to vector<8x8xbf16>
    %cst_234 = arith.constant dense<0.000000e+00> : vector<8x8xf32>
    %414 = tpu.matmul %412, %413, %cst_234 {dimension_numbers = #tpu.dot_dimension_numbers<[1], [0], [0], [1], [0, 0, 1, 1], [], []>} : vector<8x8xbf16>, vector<8x8xbf16>, vector<8x8xf32> -> vector<8x8xf32>
    %415 = arith.truncf %414 : vector<8x8xf32> to vector<8x8xbf16>
    %c6_235 = arith.constant 6 : index
    %c0_236 = arith.constant 0 : index
    %c0_237 = arith.constant 0 : index
    %416 = vector.load %arg6[%c6_235, %c0_236, %c0_237] : memref<8x8x32xbf16, #tpu.memory_space<vmem>>, vector<1x8x32xbf16>
    %417 = vector.shape_cast %416 : vector<1x8x32xbf16> to vector<8x32xbf16>
    %cst_238 = arith.constant dense<0.000000e+00> : vector<8x32xf32>
    %418 = tpu.matmul %415, %417, %cst_238 {dimension_numbers = #tpu.dot_dimension_numbers<[1], [0], [0], [1], [0, 0, 1, 1], [], []>} : vector<8x8xbf16>, vector<8x32xbf16>, vector<8x32xf32> -> vector<8x32xf32>
    %419 = arith.addf %376, %418 : vector<8x32xf32>
    %c15 = arith.constant 15 : index
    %c0_239 = arith.constant 0 : index
    %c0_240 = arith.constant 0 : index
    %420 = vector.load %arg4[%c15, %c0_239, %c0_240] : memref<24x32x8xbf16, #tpu.memory_space<vmem>>, vector<1x32x8xbf16>
    %421 = vector.shape_cast %420 : vector<1x32x8xbf16> to vector<32x8xbf16>
    %cst_241 = arith.constant dense<0.000000e+00> : vector<8x8xf32>
    %422 = tpu.matmul %289, %421, %cst_241 {dimension_numbers = #tpu.dot_dimension_numbers<[1], [0], [0], [1], [0, 0, 1, 1], [], []>} : vector<8x32xbf16>, vector<32x8xbf16>, vector<8x8xf32> -> vector<8x8xf32>
    %c15_242 = arith.constant 15 : index
    %c0_243 = arith.constant 0 : index
    %c0_244 = arith.constant 0 : index
    %423 = vector.load %arg5[%c15_242, %c0_243, %c0_244] : memref<24x1x8xf32, #tpu.memory_space<vmem>>, vector<1x1x8xf32>
    %424 = vector.shape_cast %423 : vector<1x1x8xf32> to vector<1x8xf32>
    %425 = vector.broadcast %424 : vector<1x8xf32> to vector<8x8xf32>
    %426 = arith.addf %422, %425 : vector<8x8xf32>
    %c19 = arith.constant 19 : index
    %c0_245 = arith.constant 0 : index
    %c0_246 = arith.constant 0 : index
    %427 = vector.load %arg4[%c19, %c0_245, %c0_246] : memref<24x32x8xbf16, #tpu.memory_space<vmem>>, vector<1x32x8xbf16>
    %428 = vector.shape_cast %427 : vector<1x32x8xbf16> to vector<32x8xbf16>
    %cst_247 = arith.constant dense<0.000000e+00> : vector<8x8xf32>
    %429 = tpu.matmul %289, %428, %cst_247 {dimension_numbers = #tpu.dot_dimension_numbers<[1], [0], [0], [1], [0, 0, 1, 1], [], []>} : vector<8x32xbf16>, vector<32x8xbf16>, vector<8x8xf32> -> vector<8x8xf32>
    %c19_248 = arith.constant 19 : index
    %c0_249 = arith.constant 0 : index
    %c0_250 = arith.constant 0 : index
    %430 = vector.load %arg5[%c19_248, %c0_249, %c0_250] : memref<24x1x8xf32, #tpu.memory_space<vmem>>, vector<1x1x8xf32>
    %431 = vector.shape_cast %430 : vector<1x1x8xf32> to vector<1x8xf32>
    %432 = vector.broadcast %431 : vector<1x8xf32> to vector<8x8xf32>
    %433 = arith.addf %429, %432 : vector<8x8xf32>
    %c23 = arith.constant 23 : index
    %c0_251 = arith.constant 0 : index
    %c0_252 = arith.constant 0 : index
    %434 = vector.load %arg4[%c23, %c0_251, %c0_252] : memref<24x32x8xbf16, #tpu.memory_space<vmem>>, vector<1x32x8xbf16>
    %435 = vector.shape_cast %434 : vector<1x32x8xbf16> to vector<32x8xbf16>
    %cst_253 = arith.constant dense<0.000000e+00> : vector<8x8xf32>
    %436 = tpu.matmul %289, %435, %cst_253 {dimension_numbers = #tpu.dot_dimension_numbers<[1], [0], [0], [1], [0, 0, 1, 1], [], []>} : vector<8x32xbf16>, vector<32x8xbf16>, vector<8x8xf32> -> vector<8x8xf32>
    %c23_254 = arith.constant 23 : index
    %c0_255 = arith.constant 0 : index
    %c0_256 = arith.constant 0 : index
    %437 = vector.load %arg5[%c23_254, %c0_255, %c0_256] : memref<24x1x8xf32, #tpu.memory_space<vmem>>, vector<1x1x8xf32>
    %438 = vector.shape_cast %437 : vector<1x1x8xf32> to vector<1x8xf32>
    %439 = vector.broadcast %438 : vector<1x8xf32> to vector<8x8xf32>
    %440 = arith.addf %436, %439 : vector<8x8xf32>
    %441 = arith.truncf %426 : vector<8x8xf32> to vector<8x8xbf16>
    %442 = arith.truncf %433 : vector<8x8xf32> to vector<8x8xbf16>
    %cst_257 = arith.constant dense<0.000000e+00> : vector<8x8xf32>
    %443 = tpu.matmul %441, %442, %cst_257 {dimension_numbers = #tpu.dot_dimension_numbers<[1], [1], [0], [0], [0, 0, 1, 0], [], []>} : vector<8x8xbf16>, vector<8x8xbf16>, vector<8x8xf32> -> vector<8x8xf32>
    %444 = arith.addf %443, %6 : vector<8x8xf32>
    %cst_258 = arith.constant dense<0xFF800000> : vector<8xf32>
    %445 = vector.multi_reduction <maximumf>, %444, %cst_258 [1] : vector<8x8xf32> to vector<8xf32>
    %446 = vector.shape_cast %445 : vector<8xf32> to vector<8x1xf32>
    %447 = vector.broadcast %446 : vector<8x1xf32> to vector<8x8xf32>
    %448 = arith.subf %444, %447 : vector<8x8xf32>
    %449 = math.exp %448 : vector<8x8xf32>
    %cst_259 = arith.constant dense<0.000000e+00> : vector<8xf32>
    %450 = vector.multi_reduction <add>, %449, %cst_259 [1] : vector<8x8xf32> to vector<8xf32>
    %451 = vector.shape_cast %450 : vector<8xf32> to vector<8x1xf32>
    %452 = tpu.reciprocal %451 : vector<8x1xf32> -> vector<8x1xf32>
    %453 = vector.broadcast %452 : vector<8x1xf32> to vector<8x8xf32>
    %454 = arith.mulf %449, %453 : vector<8x8xf32>
    %455 = arith.truncf %454 : vector<8x8xf32> to vector<8x8xbf16>
    %456 = arith.truncf %440 : vector<8x8xf32> to vector<8x8xbf16>
    %cst_260 = arith.constant dense<0.000000e+00> : vector<8x8xf32>
    %457 = tpu.matmul %455, %456, %cst_260 {dimension_numbers = #tpu.dot_dimension_numbers<[1], [0], [0], [1], [0, 0, 1, 1], [], []>} : vector<8x8xbf16>, vector<8x8xbf16>, vector<8x8xf32> -> vector<8x8xf32>
    %458 = arith.truncf %457 : vector<8x8xf32> to vector<8x8xbf16>
    %c7_261 = arith.constant 7 : index
    %c0_262 = arith.constant 0 : index
    %c0_263 = arith.constant 0 : index
    %459 = vector.load %arg6[%c7_261, %c0_262, %c0_263] : memref<8x8x32xbf16, #tpu.memory_space<vmem>>, vector<1x8x32xbf16>
    %460 = vector.shape_cast %459 : vector<1x8x32xbf16> to vector<8x32xbf16>
    %cst_264 = arith.constant dense<0.000000e+00> : vector<8x32xf32>
    %461 = tpu.matmul %458, %460, %cst_264 {dimension_numbers = #tpu.dot_dimension_numbers<[1], [0], [0], [1], [0, 0, 1, 1], [], []>} : vector<8x8xbf16>, vector<8x32xbf16>, vector<8x32xf32> -> vector<8x32xf32>
    %462 = arith.addf %419, %461 : vector<8x32xf32>
    %463 = arith.addf %262, %462 : vector<8x32xf32>
    %c1_265 = arith.constant 1 : index
    %c0_266 = arith.constant 0 : index
    %c0_267 = arith.constant 0 : index
    %464 = vector.load %arg7[%c1_265, %c0_266, %c0_267] : memref<2x1x32xf32, #tpu.memory_space<vmem>>, vector<1x1x32xf32>
    %465 = vector.shape_cast %464 : vector<1x1x32xf32> to vector<1x32xf32>
    %466 = vector.broadcast %465 : vector<1x32xf32> to vector<8x32xf32>
    %467 = arith.addf %463, %466 : vector<8x32xf32>
    %c1_268 = arith.constant 1 : index
    %c0_269 = arith.constant 0 : index
    %c0_270 = arith.constant 0 : index
    %468 = vector.load %arg8[%c1_268, %c0_269, %c0_270] : memref<2x1x32xf32, #tpu.memory_space<vmem>>, vector<1x1x32xf32>
    %469 = vector.shape_cast %468 : vector<1x1x32xf32> to vector<1x32xf32>
    %c1_271 = arith.constant 1 : index
    %c0_272 = arith.constant 0 : index
    %c0_273 = arith.constant 0 : index
    %470 = vector.load %arg9[%c1_271, %c0_272, %c0_273] : memref<2x1x32xf32, #tpu.memory_space<vmem>>, vector<1x1x32xf32>
    %471 = vector.shape_cast %470 : vector<1x1x32xf32> to vector<1x32xf32>
    %cst_274 = arith.constant dense<0.000000e+00> : vector<8xf32>
    %472 = vector.multi_reduction <add>, %467, %cst_274 [1] : vector<8x32xf32> to vector<8xf32>
    %473 = vector.shape_cast %472 : vector<8xf32> to vector<8x1xf32>
    %cst_275 = arith.constant 3.200000e+01 : f32
    %474 = vector.broadcast %cst_275 : f32 to vector<8x1xf32>
    %475 = arith.divf %473, %474 : vector<8x1xf32>
    %476 = vector.broadcast %475 : vector<8x1xf32> to vector<8x32xf32>
    %477 = arith.subf %467, %476 : vector<8x32xf32>
    %478 = arith.mulf %477, %477 : vector<8x32xf32>
    %cst_276 = arith.constant dense<0.000000e+00> : vector<8xf32>
    %479 = vector.multi_reduction <add>, %478, %cst_276 [1] : vector<8x32xf32> to vector<8xf32>
    %480 = vector.shape_cast %479 : vector<8xf32> to vector<8x1xf32>
    %cst_277 = arith.constant 3.200000e+01 : f32
    %481 = vector.broadcast %cst_277 : f32 to vector<8x1xf32>
    %482 = arith.divf %480, %481 : vector<8x1xf32>
    %483 = vector.broadcast %475 : vector<8x1xf32> to vector<8x32xf32>
    %484 = arith.subf %467, %483 : vector<8x32xf32>
    %cst_278 = arith.constant 9.99999974E-6 : f32
    %485 = vector.broadcast %cst_278 : f32 to vector<8x1xf32>
    %486 = arith.addf %482, %485 : vector<8x1xf32>
    %487 = math.rsqrt %486 : vector<8x1xf32>
    %488 = vector.broadcast %487 : vector<8x1xf32> to vector<8x32xf32>
    %489 = arith.mulf %484, %488 : vector<8x32xf32>
    %490 = vector.broadcast %469 : vector<1x32xf32> to vector<8x32xf32>
    %491 = arith.mulf %489, %490 : vector<8x32xf32>
    %492 = vector.broadcast %471 : vector<1x32xf32> to vector<8x32xf32>
    %493 = arith.addf %491, %492 : vector<8x32xf32>
    %494 = arith.truncf %493 : vector<8x32xf32> to vector<8x32xbf16>
    %c1_279 = arith.constant 1 : index
    %c0_280 = arith.constant 0 : index
    %c0_281 = arith.constant 0 : index
    %495 = vector.load %arg10[%c1_279, %c0_280, %c0_281] : memref<2x32x64xbf16, #tpu.memory_space<vmem>>, vector<1x32x64xbf16>
    %496 = vector.shape_cast %495 : vector<1x32x64xbf16> to vector<32x64xbf16>
    %cst_282 = arith.constant dense<0.000000e+00> : vector<8x64xf32>
    %497 = tpu.matmul %494, %496, %cst_282 {dimension_numbers = #tpu.dot_dimension_numbers<[1], [0], [0], [1], [0, 0, 1, 1], [], []>} : vector<8x32xbf16>, vector<32x64xbf16>, vector<8x64xf32> -> vector<8x64xf32>
    %c1_283 = arith.constant 1 : index
    %c0_284 = arith.constant 0 : index
    %c0_285 = arith.constant 0 : index
    %498 = vector.load %arg11[%c1_283, %c0_284, %c0_285] : memref<2x1x64xf32, #tpu.memory_space<vmem>>, vector<1x1x64xf32>
    %499 = vector.shape_cast %498 : vector<1x1x64xf32> to vector<1x64xf32>
    %500 = vector.broadcast %499 : vector<1x64xf32> to vector<8x64xf32>
    %501 = arith.addf %497, %500 : vector<8x64xf32>
    %cst_286 = arith.constant 1.702000e+00 : f32
    %502 = vector.broadcast %cst_286 : f32 to vector<8x64xf32>
    %503 = arith.mulf %502, %501 : vector<8x64xf32>
    %504 = arith.negf %503 : vector<8x64xf32>
    %505 = math.exp %504 : vector<8x64xf32>
    %cst_287 = arith.constant 1.000000e+00 : f32
    %506 = vector.broadcast %cst_287 : f32 to vector<8x64xf32>
    %507 = arith.addf %506, %505 : vector<8x64xf32>
    %508 = arith.divf %506, %507 : vector<8x64xf32>
    %509 = arith.mulf %501, %508 : vector<8x64xf32>
    %510 = arith.truncf %509 : vector<8x64xf32> to vector<8x64xbf16>
    %c1_288 = arith.constant 1 : index
    %c0_289 = arith.constant 0 : index
    %c0_290 = arith.constant 0 : index
    %511 = vector.load %arg12[%c1_288, %c0_289, %c0_290] : memref<2x64x32xbf16, #tpu.memory_space<vmem>>, vector<1x64x32xbf16>
    %512 = vector.shape_cast %511 : vector<1x64x32xbf16> to vector<64x32xbf16>
    %cst_291 = arith.constant dense<0.000000e+00> : vector<8x32xf32>
    %513 = tpu.matmul %510, %512, %cst_291 {dimension_numbers = #tpu.dot_dimension_numbers<[1], [0], [0], [1], [0, 0, 1, 1], [], []>} : vector<8x64xbf16>, vector<64x32xbf16>, vector<8x32xf32> -> vector<8x32xf32>
    %514 = arith.addf %467, %513 : vector<8x32xf32>
    %c1_292 = arith.constant 1 : index
    %c0_293 = arith.constant 0 : index
    %c0_294 = arith.constant 0 : index
    %515 = vector.load %arg13[%c1_292, %c0_293, %c0_294] : memref<2x1x32xf32, #tpu.memory_space<vmem>>, vector<1x1x32xf32>
    %516 = vector.shape_cast %515 : vector<1x1x32xf32> to vector<1x32xf32>
    %517 = vector.broadcast %516 : vector<1x32xf32> to vector<8x32xf32>
    %518 = arith.addf %514, %517 : vector<8x32xf32>
    %c0_295 = arith.constant 0 : index
    %c0_296 = arith.constant 0 : index
    %519 = vector.load %arg14[%c0_295, %c0_296] : memref<1x32xf32, #tpu.memory_space<vmem>>, vector<1x32xf32>
    %c0_297 = arith.constant 0 : index
    %c0_298 = arith.constant 0 : index
    %520 = vector.load %arg15[%c0_297, %c0_298] : memref<1x32xf32, #tpu.memory_space<vmem>>, vector<1x32xf32>
    %cst_299 = arith.constant dense<0.000000e+00> : vector<8xf32>
    %521 = vector.multi_reduction <add>, %518, %cst_299 [1] : vector<8x32xf32> to vector<8xf32>
    %522 = vector.shape_cast %521 : vector<8xf32> to vector<8x1xf32>
    %cst_300 = arith.constant 3.200000e+01 : f32
    %523 = vector.broadcast %cst_300 : f32 to vector<8x1xf32>
    %524 = arith.divf %522, %523 : vector<8x1xf32>
    %525 = vector.broadcast %524 : vector<8x1xf32> to vector<8x32xf32>
    %526 = arith.subf %518, %525 : vector<8x32xf32>
    %527 = arith.mulf %526, %526 : vector<8x32xf32>
    %cst_301 = arith.constant dense<0.000000e+00> : vector<8xf32>
    %528 = vector.multi_reduction <add>, %527, %cst_301 [1] : vector<8x32xf32> to vector<8xf32>
    %529 = vector.shape_cast %528 : vector<8xf32> to vector<8x1xf32>
    %cst_302 = arith.constant 3.200000e+01 : f32
    %530 = vector.broadcast %cst_302 : f32 to vector<8x1xf32>
    %531 = arith.divf %529, %530 : vector<8x1xf32>
    %532 = vector.broadcast %524 : vector<8x1xf32> to vector<8x32xf32>
    %533 = arith.subf %518, %532 : vector<8x32xf32>
    %cst_303 = arith.constant 9.99999974E-6 : f32
    %534 = vector.broadcast %cst_303 : f32 to vector<8x1xf32>
    %535 = arith.addf %531, %534 : vector<8x1xf32>
    %536 = math.rsqrt %535 : vector<8x1xf32>
    %537 = vector.broadcast %536 : vector<8x1xf32> to vector<8x32xf32>
    %538 = arith.mulf %533, %537 : vector<8x32xf32>
    %539 = vector.broadcast %519 : vector<1x32xf32> to vector<8x32xf32>
    %540 = arith.mulf %538, %539 : vector<8x32xf32>
    %541 = vector.broadcast %520 : vector<1x32xf32> to vector<8x32xf32>
    %542 = arith.addf %540, %541 : vector<8x32xf32>
    %c0_304 = arith.constant 0 : index
    %c0_305 = arith.constant 0 : index
    %543 = vector.load %arg16[%c0_304, %c0_305] : memref<8x32xf32, #tpu.memory_space<vmem>>, vector<8x32xf32>
    tpu.vector_store %arg16[%c0_304, %c0_305], %542 {strides = array<i32>} : memref<8x32xf32, #tpu.memory_space<vmem>>, vector<8x32xf32>,
    return
  }
  func.func @transform_0(%arg0: i32) -> (i32, i32) {
    %c0_i32 = arith.constant 0 : i32
    %c0_i32_0 = arith.constant 0 : i32
    return %arg0, %c0_i32 : i32, i32
  }
  func.func @transform_1(%arg0: i32) -> (i32, i32, i32) {
    %c0_i32 = arith.constant 0 : i32
    %c0_i32_0 = arith.constant 0 : i32
    %c0_i32_1 = arith.constant 0 : i32
    %c0_i32_2 = arith.constant 0 : i32
    return %c0_i32, %c0_i32_0, %c0_i32_1 : i32, i32, i32
  }
  func.func @transform_2(%arg0: i32) -> (i32, i32, i32) {
    %c0_i32 = arith.constant 0 : i32
    %c0_i32_0 = arith.constant 0 : i32
    %c0_i32_1 = arith.constant 0 : i32
    %c0_i32_2 = arith.constant 0 : i32
    return %c0_i32, %c0_i32_0, %c0_i32_1 : i32, i32, i32
  }
  func.func @transform_3(%arg0: i32) -> (i32, i32, i32) {
    %c0_i32 = arith.constant 0 : i32
    %c0_i32_0 = arith.constant 0 : i32
    %c0_i32_1 = arith.constant 0 : i32
    %c0_i32_2 = arith.constant 0 : i32
    return %c0_i32, %c0_i32_0, %c0_i32_1 : i32, i32, i32
  }
  func.func @transform_4(%arg0: i32) -> (i32, i32, i32) {
    %c0_i32 = arith.constant 0 : i32
    %c0_i32_0 = arith.constant 0 : i32
    %c0_i32_1 = arith.constant 0 : i32
    %c0_i32_2 = arith.constant 0 : i32
    return %c0_i32, %c0_i32_0, %c0_i32_1 : i32, i32, i32
  }
  func.func @transform_5(%arg0: i32) -> (i32, i32, i32) {
    %c0_i32 = arith.constant 0 : i32
    %c0_i32_0 = arith.constant 0 : i32
    %c0_i32_1 = arith.constant 0 : i32
    %c0_i32_2 = arith.constant 0 : i32
    return %c0_i32, %c0_i32_0, %c0_i32_1 : i32, i32, i32
  }
  func.func @transform_6(%arg0: i32) -> (i32, i32, i32) {
    %c0_i32 = arith.constant 0 : i32
    %c0_i32_0 = arith.constant 0 : i32
    %c0_i32_1 = arith.constant 0 : i32
    %c0_i32_2 = arith.constant 0 : i32
    return %c0_i32, %c0_i32_0, %c0_i32_1 : i32, i32, i32
  }
  func.func @transform_7(%arg0: i32) -> (i32, i32, i32) {
    %c0_i32 = arith.constant 0 : i32
    %c0_i32_0 = arith.constant 0 : i32
    %c0_i32_1 = arith.constant 0 : i32
    %c0_i32_2 = arith.constant 0 : i32
    return %c0_i32, %c0_i32_0, %c0_i32_1 : i32, i32, i32
  }
  func.func @transform_8(%arg0: i32) -> (i32, i32, i32) {
    %c0_i32 = arith.constant 0 : i32
    %c0_i32_0 = arith.constant 0 : i32
    %c0_i32_1 = arith.constant 0 : i32
    %c0_i32_2 = arith.constant 0 : i32
    return %c0_i32, %c0_i32_0, %c0_i32_1 : i32, i32, i32
  }
  func.func @transform_9(%arg0: i32) -> (i32, i32, i32) {
    %c0_i32 = arith.constant 0 : i32
    %c0_i32_0 = arith.constant 0 : i32
    %c0_i32_1 = arith.constant 0 : i32
    %c0_i32_2 = arith.constant 0 : i32
    return %c0_i32, %c0_i32_0, %c0_i32_1 : i32, i32, i32
  }
  func.func @transform_10(%arg0: i32) -> (i32, i32, i32) {
    %c0_i32 = arith.constant 0 : i32
    %c0_i32_0 = arith.constant 0 : i32
    %c0_i32_1 = arith.constant 0 : i32
    %c0_i32_2 = arith.constant 0 : i32
    return %c0_i32, %c0_i32_0, %c0_i32_1 : i32, i32, i32
  }
  func.func @transform_11(%arg0: i32) -> (i32, i32, i32) {
    %c0_i32 = arith.constant 0 : i32
    %c0_i32_0 = arith.constant 0 : i32
    %c0_i32_1 = arith.constant 0 : i32
    %c0_i32_2 = arith.constant 0 : i32
    return %c0_i32, %c0_i32_0, %c0_i32_1 : i32, i32, i32
  }
  func.func @transform_12(%arg0: i32) -> (i32, i32, i32) {
    %c0_i32 = arith.constant 0 : i32
    %c0_i32_0 = arith.constant 0 : i32
    %c0_i32_1 = arith.constant 0 : i32
    %c0_i32_2 = arith.constant 0 : i32
    return %c0_i32, %c0_i32_0, %c0_i32_1 : i32, i32, i32
  }
  func.func @transform_13(%arg0: i32) -> (i32, i32) {
    %c0_i32 = arith.constant 0 : i32
    %c0_i32_0 = arith.constant 0 : i32
    %c0_i32_1 = arith.constant 0 : i32
    return %c0_i32, %c0_i32_0 : i32, i32
  }
  func.func @transform_14(%arg0: i32) -> (i32, i32) {
    %c0_i32 = arith.constant 0 : i32
    %c0_i32_0 = arith.constant 0 : i32
    %c0_i32_1 = arith.constant 0 : i32
    return %c0_i32, %c0_i32_0 : i32, i32
  }
  func.func @transform_15(%arg0: i32) -> (i32, i32) {
    %c0_i32 = arith.constant 0 : i32
    %c0_i32_0 = arith.constant 0 : i32
    return %arg0, %c0_i32 : i32, i32
  }
}

</mosaic_0001>

<llo_original>
// kernel: tpu_custom_call.1
$region0: #{tpu_custom_call.1}
  #allocation0 [shape = 'u32[]', space=smem, size = 0x4, offset = 0x4, fixed_abs, tag = 'smem constant byte address 0x4 - core index']
  #allocation1 [shape = 'u32[144,128]{1,0:T(1,128)}', space=vmem, size = 0x12000, scoped, tag = 'internal scratch']
  %s0 = inlined_call_operand.vmem [shape: f32[16,32], index: 0, kind: input, shape index: {}]
  %s1 = inlined_call_operand.vmem [shape: f32[2,1,32], index: 1, kind: input, shape index: {}]
  %s2 = inlined_call_operand.vmem [shape: f32[2,1,32], index: 2, kind: input, shape index: {}]
  %s3 = inlined_call_operand.vmem [shape: bf16[24,32,8], index: 3, kind: input, shape index: {}]
  %s4 = inlined_call_operand.vmem [shape: f32[24,1,8], index: 4, kind: input, shape index: {}]
  %s5 = inlined_call_operand.vmem [shape: bf16[8,8,32], index: 5, kind: input, shape index: {}]
  %s6 = inlined_call_operand.vmem [shape: f32[2,1,32], index: 6, kind: input, shape index: {}]
  %s7 = inlined_call_operand.vmem [shape: f32[2,1,32], index: 7, kind: input, shape index: {}]
  %s8 = inlined_call_operand.vmem [shape: f32[2,1,32], index: 8, kind: input, shape index: {}]
  %s9 = inlined_call_operand.vmem [shape: bf16[2,32,64], index: 9, kind: input, shape index: {}]
  %s10 = inlined_call_operand.vmem [shape: f32[2,1,64], index: 10, kind: input, shape index: {}]
  %s11 = inlined_call_operand.vmem [shape: bf16[2,64,32], index: 11, kind: input, shape index: {}]
  %s12 = inlined_call_operand.vmem [shape: f32[2,1,32], index: 12, kind: input, shape index: {}]
  %s13 = inlined_call_operand.vmem [shape: f32[1,32], index: 13, kind: input, shape index: {}]
  %s14 = inlined_call_operand.vmem [shape: f32[1,32], index: 14, kind: input, shape index: {}]
  %s15 = inlined_call_operand.hbm [shape: f32[16,32], index: 15, kind: output, shape index: {}]
  %s16 = sld [smem:[#allocation0]]
  $region93: #{tpu_custom_call.1} parent=0
    _
  %s18 = ssub.s32 1, %s16
  %s19 = scalar_select 0, %s18, %s16
  $region1: #{tpu_custom_call.1} parent=0
    #allocation2 [shape = 'u8[8192]{0}', space=vmem, size = 0x2000, scoped, tag = 'output window, operand 0']
    #allocation3 [shape = 's32[2]{0}', space=sflag, size = 0x8, scoped, tag = 'scoped memory for tpu_custom_call.1']
    %20 = vsyncpa [#allocation3], 0
    %s21 = scalar_lea.sflag [#allocation3], 1
    %22 = vsyncpa %s21, 0
    loop: start=0, step=1, limit=4
    $region2: #{tpu_custom_call.1} parent=1 // loop_pre_header
      _
    $region3: #{tpu_custom_call.1} parent=1 // loop_header
      %s24 = sphi 0, %s28
      %p25 = scmp.ge.s32.totalorder %s24, 4
      %s34 = sphi 0, %s36
      %s37 = sphi 0, %s34
      %s38 = sphi 0, %s37
      %s54 = sphi 0, %s38
      %s58 = sphi 0, %s58
      %s60 = sphi 0, %s58
      %s61 = sphi 0, %s60
      %s75 = sphi 0, %s61
      %s79 = sphi 0, %s79
      %s81 = sphi 0, %s79
      %s82 = sphi 0, %s81
      %s96 = sphi 0, %s82
      %s100 = sphi 0, %s100
      %s102 = sphi 0, %s100
      %s103 = sphi 0, %s102
      %s117 = sphi 0, %s103
      %s121 = sphi 0, %s121
      %s123 = sphi 0, %s121
      %s124 = sphi 0, %s123
      %s138 = sphi 0, %s124
      %s142 = sphi 0, %s142
      %s144 = sphi 0, %s142
      %s145 = sphi 0, %s144
      %s159 = sphi 0, %s145
      %s163 = sphi 0, %s163
      %s165 = sphi 0, %s163
      %s166 = sphi 0, %s165
      %s180 = sphi 0, %s166
      %s184 = sphi 0, %s184
      %s186 = sphi 0, %s184
      %s187 = sphi 0, %s186
      %s201 = sphi 0, %s187
      %s205 = sphi 0, %s205
      %s207 = sphi 0, %s205
      %s208 = sphi 0, %s207
      %s222 = sphi 0, %s208
      %s226 = sphi 0, %s226
      %s228 = sphi 0, %s226
      %s229 = sphi 0, %s228
      %s243 = sphi 0, %s229
      %s247 = sphi 0, %s247
      %s249 = sphi 0, %s247
      %s250 = sphi 0, %s249
      %s264 = sphi 0, %s250
      %s268 = sphi 0, %s268
      %s270 = sphi 0, %s268
      %s271 = sphi 0, %s270
      %s285 = sphi 0, %s271
      %s289 = sphi 0, %s289
      %s291 = sphi 0, %s289
      %s292 = sphi 0, %s291
      %s306 = sphi 0, %s292
      %s310 = sphi 0, %s310
      %s312 = sphi 0, %s310
      %s313 = sphi 0, %s312
      %s327 = sphi 0, %s313
      %s331 = sphi 0, %s331
      %s333 = sphi 0, %s331
      %s334 = sphi 0, %s333
      %s348 = sphi 0, %s334
      %s354 = sphi 0, %s356
      %s357 = sphi 0, %s354
      %s358 = sphi 0, %s357
      %s374 = sphi 0, %s358
    $region4: #{tpu_custom_call.1} parent=1 // loop_header_branch
      %27 = sbr.rel (%p25) target = $region8
    $region5: #{tpu_custom_call.1} parent=1 // loop_body
      %s29 = ssub.s32 %s24, 1
      %s30 = ssub.s32 %s24, 2
      %s31 = sadd.s32 %s24, 1
      %s32 = ssub.s32 %s24, %s31
      %p33 = scmp.eq.s32.totalorder %s32, 0
      %s35 = sadd.s32 %s34, 1
      %s36 = scalar_select %p33, %s34, %s35
      %p39 = pneg %p33
      %p40 = scmp.eq.s32.totalorder %s24, 1
      %p41 = por %p39, %p40
      %p42 = scmp.ne.s32.totalorder %s34, %s37
      %p43 = scmp.eq.s32.totalorder %s24, 0
      %p44 = por %p42, %p43
      %p45 = scmp.ne.s32.totalorder %s34, %s37
      %p46 = scmp.eq.s32.totalorder %s29, 1
      %p47 = por %p45, %p46
      %p48 = scmp.ne.s32.totalorder %s37, %s38
      %p49 = scmp.eq.s32.totalorder %s29, 0
      %p50 = por %p48, %p49
      %p51 = scmp.ne.s32.totalorder %s37, %s38
      %p52 = scmp.eq.s32.totalorder %s30, 1
      %p53 = por %p51, %p52
      %p55 = scmp.ne.s32.totalorder %s38, %s54
      %p56 = scmp.eq.s32.totalorder %s30, 0
      %p57 = por %p55, %p56
      %s59 = sadd.s32 %s58, 1
      %p62 = scmp.eq.s32.totalorder %s24, 1
      %p63 = scmp.ne.s32.totalorder %s58, %s60
      %p64 = scmp.eq.s32.totalorder %s24, 0
      %p65 = por %p63, %p64
      %p66 = scmp.ne.s32.totalorder %s58, %s60
      %p67 = scmp.eq.s32.totalorder %s29, 1
      %p68 = por %p66, %p67
      %p69 = scmp.ne.s32.totalorder %s60, %s61
      %p70 = scmp.eq.s32.totalorder %s29, 0
      %p71 = por %p69, %p70
      %p72 = scmp.ne.s32.totalorder %s60, %s61
      %p73 = scmp.eq.s32.totalorder %s30, 1
      %p74 = por %p72, %p73
      %p76 = scmp.ne.s32.totalorder %s61, %s75
      %p77 = scmp.eq.s32.totalorder %s30, 0
      %p78 = por %p76, %p77
      %s80 = sadd.s32 %s79, 1
      %p83 = scmp.eq.s32.totalorder %s24, 1
      %p84 = scmp.ne.s32.totalorder %s79, %s81
      %p85 = scmp.eq.s32.totalorder %s24, 0
      %p86 = por %p84, %p85
      %p87 = scmp.ne.s32.totalorder %s79, %s81
      %p88 = scmp.eq.s32.totalorder %s29, 1
      %p89 = por %p87, %p88
      %p90 = scmp.ne.s32.totalorder %s81, %s82
      %p91 = scmp.eq.s32.totalorder %s29, 0
      %p92 = por %p90, %p91
      %p93 = scmp.ne.s32.totalorder %s81, %s82
      %p94 = scmp.eq.s32.totalorder %s30, 1
      %p95 = por %p93, %p94
      %p97 = scmp.ne.s32.totalorder %s82, %s96
      %p98 = scmp.eq.s32.totalorder %s30, 0
      %p99 = por %p97, %p98
      %s101 = sadd.s32 %s100, 1
      %p104 = scmp.eq.s32.totalorder %s24, 1
      %p105 = scmp.ne.s32.totalorder %s100, %s102
      %p106 = scmp.eq.s32.totalorder %s24, 0
      %p107 = por %p105, %p106
      %p108 = scmp.ne.s32.totalorder %s100, %s102
      %p109 = scmp.eq.s32.totalorder %s29, 1
      %p110 = por %p108, %p109
      %p111 = scmp.ne.s32.totalorder %s102, %s103
      %p112 = scmp.eq.s32.totalorder %s29, 0
      %p113 = por %p111, %p112
      %p114 = scmp.ne.s32.totalorder %s102, %s103
      %p115 = scmp.eq.s32.totalorder %s30, 1
      %p116 = por %p114, %p115
      %p118 = scmp.ne.s32.totalorder %s103, %s117
      %p119 = scmp.eq.s32.totalorder %s30, 0
      %p120 = por %p118, %p119
      %s122 = sadd.s32 %s121, 1
      %p125 = scmp.eq.s32.totalorder %s24, 1
      %p126 = scmp.ne.s32.totalorder %s121, %s123
      %p127 = scmp.eq.s32.totalorder %s24, 0
      %p128 = por %p126, %p127
      %p129 = scmp.ne.s32.totalorder %s121, %s123
      %p130 = scmp.eq.s32.totalorder %s29, 1
      %p131 = por %p129, %p130
      %p132 = scmp.ne.s32.totalorder %s123, %s124
      %p133 = scmp.eq.s32.totalorder %s29, 0
      %p134 = por %p132, %p133
      %p135 = scmp.ne.s32.totalorder %s123, %s124
      %p136 = scmp.eq.s32.totalorder %s30, 1
      %p137 = por %p135, %p136
      %p139 = scmp.ne.s32.totalorder %s124, %s138
      %p140 = scmp.eq.s32.totalorder %s30, 0
      %p141 = por %p139, %p140
      %s143 = sadd.s32 %s142, 1
      %p146 = scmp.eq.s32.totalorder %s24, 1
      %p147 = scmp.ne.s32.totalorder %s142, %s144
      %p148 = scmp.eq.s32.totalorder %s24, 0
      %p149 = por %p147, %p148
      %p150 = scmp.ne.s32.totalorder %s142, %s144
      %p151 = scmp.eq.s32.totalorder %s29, 1
      %p152 = por %p150, %p151
      %p153 = scmp.ne.s32.totalorder %s144, %s145
      %p154 = scmp.eq.s32.totalorder %s29, 0
      %p155 = por %p153, %p154
      %p156 = scmp.ne.s32.totalorder %s144, %s145
      %p157 = scmp.eq.s32.totalorder %s30, 1
      %p158 = por %p156, %p157
      %p160 = scmp.ne.s32.totalorder %s145, %s159
      %p161 = scmp.eq.s32.totalorder %s30, 0
      %p162 = por %p160, %p161
      %s164 = sadd.s32 %s163, 1
      %p167 = scmp.eq.s32.totalorder %s24, 1
      %p168 = scmp.ne.s32.totalorder %s163, %s165
      %p169 = scmp.eq.s32.totalorder %s24, 0
      %p170 = por %p168, %p169
      %p171 = scmp.ne.s32.totalorder %s163, %s165
      %p172 = scmp.eq.s32.totalorder %s29, 1
      %p173 = por %p171, %p172
      %p174 = scmp.ne.s32.totalorder %s165, %s166
      %p175 = scmp.eq.s32.totalorder %s29, 0
      %p176 = por %p174, %p175
      %p177 = scmp.ne.s32.totalorder %s165, %s166
      %p178 = scmp.eq.s32.totalorder %s30, 1
      %p179 = por %p177, %p178
      %p181 = scmp.ne.s32.totalorder %s166, %s180
      %p182 = scmp.eq.s32.totalorder %s30, 0
      %p183 = por %p181, %p182
      %s185 = sadd.s32 %s184, 1
      %p188 = scmp.eq.s32.totalorder %s24, 1
      %p189 = scmp.ne.s32.totalorder %s184, %s186
      %p190 = scmp.eq.s32.totalorder %s24, 0
      %p191 = por %p189, %p190
      %p192 = scmp.ne.s32.totalorder %s184, %s186
      %p193 = scmp.eq.s32.totalorder %s29, 1
      %p194 = por %p192, %p193
      %p195 = scmp.ne.s32.totalorder %s186, %s187
      %p196 = scmp.eq.s32.totalorder %s29, 0
      %p197 = por %p195, %p196
      %p198 = scmp.ne.s32.totalorder %s186, %s187
      %p199 = scmp.eq.s32.totalorder %s30, 1
      %p200 = por %p198, %p199
      %p202 = scmp.ne.s32.totalorder %s187, %s201
      %p203 = scmp.eq.s32.totalorder %s30, 0
      %p204 = por %p202, %p203
      %s206 = sadd.s32 %s205, 1
      %p209 = scmp.eq.s32.totalorder %s24, 1
      %p210 = scmp.ne.s32.totalorder %s205, %s207
      %p211 = scmp.eq.s32.totalorder %s24, 0
      %p212 = por %p210, %p211
      %p213 = scmp.ne.s32.totalorder %s205, %s207
      %p214 = scmp.eq.s32.totalorder %s29, 1
      %p215 = por %p213, %p214
      %p216 = scmp.ne.s32.totalorder %s207, %s208
      %p217 = scmp.eq.s32.totalorder %s29, 0
      %p218 = por %p216, %p217
      %p219 = scmp.ne.s32.totalorder %s207, %s208
      %p220 = scmp.eq.s32.totalorder %s30, 1
      %p221 = por %p219, %p220
      %p223 = scmp.ne.s32.totalorder %s208, %s222
      %p224 = scmp.eq.s32.totalorder %s30, 0
      %p225 = por %p223, %p224
      %s227 = sadd.s32 %s226, 1
      %p230 = scmp.eq.s32.totalorder %s24, 1
      %p231 = scmp.ne.s32.totalorder %s226, %s228
      %p232 = scmp.eq.s32.totalorder %s24, 0
      %p233 = por %p231, %p232
      %p234 = scmp.ne.s32.totalorder %s226, %s228
      %p235 = scmp.eq.s32.totalorder %s29, 1
      %p236 = por %p234, %p235
      %p237 = scmp.ne.s32.totalorder %s228, %s229
      %p238 = scmp.eq.s32.totalorder %s29, 0
      %p239 = por %p237, %p238
      %p240 = scmp.ne.s32.totalorder %s228, %s229
      %p241 = scmp.eq.s32.totalorder %s30, 1
      %p242 = por %p240, %p241
      %p244 = scmp.ne.s32.totalorder %s229, %s243
      %p245 = scmp.eq.s32.totalorder %s30, 0
      %p246 = por %p244, %p245
      %s248 = sadd.s32 %s247, 1
      %p251 = scmp.eq.s32.totalorder %s24, 1
      %p252 = scmp.ne.s32.totalorder %s247, %s249
      %p253 = scmp.eq.s32.totalorder %s24, 0
      %p254 = por %p252, %p253
      %p255 = scmp.ne.s32.totalorder %s247, %s249
      %p256 = scmp.eq.s32.totalorder %s29, 1
      %p257 = por %p255, %p256
      %p258 = scmp.ne.s32.totalorder %s249, %s250
      %p259 = scmp.eq.s32.totalorder %s29, 0
      %p260 = por %p258, %p259
      %p261 = scmp.ne.s32.totalorder %s249, %s250
      %p262 = scmp.eq.s32.totalorder %s30, 1
      %p263 = por %p261, %p262
      %p265 = scmp.ne.s32.totalorder %s250, %s264
      %p266 = scmp.eq.s32.totalorder %s30, 0
      %p267 = por %p265, %p266
      %s269 = sadd.s32 %s268, 1
      %p272 = scmp.eq.s32.totalorder %s24, 1
      %p273 = scmp.ne.s32.totalorder %s268, %s270
      %p274 = scmp.eq.s32.totalorder %s24, 0
      %p275 = por %p273, %p274
      %p276 = scmp.ne.s32.totalorder %s268, %s270
      %p277 = scmp.eq.s32.totalorder %s29, 1
      %p278 = por %p276, %p277
      %p279 = scmp.ne.s32.totalorder %s270, %s271
      %p280 = scmp.eq.s32.totalorder %s29, 0
      %p281 = por %p279, %p280
      %p282 = scmp.ne.s32.totalorder %s270, %s271
      %p283 = scmp.eq.s32.totalorder %s30, 1
      %p284 = por %p282, %p283
      %p286 = scmp.ne.s32.totalorder %s271, %s285
      %p287 = scmp.eq.s32.totalorder %s30, 0
      %p288 = por %p286, %p287
      %s290 = sadd.s32 %s289, 1
      %p293 = scmp.eq.s32.totalorder %s24, 1
      %p294 = scmp.ne.s32.totalorder %s289, %s291
      %p295 = scmp.eq.s32.totalorder %s24, 0
      %p296 = por %p294, %p295
      %p297 = scmp.ne.s32.totalorder %s289, %s291
      %p298 = scmp.eq.s32.totalorder %s29, 1
      %p299 = por %p297, %p298
      %p300 = scmp.ne.s32.totalorder %s291, %s292
      %p301 = scmp.eq.s32.totalorder %s29, 0
      %p302 = por %p300, %p301
      %p303 = scmp.ne.s32.totalorder %s291, %s292
      %p304 = scmp.eq.s32.totalorder %s30, 1
      %p305 = por %p303, %p304
      %p307 = scmp.ne.s32.totalorder %s292, %s306
      %p308 = scmp.eq.s32.totalorder %s30, 0
      %p309 = por %p307, %p308
      %s311 = sadd.s32 %s310, 1
      %p314 = scmp.eq.s32.totalorder %s24, 1
      %p315 = scmp.ne.s32.totalorder %s310, %s312
      %p316 = scmp.eq.s32.totalorder %s24, 0
      %p317 = por %p315, %p316
      %p318 = scmp.ne.s32.totalorder %s310, %s312
      %p319 = scmp.eq.s32.totalorder %s29, 1
      %p320 = por %p318, %p319
      %p321 = scmp.ne.s32.totalorder %s312, %s313
      %p322 = scmp.eq.s32.totalorder %s29, 0
      %p323 = por %p321, %p322
      %p324 = scmp.ne.s32.totalorder %s312, %s313
      %p325 = scmp.eq.s32.totalorder %s30, 1
      %p326 = por %p324, %p325
      %p328 = scmp.ne.s32.totalorder %s313, %s327
      %p329 = scmp.eq.s32.totalorder %s30, 0
      %p330 = por %p328, %p329
      %s332 = sadd.s32 %s331, 1
      %p335 = scmp.eq.s32.totalorder %s24, 1
      %p336 = scmp.ne.s32.totalorder %s331, %s333
      %p337 = scmp.eq.s32.totalorder %s24, 0
      %p338 = por %p336, %p337
      %p339 = scmp.ne.s32.totalorder %s331, %s333
      %p340 = scmp.eq.s32.totalorder %s29, 1
      %p341 = por %p339, %p340
      %p342 = scmp.ne.s32.totalorder %s333, %s334
      %p343 = scmp.eq.s32.totalorder %s29, 0
      %p344 = por %p342, %p343
      %p345 = scmp.ne.s32.totalorder %s333, %s334
      %p346 = scmp.eq.s32.totalorder %s30, 1
      %p347 = por %p345, %p346
      %p349 = scmp.ne.s32.totalorder %s334, %s348
      %p350 = scmp.eq.s32.totalorder %s30, 0
      %p351 = por %p349, %p350
      %s352 = ssub.s32 %s24, %s31
      %p353 = scmp.eq.s32.totalorder %s352, 0
      %s355 = sadd.s32 %s354, 1
      %s356 = scalar_select %p353, %s354, %s355
      %p359 = pneg %p353
      %p360 = scmp.eq.s32.totalorder %s24, 1
      %p361 = por %p359, %p360
      %p362 = scmp.ne.s32.totalorder %s354, %s357
      %p363 = scmp.eq.s32.totalorder %s24, 0
      %p364 = por %p362, %p363
      %p365 = scmp.ne.s32.totalorder %s354, %s357
      %p366 = scmp.eq.s32.totalorder %s29, 1
      %p367 = por %p365, %p366
      %p368 = scmp.ne.s32.totalorder %s357, %s358
      %p369 = scmp.eq.s32.totalorder %s29, 0
      %p370 = por %p368, %p369
      %p371 = scmp.ne.s32.totalorder %s357, %s358
      %p372 = scmp.eq.s32.totalorder %s30, 1
      %p373 = por %p371, %p372
      %p375 = scmp.ne.s32.totalorder %s358, %s374
      %p376 = scmp.eq.s32.totalorder %s30, 0
      %p377 = por %p375, %p376
      %p378 = scmp.le.s32.totalorder 1, %s24
      %p379 = scmp.lt.s32.totalorder %s24, 3
      %p380 = pnand %p378, %p379
      %p381 = pneg %p380
      // Predicated region
      $region9: #{tpu_custom_call.1} parent=5 // pred_check
        _
      $region10: #{tpu_custom_call.1} parent=5 // pred_check_branch
        %383 = sbr.rel (%p380) target = $region12
      $region11: #{tpu_custom_call.1} parent=5 // pred_region
        %s384 = ssub.s32 %s24, 1
        // Predicated region
        $region13: #{tpu_custom_call.1} parent=11 // pred_check
          %p385 = pneg %p71
        $region14: #{tpu_custom_call.1} parent=11 // pred_check_branch
          %387 = sbr.rel (%p385) target = $region16
        $region15: #{tpu_custom_call.1} parent=11 // pred_region
          _
        $region16: #{tpu_custom_call.1} parent=11 // pred_fallthru
          _
        // Predicated region
        $region17: #{tpu_custom_call.1} parent=11 // pred_check
          %p388 = pneg %p92
        $region18: #{tpu_custom_call.1} parent=11 // pred_check_branch
          %390 = sbr.rel (%p388) target = $region20
        $region19: #{tpu_custom_call.1} parent=11 // pred_region
          _
        $region20: #{tpu_custom_call.1} parent=11 // pred_fallthru
          _
        // Predicated region
        $region21: #{tpu_custom_call.1} parent=11 // pred_check
          %p391 = pneg %p113
        $region22: #{tpu_custom_call.1} parent=11 // pred_check_branch
          %393 = sbr.rel (%p391) target = $region24
        $region23: #{tpu_custom_call.1} parent=11 // pred_region
          _
        $region24: #{tpu_custom_call.1} parent=11 // pred_fallthru
          _
        // Predicated region
        $region25: #{tpu_custom_call.1} parent=11 // pred_check
          %p394 = pneg %p134
        $region26: #{tpu_custom_call.1} parent=11 // pred_check_branch
          %396 = sbr.rel (%p394) target = $region28
        $region27: #{tpu_custom_call.1} parent=11 // pred_region
          _
        $region28: #{tpu_custom_call.1} parent=11 // pred_fallthru
          _
        // Predicated region
        $region29: #{tpu_custom_call.1} parent=11 // pred_check
          %p397 = pneg %p155
        $region30: #{tpu_custom_call.1} parent=11 // pred_check_branch
          %399 = sbr.rel (%p397) target = $region32
        $region31: #{tpu_custom_call.1} parent=11 // pred_region
          _
        $region32: #{tpu_custom_call.1} parent=11 // pred_fallthru
          _
        // Predicated region
        $region33: #{tpu_custom_call.1} parent=11 // pred_check
          %p400 = pneg %p176
        $region34: #{tpu_custom_call.1} parent=11 // pred_check_branch
          %402 = sbr.rel (%p400) target = $region36
        $region35: #{tpu_custom_call.1} parent=11 // pred_region
          _
        $region36: #{tpu_custom_call.1} parent=11 // pred_fallthru
          _
        // Predicated region
        $region37: #{tpu_custom_call.1} parent=11 // pred_check
          %p403 = pneg %p197
        $region38: #{tpu_custom_call.1} parent=11 // pred_check_branch
          %405 = sbr.rel (%p403) target = $region40
        $region39: #{tpu_custom_call.1} parent=11 // pred_region
          _
        $region40: #{tpu_custom_call.1} parent=11 // pred_fallthru
          _
        // Predicated region
        $region41: #{tpu_custom_call.1} parent=11 // pred_check
          %p406 = pneg %p218
        $region42: #{tpu_custom_call.1} parent=11 // pred_check_branch
          %408 = sbr.rel (%p406) target = $region44
        $region43: #{tpu_custom_call.1} parent=11 // pred_region
          _
        $region44: #{tpu_custom_call.1} parent=11 // pred_fallthru
          _
        // Predicated region
        $region45: #{tpu_custom_call.1} parent=11 // pred_check
          %p409 = pneg %p239
        $region46: #{tpu_custom_call.1} parent=11 // pred_check_branch
          %411 = sbr.rel (%p409) target = $region48
        $region47: #{tpu_custom_call.1} parent=11 // pred_region
          _
        $region48: #{tpu_custom_call.1} parent=11 // pred_fallthru
          _
        // Predicated region
        $region49: #{tpu_custom_call.1} parent=11 // pred_check
          %p412 = pneg %p260
        $region50: #{tpu_custom_call.1} parent=11 // pred_check_branch
          %414 = sbr.rel (%p412) target = $region52
        $region51: #{tpu_custom_call.1} parent=11 // pred_region
          _
        $region52: #{tpu_custom_call.1} parent=11 // pred_fallthru
          _
        // Predicated region
        $region53: #{tpu_custom_call.1} parent=11 // pred_check
          %p415 = pneg %p281
        $region54: #{tpu_custom_call.1} parent=11 // pred_check_branch
          %417 = sbr.rel (%p415) target = $region56
        $region55: #{tpu_custom_call.1} parent=11 // pred_region
          _
        $region56: #{tpu_custom_call.1} parent=11 // pred_fallthru
          _
        // Predicated region
        $region57: #{tpu_custom_call.1} parent=11 // pred_check
          %p418 = pneg %p302
        $region58: #{tpu_custom_call.1} parent=11 // pred_check_branch
          %420 = sbr.rel (%p418) target = $region60
        $region59: #{tpu_custom_call.1} parent=11 // pred_region
          _
        $region60: #{tpu_custom_call.1} parent=11 // pred_fallthru
          _
        // Predicated region
        $region61: #{tpu_custom_call.1} parent=11 // pred_check
          %p421 = pneg %p323
        $region62: #{tpu_custom_call.1} parent=11 // pred_check_branch
          %423 = sbr.rel (%p421) target = $region64
        $region63: #{tpu_custom_call.1} parent=11 // pred_region
          _
        $region64: #{tpu_custom_call.1} parent=11 // pred_fallthru
          _
        // Predicated region
        $region65: #{tpu_custom_call.1} parent=11 // pred_check
          %p424 = pneg %p344
        $region66: #{tpu_custom_call.1} parent=11 // pred_check_branch
          %426 = sbr.rel (%p424) target = $region68
        $region67: #{tpu_custom_call.1} parent=11 // pred_region
          _
        $region68: #{tpu_custom_call.1} parent=11 // pred_fallthru
          _
      $region12: #{tpu_custom_call.1} parent=5 // pred_fallthru
        _
      %p427 = scmp.lt.s32.totalorder %s24, 2
      // Predicated region
      $region69: #{tpu_custom_call.1} parent=5 // pred_check
        %p428 = pneg %p427
      $region70: #{tpu_custom_call.1} parent=5 // pred_check_branch
        %430 = sbr.rel (%p428) target = $region72
      $region71: #{tpu_custom_call.1} parent=5 // pred_region
        // Predicated region
        $region73: #{tpu_custom_call.1} parent=71 // pred_check
          %p431 = pneg %p44
        $region74: #{tpu_custom_call.1} parent=71 // pred_check_branch
          %433 = sbr.rel (%p431) target = $region76
        $region75: #{tpu_custom_call.1} parent=71 // pred_region
          %p434 = scmp.lt.s32.totalorder %s24, 1
          %s435 = scalar_select %p434, %s24, 1
          %s436 = smul.addr %s435, 8
          %s437 = scalar_lea.vmem %s0, %s436
        $region76: #{tpu_custom_call.1} parent=71 // pred_fallthru
          _
      $region72: #{tpu_custom_call.1} parent=5 // pred_fallthru
        _
      %p438 = scmp.le.s32.totalorder 1, %s24
      %p439 = scmp.lt.s32.totalorder %s24, 3
      %p440 = pnand %p438, %p439
      %p441 = pneg %p440
      // Predicated region
      $region77: #{tpu_custom_call.1} parent=5 // pred_check
        _
      $region78: #{tpu_custom_call.1} parent=5 // pred_check_branch
        %443 = sbr.rel (%p440) target = $region80
      $region79: #{tpu_custom_call.1} parent=5 // pred_region
        %s444 = ssub.s32 %s24, 1
        %p445 = scmp.lt.s32.totalorder %s29, 1
        %s446 = scalar_select %p445, %s29, 1
        %s447 = smul.addr %s446, 8
        %s448 = scalar_lea.vmem %s0, %s447
        %p449 = pneg %p50
        %p450 = pneg %p47
        %p451 = pneg %p71
        %p452 = pneg %p68
        %p453 = pneg %p92
        %p454 = pneg %p89
        %p455 = pneg %p113
        %p456 = pneg %p110
        %p457 = pneg %p134
        %p458 = pneg %p131
        %p459 = pneg %p155
        %p460 = pneg %p152
        %p461 = pneg %p176
        %p462 = pneg %p173
        %p463 = pneg %p197
        %p464 = pneg %p194
        %p465 = pneg %p218
        %p466 = pneg %p215
        %p467 = pneg %p239
        %p468 = pneg %p236
        %p469 = pneg %p260
        %p470 = pneg %p257
        %p471 = pneg %p281
        %p472 = pneg %p278
        %p473 = pneg %p302
        %p474 = pneg %p299
        %p475 = pneg %p323
        %p476 = pneg %p320
        %p477 = pneg %p344
        %p478 = pneg %p341
        %p479 = pneg %p370
        %p480 = pneg %p367
        %s481 = sand.u32 %s357, 1
        %s482 = scalar_lea.sflag [#allocation3], %s481
        %s483 = sand.u32 %s357, 1
        %s484 = smul.addr %s483, 8
        %s485 = scalar_lea.vmem [#allocation2], %s484
        %p486 = scmp.lt.s32.totalorder %s29, 1
        %s487 = scalar_select %p486, %s29, 1
        %s488 = smul.addr %s487, 8
        %s489 = scalar_lea.vmem %s0, %s488
        %v491 = vld [vmem:[%s489] sm:$0xff]
        %v492 = vlaneseq
        %v493 = vshrl.u32 %v492, 7
        %v494 = vlaneseq
        %v495 = vand.u32 %v494, 127
        %vm496 = vcmp.le.s32.totalorder %v495, %v493
        %v497 = vsel %vm496, 0.0, -3.4028235e+38
        %v498 = vld [vmem:[%s1] sm:$0x1]
        %v499 = vld [vmem:[%s2] sm:$0x1]
        %vm500 = vcmask 261120
        %v501 = vsel %vm500, %v491, 0.0
        %502 = vadd.xlane.f32.xlu0 %v501
        %v503 = vpop.xlane.xlu0 %502
        %v504 = vrcp.pop 32.0
        %v505 = vmul.f32 %v503, %v504
        %v506 = vsub.f32 %v491, %v505
        %v507 = vmul.f32 %v506, %v506
        %v508 = vsel %vm500, %v507, 0.0
        %509 = vadd.xlane.f32.xlu0 %v508
        %v510 = vpop.xlane.xlu0 %509
        %v511 = vmul.f32 %v510, %v504
        %v512 = vadd.f32 %v511, 1e-05
        %v513 = vrsqrt.pop %v512
        %v514 = vmul.f32 %v506, %v513
        %v516 = vlaneseq
        %v517 = vshrl.u32 %v516, 7
        %v518 = vsub.s32 0, %v517
        %v519 = vrot.slane %v498, %v518
        %v521 = vmul.f32 %v514, %v519
        %v523 = vlaneseq
        %v524 = vshrl.u32 %v523, 7
        %v525 = vsub.s32 0, %v524
        %v526 = vrot.slane %v499, %v525
        %v528 = vadd.f32 %v521, %v526
        %v529 = vpack.c.bf16 %v528, %v528
        %v530 = vld [vmem:[%s3] sm:$0xf]
        %v531 = vld [vmem:[%s3 + $0x4] sm:$0xf]
        %v532 = vld [vmem:[%s3 + $0x8] sm:$0xf]
        %v533 = vld [vmem:[%s3 + $0xc] sm:$0xf]
        %v534 = vld [vmem:[%s4] sm:$0x1]
        %v536 = vlaneseq
        %v537 = vshrl.u32 %v536, 7
        %v538 = vsub.s32 0, %v537
        %v539 = vrot.slane %v534, %v538
        %v545 = vunpack.c.l.b16 %v530
        %v546 = vunpack.c.l.b16 %v531
        %v547 = vunpack.c.l.b16 %v532
        %v548 = vunpack.c.l.b16 %v533
        %v549 = vpack.c.b16 %v546, %v545
        %v550 = vpack.c.b16 %v548, %v547
        %v554 = vsel %vm500, %v529, 0
        %556 = vmatprep.subr.bf16.mxu0 0
        %557 = vmatpush1.bf16.msra.mxu0 %v549
        %558 = vmatprep.subr.bf16.mxu0 0
        %559 = vmatpush1.bf16.msra.mxu0 %v550
        %560 = vmatprep.subr.bf16.mxu0 0
        %561 = vmatpush1.bf16.msra.mxu0 0
        %562 = vmatprep.subr.bf16.mxu0 0
        %563 = vmatpush1.bf16.msra.mxu0 0
        %564 = vmatprep.subr.bf16.mxu0 0
        %565 = vmatpush1.bf16.msra.mxu0 0
        %566 = vmatprep.subr.bf16.mxu0 0
        %567 = vmatpush1.bf16.msra.mxu0 0
        %568 = vmatprep.subr.bf16.mxu0 0
        %569 = vmatpush1.bf16.msra.mxu0 0
        %570 = vmatprep.subr.bf16.mxu0 0
        %571 = vmatpush1.bf16.msra.mxu0 0
        %572 = vmatprep.subr.bf16.mxu0 0
        %573 = vmatpush1.bf16.msra.mxu0 0
        %574 = vmatprep.subr.bf16.mxu0 0
        %575 = vmatpush1.bf16.msra.mxu0 0
        %576 = vmatprep.subr.bf16.mxu0 0
        %577 = vmatpush1.bf16.msra.mxu0 0
        %578 = vmatprep.subr.bf16.mxu0 0
        %579 = vmatpush1.bf16.msra.mxu0 0
        %580 = vmatprep.subr.bf16.mxu0 0
        %581 = vmatpush1.bf16.msra.mxu0 0
        %582 = vmatprep.subr.bf16.mxu0 0
        %583 = vmatpush1.bf16.msra.mxu0 0
        %584 = vmatprep.subr.bf16.mxu0 0
        %585 = vmatpush1.bf16.msra.mxu0 0
        %586 = vmatprep.subr.bf16.mxu0 0
        %587 = vmatpush1.bf16.msra.mxu0 0
        %588 = vmatprep.mubr.bf16.mxu0 0
        %589 = vmatmul.mubr.bf16.gmra.mrb[0].mxu0 %v554
        %v590 = vpop.f32.mrb[0].mxu0
        %v591 = vadd.f32 %v539, %v590
        %v592 = vpop.f32.mrb[0].mxu0
        %v593 = vpop.f32.mrb[0].mxu0
        %v594 = vpop.f32.mrb[0].mxu0
        %595 = vdwg.mxu0
        %s596 = scalar_lea.vmem %s3, 64
        %v597 = vld [vmem:[%s596] sm:$0xf]
        %v598 = vld [vmem:[%s596 + $0x4] sm:$0xf]
        %v599 = vld [vmem:[%s596 + $0x8] sm:$0xf]
        %v600 = vld [vmem:[%s596 + $0xc] sm:$0xf]
        %s601 = scalar_lea.vmem %s4, 4
        %v602 = vld [vmem:[%s601] sm:$0x1]
        %v604 = vlaneseq
        %v605 = vshrl.u32 %v604, 7
        %v606 = vsub.s32 0, %v605
        %v607 = vrot.slane %v602, %v606
        %v613 = vunpack.c.l.b16 %v597
        %v614 = vunpack.c.l.b16 %v598
        %v615 = vunpack.c.l.b16 %v599
        %v616 = vunpack.c.l.b16 %v600
        %v617 = vpack.c.b16 %v614, %v613
        %v618 = vpack.c.b16 %v616, %v615
        %621 = vmatprep.subr.bf16.mxu0 0
        %622 = vmatpush1.bf16.msra.mxu0 %v617
        %623 = vmatprep.subr.bf16.mxu0 0
        %624 = vmatpush1.bf16.msra.mxu0 %v618
        %625 = vmatprep.subr.bf16.mxu0 0
        %626 = vmatpush1.bf16.msra.mxu0 0
        %627 = vmatprep.subr.bf16.mxu0 0
        %628 = vmatpush1.bf16.msra.mxu0 0
        %629 = vmatprep.subr.bf16.mxu0 0
        %630 = vmatpush1.bf16.msra.mxu0 0
        %631 = vmatprep.subr.bf16.mxu0 0
        %632 = vmatpush1.bf16.msra.mxu0 0
        %633 = vmatprep.subr.bf16.mxu0 0
        %634 = vmatpush1.bf16.msra.mxu0 0
        %635 = vmatprep.subr.bf16.mxu0 0
        %636 = vmatpush1.bf16.msra.mxu0 0
        %637 = vmatprep.subr.bf16.mxu0 0
        %638 = vmatpush1.bf16.msra.mxu0 0
        %639 = vmatprep.subr.bf16.mxu0 0
        %640 = vmatpush1.bf16.msra.mxu0 0
        %641 = vmatprep.subr.bf16.mxu0 0
        %642 = vmatpush1.bf16.msra.mxu0 0
        %643 = vmatprep.subr.bf16.mxu0 0
        %644 = vmatpush1.bf16.msra.mxu0 0
        %645 = vmatprep.subr.bf16.mxu0 0
        %646 = vmatpush1.bf16.msra.mxu0 0
        %647 = vmatprep.subr.bf16.mxu0 0
        %648 = vmatpush1.bf16.msra.mxu0 0
        %649 = vmatprep.subr.bf16.mxu0 0
        %650 = vmatpush1.bf16.msra.mxu0 0
        %651 = vmatprep.subr.bf16.mxu0 0
        %652 = vmatpush1.bf16.msra.mxu0 0
        %653 = vmatprep.mubr.bf16.mxu0 0
        %654 = vmatmul.mubr.bf16.gmra.mrb[0].mxu0 %v554
        %v655 = vpop.f32.mrb[0].mxu0
        %v656 = vadd.f32 %v607, %v655
        %v657 = vpop.f32.mrb[0].mxu0
        %v658 = vpop.f32.mrb[0].mxu0
        %v659 = vpop.f32.mrb[0].mxu0
        %660 = vdwg.mxu0
        %s661 = scalar_lea.vmem %s3, 128
        %v662 = vld [vmem:[%s661] sm:$0xf]
        %v663 = vld [vmem:[%s661 + $0x4] sm:$0xf]
        %v664 = vld [vmem:[%s661 + $0x8] sm:$0xf]
        %v665 = vld [vmem:[%s661 + $0xc] sm:$0xf]
        %s666 = scalar_lea.vmem %s4, 8
        %v667 = vld [vmem:[%s666] sm:$0x1]
        %v669 = vlaneseq
        %v670 = vshrl.u32 %v669, 7
        %v671 = vsub.s32 0, %v670
        %v672 = vrot.slane %v667, %v671
        %v678 = vunpack.c.l.b16 %v662
        %v679 = vunpack.c.l.b16 %v663
        %v680 = vunpack.c.l.b16 %v664
        %v681 = vunpack.c.l.b16 %v665
        %v682 = vpack.c.b16 %v679, %v678
        %v683 = vpack.c.b16 %v681, %v680
        %686 = vmatprep.subr.bf16.mxu0 0
        %687 = vmatpush1.bf16.msra.mxu0 %v682
        %688 = vmatprep.subr.bf16.mxu0 0
        %689 = vmatpush1.bf16.msra.mxu0 %v683
        %690 = vmatprep.subr.bf16.mxu0 0
        %691 = vmatpush1.bf16.msra.mxu0 0
        %692 = vmatprep.subr.bf16.mxu0 0
        %693 = vmatpush1.bf16.msra.mxu0 0
        %694 = vmatprep.subr.bf16.mxu0 0
        %695 = vmatpush1.bf16.msra.mxu0 0
        %696 = vmatprep.subr.bf16.mxu0 0
        %697 = vmatpush1.bf16.msra.mxu0 0
        %698 = vmatprep.subr.bf16.mxu0 0
        %699 = vmatpush1.bf16.msra.mxu0 0
        %700 = vmatprep.subr.bf16.mxu0 0
        %701 = vmatpush1.bf16.msra.mxu0 0
        %702 = vmatprep.subr.bf16.mxu0 0
        %703 = vmatpush1.bf16.msra.mxu0 0
        %704 = vmatprep.subr.bf16.mxu0 0
        %705 = vmatpush1.bf16.msra.mxu0 0
        %706 = vmatprep.subr.bf16.mxu0 0
        %707 = vmatpush1.bf16.msra.mxu0 0
        %708 = vmatprep.subr.bf16.mxu0 0
        %709 = vmatpush1.bf16.msra.mxu0 0
        %710 = vmatprep.subr.bf16.mxu0 0
        %711 = vmatpush1.bf16.msra.mxu0 0
        %712 = vmatprep.subr.bf16.mxu0 0
        %713 = vmatpush1.bf16.msra.mxu0 0
        %714 = vmatprep.subr.bf16.mxu0 0
        %715 = vmatpush1.bf16.msra.mxu0 0
        %716 = vmatprep.subr.bf16.mxu0 0
        %717 = vmatpush1.bf16.msra.mxu0 0
        %718 = vmatprep.mubr.bf16.mxu0 0
        %719 = vmatmul.mubr.bf16.gmra.mrb[0].mxu0 %v554
        %v720 = vpop.f32.mrb[0].mxu0
        %v721 = vadd.f32 %v672, %v720
        %v722 = vpop.f32.mrb[0].mxu0
        %v723 = vpop.f32.mrb[0].mxu0
        %v724 = vpop.f32.mrb[0].mxu0
        %725 = vdwg.mxu0
        %v726 = vpack.c.bf16 %v591, %v591
        %v727 = vpack.c.bf16 %v656, %v656
        %vm728 = vcmask 64512
        %v730 = vsel %vm728, %v726, 0
        %v733 = vsel %vm728, %v727, 0
        %735 = vmatprep.subr.bf16.mxu0 0
        %736 = vmatpush1.bf16.xpose.msra.mxu0 %v733
        %737 = vmatprep.subr.bf16.mxu0 0
        %738 = vmatpush1.bf16.xpose.msra.mxu0 0
        %739 = vmatprep.subr.bf16.mxu0 0
        %740 = vmatpush1.bf16.xpose.msra.mxu0 0
        %741 = vmatprep.subr.bf16.mxu0 0
        %742 = vmatpush1.bf16.xpose.msra.mxu0 0
        %743 = vmatprep.subr.bf16.mxu0 0
        %744 = vmatpush1.bf16.xpose.msra.mxu0 0
        %745 = vmatprep.subr.bf16.mxu0 0
        %746 = vmatpush1.bf16.xpose.msra.mxu0 0
        %747 = vmatprep.subr.bf16.mxu0 0
        %748 = vmatpush1.bf16.xpose.msra.mxu0 0
        %749 = vmatprep.subr.bf16.mxu0 0
        %750 = vmatpush1.bf16.xpose.msra.mxu0 0
        %751 = vmatprep.subr.bf16.mxu0 0
        %752 = vmatpush1.bf16.xpose.msra.mxu0 0
        %753 = vmatprep.subr.bf16.mxu0 0
        %754 = vmatpush1.bf16.xpose.msra.mxu0 0
        %755 = vmatprep.subr.bf16.mxu0 0
        %756 = vmatpush1.bf16.xpose.msra.mxu0 0
        %757 = vmatprep.subr.bf16.mxu0 0
        %758 = vmatpush1.bf16.xpose.msra.mxu0 0
        %759 = vmatprep.subr.bf16.mxu0 0
        %760 = vmatpush1.bf16.xpose.msra.mxu0 0
        %761 = vmatprep.subr.bf16.mxu0 0
        %762 = vmatpush1.bf16.xpose.msra.mxu0 0
        %763 = vmatprep.subr.bf16.mxu0 0
        %764 = vmatpush1.bf16.xpose.msra.mxu0 0
        %765 = vmatprep.subr.bf16.mxu0 0
        %766 = vmatpush1.bf16.xpose.msra.mxu0 0
        %767 = vmatprep.mubr.bf16.mxu0 0
        %768 = vmatmul.mubr.bf16.gmra.mrb[0].mxu0 %v730
        %v769 = vpop.f32.mrb[0].mxu0
        %v770 = vadd.f32 %v497, %v769
        %v771 = vpop.f32.mrb[0].mxu0
        %v772 = vpop.f32.mrb[0].mxu0
        %v773 = vpop.f32.mrb[0].mxu0
        %774 = vdwg.mxu0
        %v775 = vsel %vm728, %v770, -inf
        %776 = vmax.xlane.f32.xlu0 %v775
        %v777 = vpop.xlane.xlu0 %776
        %v778 = vsub.f32 %v770, %v777
        %v779 = vmul.f32 %v778, 1.442695
        %v780 = vpow.pop %v779
        %v781 = vsel %vm728, %v780, 0.0
        %782 = vadd.xlane.f32.xlu0 %v781
        %v783 = vpop.xlane.xlu0 %782
        %v784 = vrcp.pop %v783
        %v785 = vmul.f32 %v780, %v784
        %v786 = vpack.c.bf16 %v785, %v785
        %v787 = vpack.c.bf16 %v721, %v721
        %v789 = vsel %vm728, %v786, 0
        %vm791 = vcmask 1043456
        %v793 = vsel %vm791, %v787, 0
        %795 = vmatprep.subr.bf16.mxu0 0
        %796 = vmatpush1.bf16.msra.mxu0 %v793
        %797 = vmatprep.subr.bf16.mxu0 0
        %798 = vmatpush1.bf16.msra.mxu0 0
        %799 = vmatprep.subr.bf16.mxu0 0
        %800 = vmatpush1.bf16.msra.mxu0 0
        %801 = vmatprep.subr.bf16.mxu0 0
        %802 = vmatpush1.bf16.msra.mxu0 0
        %803 = vmatprep.subr.bf16.mxu0 0
        %804 = vmatpush1.bf16.msra.mxu0 0
        %805 = vmatprep.subr.bf16.mxu0 0
        %806 = vmatpush1.bf16.msra.mxu0 0
        %807 = vmatprep.subr.bf16.mxu0 0
        %808 = vmatpush1.bf16.msra.mxu0 0
        %809 = vmatprep.subr.bf16.mxu0 0
        %810 = vmatpush1.bf16.msra.mxu0 0
        %811 = vmatprep.subr.bf16.mxu0 0
        %812 = vmatpush1.bf16.msra.mxu0 0
        %813 = vmatprep.subr.bf16.mxu0 0
        %814 = vmatpush1.bf16.msra.mxu0 0
        %815 = vmatprep.subr.bf16.mxu0 0
        %816 = vmatpush1.bf16.msra.mxu0 0
        %817 = vmatprep.subr.bf16.mxu0 0
        %818 = vmatpush1.bf16.msra.mxu0 0
        %819 = vmatprep.subr.bf16.mxu0 0
        %820 = vmatpush1.bf16.msra.mxu0 0
        %821 = vmatprep.subr.bf16.mxu0 0
        %822 = vmatpush1.bf16.msra.mxu0 0
        %823 = vmatprep.subr.bf16.mxu0 0
        %824 = vmatpush1.bf16.msra.mxu0 0
        %825 = vmatprep.subr.bf16.mxu0 0
        %826 = vmatpush1.bf16.msra.mxu0 0
        %827 = vmatprep.mubr.bf16.mxu0 0
        %828 = vmatmul.mubr.bf16.gmra.mrb[0].mxu0 %v789
        %v829 = vpop.f32.mrb[0].mxu0
        %v830 = vadd.f32 0.0, %v829
        %v831 = vpop.f32.mrb[0].mxu0
        %v832 = vpop.f32.mrb[0].mxu0
        %v833 = vpop.f32.mrb[0].mxu0
        %834 = vdwg.mxu0
        %v835 = vpack.c.bf16 %v830, %v830
        %v836 = vld [vmem:[%s5] sm:$0xf]
        %s837 = scalar_lea.vmem %s3, 16
        %v838 = vld [vmem:[%s837] sm:$0xf]
        %v839 = vld [vmem:[%s837 + $0x4] sm:$0xf]
        %v840 = vld [vmem:[%s837 + $0x8] sm:$0xf]
        %v841 = vld [vmem:[%s837 + $0xc] sm:$0xf]
        %s842 = scalar_lea.vmem %s4, 1
        %v843 = vld [vmem:[%s842] sm:$0x1]
        %v845 = vlaneseq
        %v846 = vshrl.u32 %v845, 7
        %v847 = vsub.s32 0, %v846
        %v848 = vrot.slane %v843, %v847
        %v854 = vunpack.c.l.b16 %v838
        %v855 = vunpack.c.l.b16 %v839
        %v856 = vunpack.c.l.b16 %v840
        %v857 = vunpack.c.l.b16 %v841
        %v858 = vpack.c.b16 %v855, %v854
        %v859 = vpack.c.b16 %v857, %v856
        %862 = vmatprep.subr.bf16.mxu0 0
        %863 = vmatpush1.bf16.msra.mxu0 %v858
        %864 = vmatprep.subr.bf16.mxu0 0
        %865 = vmatpush1.bf16.msra.mxu0 %v859
        %866 = vmatprep.subr.bf16.mxu0 0
        %867 = vmatpush1.bf16.msra.mxu0 0
        %868 = vmatprep.subr.bf16.mxu0 0
        %869 = vmatpush1.bf16.msra.mxu0 0
        %870 = vmatprep.subr.bf16.mxu0 0
        %871 = vmatpush1.bf16.msra.mxu0 0
        %872 = vmatprep.subr.bf16.mxu0 0
        %873 = vmatpush1.bf16.msra.mxu0 0
        %874 = vmatprep.subr.bf16.mxu0 0
        %875 = vmatpush1.bf16.msra.mxu0 0
        %876 = vmatprep.subr.bf16.mxu0 0
        %877 = vmatpush1.bf16.msra.mxu0 0
        %878 = vmatprep.subr.bf16.mxu0 0
        %879 = vmatpush1.bf16.msra.mxu0 0
        %880 = vmatprep.subr.bf16.mxu0 0
        %881 = vmatpush1.bf16.msra.mxu0 0
        %882 = vmatprep.subr.bf16.mxu0 0
        %883 = vmatpush1.bf16.msra.mxu0 0
        %884 = vmatprep.subr.bf16.mxu0 0
        %885 = vmatpush1.bf16.msra.mxu0 0
        %886 = vmatprep.subr.bf16.mxu0 0
        %887 = vmatpush1.bf16.msra.mxu0 0
        %888 = vmatprep.subr.bf16.mxu0 0
        %889 = vmatpush1.bf16.msra.mxu0 0
        %890 = vmatprep.subr.bf16.mxu0 0
        %891 = vmatpush1.bf16.msra.mxu0 0
        %892 = vmatprep.subr.bf16.mxu0 0
        %893 = vmatpush1.bf16.msra.mxu0 0
        %894 = vmatprep.mubr.bf16.mxu0 0
        %895 = vmatmul.mubr.bf16.gmra.mrb[0].mxu0 %v554
        %v896 = vpop.f32.mrb[0].mxu0
        %v897 = vadd.f32 %v848, %v896
        %v898 = vpop.f32.mrb[0].mxu0
        %v899 = vpop.f32.mrb[0].mxu0
        %v900 = vpop.f32.mrb[0].mxu0
        %901 = vdwg.mxu0
        %s902 = scalar_lea.vmem %s3, 80
        %v903 = vld [vmem:[%s902] sm:$0xf]
        %v904 = vld [vmem:[%s902 + $0x4] sm:$0xf]
        %v905 = vld [vmem:[%s902 + $0x8] sm:$0xf]
        %v906 = vld [vmem:[%s902 + $0xc] sm:$0xf]
        %s907 = scalar_lea.vmem %s4, 5
        %v908 = vld [vmem:[%s907] sm:$0x1]
        %v910 = vlaneseq
        %v911 = vshrl.u32 %v910, 7
        %v912 = vsub.s32 0, %v911
        %v913 = vrot.slane %v908, %v912
        %v919 = vunpack.c.l.b16 %v903
        %v920 = vunpack.c.l.b16 %v904
        %v921 = vunpack.c.l.b16 %v905
        %v922 = vunpack.c.l.b16 %v906
        %v923 = vpack.c.b16 %v920, %v919
        %v924 = vpack.c.b16 %v922, %v921
        %927 = vmatprep.subr.bf16.mxu0 0
        %928 = vmatpush1.bf16.msra.mxu0 %v923
        %929 = vmatprep.subr.bf16.mxu0 0
        %930 = vmatpush1.bf16.msra.mxu0 %v924
        %931 = vmatprep.subr.bf16.mxu0 0
        %932 = vmatpush1.bf16.msra.mxu0 0
        %933 = vmatprep.subr.bf16.mxu0 0
        %934 = vmatpush1.bf16.msra.mxu0 0
        %935 = vmatprep.subr.bf16.mxu0 0
        %936 = vmatpush1.bf16.msra.mxu0 0
        %937 = vmatprep.subr.bf16.mxu0 0
        %938 = vmatpush1.bf16.msra.mxu0 0
        %939 = vmatprep.subr.bf16.mxu0 0
        %940 = vmatpush1.bf16.msra.mxu0 0
        %941 = vmatprep.subr.bf16.mxu0 0
        %942 = vmatpush1.bf16.msra.mxu0 0
        %943 = vmatprep.subr.bf16.mxu0 0
        %944 = vmatpush1.bf16.msra.mxu0 0
        %945 = vmatprep.subr.bf16.mxu0 0
        %946 = vmatpush1.bf16.msra.mxu0 0
        %947 = vmatprep.subr.bf16.mxu0 0
        %948 = vmatpush1.bf16.msra.mxu0 0
        %949 = vmatprep.subr.bf16.mxu0 0
        %950 = vmatpush1.bf16.msra.mxu0 0
        %951 = vmatprep.subr.bf16.mxu0 0
        %952 = vmatpush1.bf16.msra.mxu0 0
        %953 = vmatprep.subr.bf16.mxu0 0
        %954 = vmatpush1.bf16.msra.mxu0 0
        %955 = vmatprep.subr.bf16.mxu0 0
        %956 = vmatpush1.bf16.msra.mxu0 0
        %957 = vmatprep.subr.bf16.mxu0 0
        %958 = vmatpush1.bf16.msra.mxu0 0
        %959 = vmatprep.mubr.bf16.mxu0 0
        %960 = vmatmul.mubr.bf16.gmra.mrb[0].mxu0 %v554
        %v961 = vpop.f32.mrb[0].mxu0
        %v962 = vadd.f32 %v913, %v961
        %v963 = vpop.f32.mrb[0].mxu0
        %v964 = vpop.f32.mrb[0].mxu0
        %v965 = vpop.f32.mrb[0].mxu0
        %966 = vdwg.mxu0
        %s967 = scalar_lea.vmem %s3, 144
        %v968 = vld [vmem:[%s967] sm:$0xf]
        %v969 = vld [vmem:[%s967 + $0x4] sm:$0xf]
        %v970 = vld [vmem:[%s967 + $0x8] sm:$0xf]
        %v971 = vld [vmem:[%s967 + $0xc] sm:$0xf]
        %s972 = scalar_lea.vmem %s4, 9
        %v973 = vld [vmem:[%s972] sm:$0x1]
        %v975 = vlaneseq
        %v976 = vshrl.u32 %v975, 7
        %v977 = vsub.s32 0, %v976
        %v978 = vrot.slane %v973, %v977
        %v984 = vunpack.c.l.b16 %v968
        %v985 = vunpack.c.l.b16 %v969
        %v986 = vunpack.c.l.b16 %v970
        %v987 = vunpack.c.l.b16 %v971
        %v988 = vpack.c.b16 %v985, %v984
        %v989 = vpack.c.b16 %v987, %v986
        %992 = vmatprep.subr.bf16.mxu0 0
        %993 = vmatpush1.bf16.msra.mxu0 %v988
        %994 = vmatprep.subr.bf16.mxu0 0
        %995 = vmatpush1.bf16.msra.mxu0 %v989
        %996 = vmatprep.subr.bf16.mxu0 0
        %997 = vmatpush1.bf16.msra.mxu0 0
        %998 = vmatprep.subr.bf16.mxu0 0
        %999 = vmatpush1.bf16.msra.mxu0 0
        %1000 = vmatprep.subr.bf16.mxu0 0
        %1001 = vmatpush1.bf16.msra.mxu0 0
        %1002 = vmatprep.subr.bf16.mxu0 0
        %1003 = vmatpush1.bf16.msra.mxu0 0
        %1004 = vmatprep.subr.bf16.mxu0 0
        %1005 = vmatpush1.bf16.msra.mxu0 0
        %1006 = vmatprep.subr.bf16.mxu0 0
        %1007 = vmatpush1.bf16.msra.mxu0 0
        %1008 = vmatprep.subr.bf16.mxu0 0
        %1009 = vmatpush1.bf16.msra.mxu0 0
        %1010 = vmatprep.subr.bf16.mxu0 0
        %1011 = vmatpush1.bf16.msra.mxu0 0
        %1012 = vmatprep.subr.bf16.mxu0 0
        %1013 = vmatpush1.bf16.msra.mxu0 0
        %1014 = vmatprep.subr.bf16.mxu0 0
        %1015 = vmatpush1.bf16.msra.mxu0 0
        %1016 = vmatprep.subr.bf16.mxu0 0
        %1017 = vmatpush1.bf16.msra.mxu0 0
        %1018 = vmatprep.subr.bf16.mxu0 0
        %1019 = vmatpush1.bf16.msra.mxu0 0
        %1020 = vmatprep.subr.bf16.mxu0 0
        %1021 = vmatpush1.bf16.msra.mxu0 0
        %1022 = vmatprep.subr.bf16.mxu0 0
        %1023 = vmatpush1.bf16.msra.mxu0 0
        %1024 = vmatprep.mubr.bf16.mxu0 0
        %1025 = vmatmul.mubr.bf16.gmra.mrb[0].mxu0 %v554
        %v1026 = vpop.f32.mrb[0].mxu0
        %v1027 = vadd.f32 %v978, %v1026
        %v1028 = vpop.f32.mrb[0].mxu0
        %v1029 = vpop.f32.mrb[0].mxu0
        %v1030 = vpop.f32.mrb[0].mxu0
        %1031 = vdwg.mxu0
        %v1032 = vpack.c.bf16 %v897, %v897
        %v1033 = vpack.c.bf16 %v962, %v962
        %v1035 = vsel %vm728, %v1032, 0
        %v1038 = vsel %vm728, %v1033, 0
        %1040 = vmatprep.subr.bf16.mxu0 0
        %1041 = vmatpush1.bf16.xpose.msra.mxu0 %v1038
        %1042 = vmatprep.subr.bf16.mxu0 0
        %1043 = vmatpush1.bf16.xpose.msra.mxu0 0
        %1044 = vmatprep.subr.bf16.mxu0 0
        %1045 = vmatpush1.bf16.xpose.msra.mxu0 0
        %1046 = vmatprep.subr.bf16.mxu0 0
        %1047 = vmatpush1.bf16.xpose.msra.mxu0 0
        %1048 = vmatprep.subr.bf16.mxu0 0
        %1049 = vmatpush1.bf16.xpose.msra.mxu0 0
        %1050 = vmatprep.subr.bf16.mxu0 0
        %1051 = vmatpush1.bf16.xpose.msra.mxu0 0
        %1052 = vmatprep.subr.bf16.mxu0 0
        %1053 = vmatpush1.bf16.xpose.msra.mxu0 0
        %1054 = vmatprep.subr.bf16.mxu0 0
        %1055 = vmatpush1.bf16.xpose.msra.mxu0 0
        %1056 = vmatprep.subr.bf16.mxu0 0
        %1057 = vmatpush1.bf16.xpose.msra.mxu0 0
        %1058 = vmatprep.subr.bf16.mxu0 0
        %1059 = vmatpush1.bf16.xpose.msra.mxu0 0
        %1060 = vmatprep.subr.bf16.mxu0 0
        %1061 = vmatpush1.bf16.xpose.msra.mxu0 0
        %1062 = vmatprep.subr.bf16.mxu0 0
        %1063 = vmatpush1.bf16.xpose.msra.mxu0 0
        %1064 = vmatprep.subr.bf16.mxu0 0
        %1065 = vmatpush1.bf16.xpose.msra.mxu0 0
        %1066 = vmatprep.subr.bf16.mxu0 0
        %1067 = vmatpush1.bf16.xpose.msra.mxu0 0
        %1068 = vmatprep.subr.bf16.mxu0 0
        %1069 = vmatpush1.bf16.xpose.msra.mxu0 0
        %1070 = vmatprep.subr.bf16.mxu0 0
        %1071 = vmatpush1.bf16.xpose.msra.mxu0 0
        %1072 = vmatprep.mubr.bf16.mxu0 0
        %1073 = vmatmul.mubr.bf16.gmra.mrb[0].mxu0 %v1035
        %v1074 = vpop.f32.mrb[0].mxu0
        %v1075 = vadd.f32 %v497, %v1074
        %v1076 = vpop.f32.mrb[0].mxu0
        %v1077 = vpop.f32.mrb[0].mxu0
        %v1078 = vpop.f32.mrb[0].mxu0
        %1079 = vdwg.mxu0
        %v1080 = vsel %vm728, %v1075, -inf
        %1081 = vmax.xlane.f32.xlu0 %v1080
        %v1082 = vpop.xlane.xlu0 %1081
        %v1083 = vsub.f32 %v1075, %v1082
        %v1084 = vmul.f32 %v1083, 1.442695
        %v1085 = vpow.pop %v1084
        %v1086 = vsel %vm728, %v1085, 0.0
        %1087 = vadd.xlane.f32.xlu0 %v1086
        %v1088 = vpop.xlane.xlu0 %1087
        %v1089 = vrcp.pop %v1088
        %v1090 = vmul.f32 %v1085, %v1089
        %v1091 = vpack.c.bf16 %v1090, %v1090
        %v1092 = vpack.c.bf16 %v1027, %v1027
        %v1094 = vsel %vm728, %v1091, 0
        %v1097 = vsel %vm791, %v1092, 0
        %1099 = vmatprep.subr.bf16.mxu0 0
        %1100 = vmatpush1.bf16.msra.mxu0 %v1097
        %1101 = vmatprep.subr.bf16.mxu0 0
        %1102 = vmatpush1.bf16.msra.mxu0 0
        %1103 = vmatprep.subr.bf16.mxu0 0
        %1104 = vmatpush1.bf16.msra.mxu0 0
        %1105 = vmatprep.subr.bf16.mxu0 0
        %1106 = vmatpush1.bf16.msra.mxu0 0
        %1107 = vmatprep.subr.bf16.mxu0 0
        %1108 = vmatpush1.bf16.msra.mxu0 0
        %1109 = vmatprep.subr.bf16.mxu0 0
        %1110 = vmatpush1.bf16.msra.mxu0 0
        %1111 = vmatprep.subr.bf16.mxu0 0
        %1112 = vmatpush1.bf16.msra.mxu0 0
        %1113 = vmatprep.subr.bf16.mxu0 0
        %1114 = vmatpush1.bf16.msra.mxu0 0
        %1115 = vmatprep.subr.bf16.mxu0 0
        %1116 = vmatpush1.bf16.msra.mxu0 0
        %1117 = vmatprep.subr.bf16.mxu0 0
        %1118 = vmatpush1.bf16.msra.mxu0 0
        %1119 = vmatprep.subr.bf16.mxu0 0
        %1120 = vmatpush1.bf16.msra.mxu0 0
        %1121 = vmatprep.subr.bf16.mxu0 0
        %1122 = vmatpush1.bf16.msra.mxu0 0
        %1123 = vmatprep.subr.bf16.mxu0 0
        %1124 = vmatpush1.bf16.msra.mxu0 0
        %1125 = vmatprep.subr.bf16.mxu0 0
        %1126 = vmatpush1.bf16.msra.mxu0 0
        %1127 = vmatprep.subr.bf16.mxu0 0
        %1128 = vmatpush1.bf16.msra.mxu0 0
        %1129 = vmatprep.subr.bf16.mxu0 0
        %1130 = vmatpush1.bf16.msra.mxu0 0
        %1131 = vmatprep.mubr.bf16.mxu0 0
        %1132 = vmatmul.mubr.bf16.gmra.mrb[0].mxu0 %v1094
        %v1133 = vpop.f32.mrb[0].mxu0
        %v1134 = vadd.f32 0.0, %v1133
        %v1135 = vpop.f32.mrb[0].mxu0
        %v1136 = vpop.f32.mrb[0].mxu0
        %v1137 = vpop.f32.mrb[0].mxu0
        %1138 = vdwg.mxu0
        %v1139 = vpack.c.bf16 %v1134, %v1134
        %s1140 = scalar_lea.vmem %s5, 4
        %v1141 = vld [vmem:[%s1140] sm:$0xf]
        %v1143 = vsel %vm728, %v1139, 0
        %v1146 = vsel %vm791, %v1141, 0
        %1148 = vmatprep.subr.bf16.mxu0 0
        %1149 = vmatpush1.bf16.msra.mxu0 %v1146
        %1150 = vmatprep.subr.bf16.mxu0 0
        %1151 = vmatpush1.bf16.msra.mxu0 0
        %1152 = vmatprep.subr.bf16.mxu0 0
        %1153 = vmatpush1.bf16.msra.mxu0 0
        %1154 = vmatprep.subr.bf16.mxu0 0
        %1155 = vmatpush1.bf16.msra.mxu0 0
        %1156 = vmatprep.subr.bf16.mxu0 0
        %1157 = vmatpush1.bf16.msra.mxu0 0
        %1158 = vmatprep.subr.bf16.mxu0 0
        %1159 = vmatpush1.bf16.msra.mxu0 0
        %1160 = vmatprep.subr.bf16.mxu0 0
        %1161 = vmatpush1.bf16.msra.mxu0 0
        %1162 = vmatprep.subr.bf16.mxu0 0
        %1163 = vmatpush1.bf16.msra.mxu0 0
        %1164 = vmatprep.subr.bf16.mxu0 0
        %1165 = vmatpush1.bf16.msra.mxu0 0
        %1166 = vmatprep.subr.bf16.mxu0 0
        %1167 = vmatpush1.bf16.msra.mxu0 0
        %1168 = vmatprep.subr.bf16.mxu0 0
        %1169 = vmatpush1.bf16.msra.mxu0 0
        %1170 = vmatprep.subr.bf16.mxu0 0
        %1171 = vmatpush1.bf16.msra.mxu0 0
        %1172 = vmatprep.subr.bf16.mxu0 0
        %1173 = vmatpush1.bf16.msra.mxu0 0
        %1174 = vmatprep.subr.bf16.mxu0 0
        %1175 = vmatpush1.bf16.msra.mxu0 0
        %1176 = vmatprep.subr.bf16.mxu0 0
        %1177 = vmatpush1.bf16.msra.mxu0 0
        %1178 = vmatprep.subr.bf16.mxu0 0
        %1179 = vmatpush1.bf16.msra.mxu0 0
        %1180 = vmatprep.mubr.bf16.mxu0 0
        %1181 = vmatmul.mubr.bf16.gmra.mrb[0].mxu0 %v1143
        %v1182 = vpop.f32.mrb[0].mxu0
        %v1183 = vadd.f32 0.0, %v1182
        %v1184 = vpop.f32.mrb[0].mxu0
        %v1185 = vpop.f32.mrb[0].mxu0
        %v1186 = vpop.f32.mrb[0].mxu0
        %1187 = vdwg.mxu0
        %v1189 = vsel %vm728, %v835, 0
        %v1192 = vsel %vm791, %v836, 0
        %1194 = vmatprep.subr.bf16.mxu0 0
        %1195 = vmatpush1.bf16.msra.mxu0 %v1192
        %1196 = vmatprep.subr.bf16.mxu0 0
        %1197 = vmatpush1.bf16.msra.mxu0 0
        %1198 = vmatprep.subr.bf16.mxu0 0
        %1199 = vmatpush1.bf16.msra.mxu0 0
        %1200 = vmatprep.subr.bf16.mxu0 0
        %1201 = vmatpush1.bf16.msra.mxu0 0
        %1202 = vmatprep.subr.bf16.mxu0 0
        %1203 = vmatpush1.bf16.msra.mxu0 0
        %1204 = vmatprep.subr.bf16.mxu0 0
        %1205 = vmatpush1.bf16.msra.mxu0 0
        %1206 = vmatprep.subr.bf16.mxu0 0
        %1207 = vmatpush1.bf16.msra.mxu0 0
        %1208 = vmatprep.subr.bf16.mxu0 0
        %1209 = vmatpush1.bf16.msra.mxu0 0
        %1210 = vmatprep.subr.bf16.mxu0 0
        %1211 = vmatpush1.bf16.msra.mxu0 0
        %1212 = vmatprep.subr.bf16.mxu0 0
        %1213 = vmatpush1.bf16.msra.mxu0 0
        %1214 = vmatprep.subr.bf16.mxu0 0
        %1215 = vmatpush1.bf16.msra.mxu0 0
        %1216 = vmatprep.subr.bf16.mxu0 0
        %1217 = vmatpush1.bf16.msra.mxu0 0
        %1218 = vmatprep.subr.bf16.mxu0 0
        %1219 = vmatpush1.bf16.msra.mxu0 0
        %1220 = vmatprep.subr.bf16.mxu0 0
        %1221 = vmatpush1.bf16.msra.mxu0 0
        %1222 = vmatprep.subr.bf16.mxu0 0
        %1223 = vmatpush1.bf16.msra.mxu0 0
        %1224 = vmatprep.subr.bf16.mxu0 0
        %1225 = vmatpush1.bf16.msra.mxu0 0
        %1226 = vmatprep.mubr.bf16.mxu0 0
        %1227 = vmatmul.mubr.bf16.gmra.mrb[0].mxu0 %v1189
        %v1228 = vpop.f32.mrb[0].mxu0
        %v1229 = vadd.f32 %v1183, %v1228
        %v1230 = vpop.f32.mrb[0].mxu0
        %v1231 = vpop.f32.mrb[0].mxu0
        %v1232 = vpop.f32.mrb[0].mxu0
        %1233 = vdwg.mxu0
        %s1234 = scalar_lea.vmem %s3, 32
        %v1235 = vld [vmem:[%s1234] sm:$0xf]
        %v1236 = vld [vmem:[%s1234 + $0x4] sm:$0xf]
        %v1237 = vld [vmem:[%s1234 + $0x8] sm:$0xf]
        %v1238 = vld [vmem:[%s1234 + $0xc] sm:$0xf]
        %s1239 = scalar_lea.vmem %s4, 2
        %v1240 = vld [vmem:[%s1239] sm:$0x1]
        %v1242 = vlaneseq
        %v1243 = vshrl.u32 %v1242, 7
        %v1244 = vsub.s32 0, %v1243
        %v1245 = vrot.slane %v1240, %v1244
        %v1251 = vunpack.c.l.b16 %v1235
        %v1252 = vunpack.c.l.b16 %v1236
        %v1253 = vunpack.c.l.b16 %v1237
        %v1254 = vunpack.c.l.b16 %v1238
        %v1255 = vpack.c.b16 %v1252, %v1251
        %v1256 = vpack.c.b16 %v1254, %v1253
        %1259 = vmatprep.subr.bf16.mxu0 0
        %1260 = vmatpush1.bf16.msra.mxu0 %v1255
        %1261 = vmatprep.subr.bf16.mxu0 0
        %1262 = vmatpush1.bf16.msra.mxu0 %v1256
        %1263 = vmatprep.subr.bf16.mxu0 0
        %1264 = vmatpush1.bf16.msra.mxu0 0
        %1265 = vmatprep.subr.bf16.mxu0 0
        %1266 = vmatpush1.bf16.msra.mxu0 0
        %1267 = vmatprep.subr.bf16.mxu0 0
        %1268 = vmatpush1.bf16.msra.mxu0 0
        %1269 = vmatprep.subr.bf16.mxu0 0
        %1270 = vmatpush1.bf16.msra.mxu0 0
        %1271 = vmatprep.subr.bf16.mxu0 0
        %1272 = vmatpush1.bf16.msra.mxu0 0
        %1273 = vmatprep.subr.bf16.mxu0 0
        %1274 = vmatpush1.bf16.msra.mxu0 0
        %1275 = vmatprep.subr.bf16.mxu0 0
        %1276 = vmatpush1.bf16.msra.mxu0 0
        %1277 = vmatprep.subr.bf16.mxu0 0
        %1278 = vmatpush1.bf16.msra.mxu0 0
        %1279 = vmatprep.subr.bf16.mxu0 0
        %1280 = vmatpush1.bf16.msra.mxu0 0
        %1281 = vmatprep.subr.bf16.mxu0 0
        %1282 = vmatpush1.bf16.msra.mxu0 0
        %1283 = vmatprep.subr.bf16.mxu0 0
        %1284 = vmatpush1.bf16.msra.mxu0 0
        %1285 = vmatprep.subr.bf16.mxu0 0
        %1286 = vmatpush1.bf16.msra.mxu0 0
        %1287 = vmatprep.subr.bf16.mxu0 0
        %1288 = vmatpush1.bf16.msra.mxu0 0
        %1289 = vmatprep.subr.bf16.mxu0 0
        %1290 = vmatpush1.bf16.msra.mxu0 0
        %1291 = vmatprep.mubr.bf16.mxu0 0
        %1292 = vmatmul.mubr.bf16.gmra.mrb[0].mxu0 %v554
        %v1293 = vpop.f32.mrb[0].mxu0
        %v1294 = vadd.f32 %v1245, %v1293
        %v1295 = vpop.f32.mrb[0].mxu0
        %v1296 = vpop.f32.mrb[0].mxu0
        %v1297 = vpop.f32.mrb[0].mxu0
        %1298 = vdwg.mxu0
        %s1299 = scalar_lea.vmem %s3, 96
        %v1300 = vld [vmem:[%s1299] sm:$0xf]
        %v1301 = vld [vmem:[%s1299 + $0x4] sm:$0xf]
        %v1302 = vld [vmem:[%s1299 + $0x8] sm:$0xf]
        %v1303 = vld [vmem:[%s1299 + $0xc] sm:$0xf]
        %s1304 = scalar_lea.vmem %s4, 6
        %v1305 = vld [vmem:[%s1304] sm:$0x1]
        %v1307 = vlaneseq
        %v1308 = vshrl.u32 %v1307, 7
        %v1309 = vsub.s32 0, %v1308
        %v1310 = vrot.slane %v1305, %v1309
        %v1316 = vunpack.c.l.b16 %v1300
        %v1317 = vunpack.c.l.b16 %v1301
        %v1318 = vunpack.c.l.b16 %v1302
        %v1319 = vunpack.c.l.b16 %v1303
        %v1320 = vpack.c.b16 %v1317, %v1316
        %v1321 = vpack.c.b16 %v1319, %v1318
        %1324 = vmatprep.subr.bf16.mxu0 0
        %1325 = vmatpush1.bf16.msra.mxu0 %v1320
        %1326 = vmatprep.subr.bf16.mxu0 0
        %1327 = vmatpush1.bf16.msra.mxu0 %v1321
        %1328 = vmatprep.subr.bf16.mxu0 0
        %1329 = vmatpush1.bf16.msra.mxu0 0
        %1330 = vmatprep.subr.bf16.mxu0 0
        %1331 = vmatpush1.bf16.msra.mxu0 0
        %1332 = vmatprep.subr.bf16.mxu0 0
        %1333 = vmatpush1.bf16.msra.mxu0 0
        %1334 = vmatprep.subr.bf16.mxu0 0
        %1335 = vmatpush1.bf16.msra.mxu0 0
        %1336 = vmatprep.subr.bf16.mxu0 0
        %1337 = vmatpush1.bf16.msra.mxu0 0
        %1338 = vmatprep.subr.bf16.mxu0 0
        %1339 = vmatpush1.bf16.msra.mxu0 0
        %1340 = vmatprep.subr.bf16.mxu0 0
        %1341 = vmatpush1.bf16.msra.mxu0 0
        %1342 = vmatprep.subr.bf16.mxu0 0
        %1343 = vmatpush1.bf16.msra.mxu0 0
        %1344 = vmatprep.subr.bf16.mxu0 0
        %1345 = vmatpush1.bf16.msra.mxu0 0
        %1346 = vmatprep.subr.bf16.mxu0 0
        %1347 = vmatpush1.bf16.msra.mxu0 0
        %1348 = vmatprep.subr.bf16.mxu0 0
        %1349 = vmatpush1.bf16.msra.mxu0 0
        %1350 = vmatprep.subr.bf16.mxu0 0
        %1351 = vmatpush1.bf16.msra.mxu0 0
        %1352 = vmatprep.subr.bf16.mxu0 0
        %1353 = vmatpush1.bf16.msra.mxu0 0
        %1354 = vmatprep.subr.bf16.mxu0 0
        %1355 = vmatpush1.bf16.msra.mxu0 0
        %1356 = vmatprep.mubr.bf16.mxu0 0
        %1357 = vmatmul.mubr.bf16.gmra.mrb[0].mxu0 %v554
        %v1358 = vpop.f32.mrb[0].mxu0
        %v1359 = vadd.f32 %v1310, %v1358
        %v1360 = vpop.f32.mrb[0].mxu0
        %v1361 = vpop.f32.mrb[0].mxu0
        %v1362 = vpop.f32.mrb[0].mxu0
        %1363 = vdwg.mxu0
        %s1364 = scalar_lea.vmem %s3, 160
        %v1365 = vld [vmem:[%s1364] sm:$0xf]
        %v1366 = vld [vmem:[%s1364 + $0x4] sm:$0xf]
        %v1367 = vld [vmem:[%s1364 + $0x8] sm:$0xf]
        %v1368 = vld [vmem:[%s1364 + $0xc] sm:$0xf]
        %s1369 = scalar_lea.vmem %s4, 10
        %v1370 = vld [vmem:[%s1369] sm:$0x1]
        %v1372 = vlaneseq
        %v1373 = vshrl.u32 %v1372, 7
        %v1374 = vsub.s32 0, %v1373
        %v1375 = vrot.slane %v1370, %v1374
        %v1381 = vunpack.c.l.b16 %v1365
        %v1382 = vunpack.c.l.b16 %v1366
        %v1383 = vunpack.c.l.b16 %v1367
        %v1384 = vunpack.c.l.b16 %v1368
        %v1385 = vpack.c.b16 %v1382, %v1381
        %v1386 = vpack.c.b16 %v1384, %v1383
        %1389 = vmatprep.subr.bf16.mxu0 0
        %1390 = vmatpush1.bf16.msra.mxu0 %v1385
        %1391 = vmatprep.subr.bf16.mxu0 0
        %1392 = vmatpush1.bf16.msra.mxu0 %v1386
        %1393 = vmatprep.subr.bf16.mxu0 0
        %1394 = vmatpush1.bf16.msra.mxu0 0
        %1395 = vmatprep.subr.bf16.mxu0 0
        %1396 = vmatpush1.bf16.msra.mxu0 0
        %1397 = vmatprep.subr.bf16.mxu0 0
        %1398 = vmatpush1.bf16.msra.mxu0 0
        %1399 = vmatprep.subr.bf16.mxu0 0
        %1400 = vmatpush1.bf16.msra.mxu0 0
        %1401 = vmatprep.subr.bf16.mxu0 0
        %1402 = vmatpush1.bf16.msra.mxu0 0
        %1403 = vmatprep.subr.bf16.mxu0 0
        %1404 = vmatpush1.bf16.msra.mxu0 0
        %1405 = vmatprep.subr.bf16.mxu0 0
        %1406 = vmatpush1.bf16.msra.mxu0 0
        %1407 = vmatprep.subr.bf16.mxu0 0
        %1408 = vmatpush1.bf16.msra.mxu0 0
        %1409 = vmatprep.subr.bf16.mxu0 0
        %1410 = vmatpush1.bf16.msra.mxu0 0
        %1411 = vmatprep.subr.bf16.mxu0 0
        %1412 = vmatpush1.bf16.msra.mxu0 0
        %1413 = vmatprep.subr.bf16.mxu0 0
        %1414 = vmatpush1.bf16.msra.mxu0 0
        %1415 = vmatprep.subr.bf16.mxu0 0
        %1416 = vmatpush1.bf16.msra.mxu0 0
        %1417 = vmatprep.subr.bf16.mxu0 0
        %1418 = vmatpush1.bf16.msra.mxu0 0
        %1419 = vmatprep.subr.bf16.mxu0 0
        %1420 = vmatpush1.bf16.msra.mxu0 0
        %1421 = vmatprep.mubr.bf16.mxu0 0
        %1422 = vmatmul.mubr.bf16.gmra.mrb[0].mxu0 %v554
        %v1423 = vpop.f32.mrb[0].mxu0
        %v1424 = vadd.f32 %v1375, %v1423
        %v1425 = vpop.f32.mrb[0].mxu0
        %v1426 = vpop.f32.mrb[0].mxu0
        %v1427 = vpop.f32.mrb[0].mxu0
        %1428 = vdwg.mxu0
        %v1429 = vpack.c.bf16 %v1294, %v1294
        %v1430 = vpack.c.bf16 %v1359, %v1359
        %v1432 = vsel %vm728, %v1429, 0
        %v1435 = vsel %vm728, %v1430, 0
        %1437 = vmatprep.subr.bf16.mxu0 0
        %1438 = vmatpush1.bf16.xpose.msra.mxu0 %v1435
        %1439 = vmatprep.subr.bf16.mxu0 0
        %1440 = vmatpush1.bf16.xpose.msra.mxu0 0
        %1441 = vmatprep.subr.bf16.mxu0 0
        %1442 = vmatpush1.bf16.xpose.msra.mxu0 0
        %1443 = vmatprep.subr.bf16.mxu0 0
        %1444 = vmatpush1.bf16.xpose.msra.mxu0 0
        %1445 = vmatprep.subr.bf16.mxu0 0
        %1446 = vmatpush1.bf16.xpose.msra.mxu0 0
        %1447 = vmatprep.subr.bf16.mxu0 0
        %1448 = vmatpush1.bf16.xpose.msra.mxu0 0
        %1449 = vmatprep.subr.bf16.mxu0 0
        %1450 = vmatpush1.bf16.xpose.msra.mxu0 0
        %1451 = vmatprep.subr.bf16.mxu0 0
        %1452 = vmatpush1.bf16.xpose.msra.mxu0 0
        %1453 = vmatprep.subr.bf16.mxu0 0
        %1454 = vmatpush1.bf16.xpose.msra.mxu0 0
        %1455 = vmatprep.subr.bf16.mxu0 0
        %1456 = vmatpush1.bf16.xpose.msra.mxu0 0
        %1457 = vmatprep.subr.bf16.mxu0 0
        %1458 = vmatpush1.bf16.xpose.msra.mxu0 0
        %1459 = vmatprep.subr.bf16.mxu0 0
        %1460 = vmatpush1.bf16.xpose.msra.mxu0 0
        %1461 = vmatprep.subr.bf16.mxu0 0
        %1462 = vmatpush1.bf16.xpose.msra.mxu0 0
        %1463 = vmatprep.subr.bf16.mxu0 0
        %1464 = vmatpush1.bf16.xpose.msra.mxu0 0
        %1465 = vmatprep.subr.bf16.mxu0 0
        %1466 = vmatpush1.bf16.xpose.msra.mxu0 0
        %1467 = vmatprep.subr.bf16.mxu0 0
        %1468 = vmatpush1.bf16.xpose.msra.mxu0 0
        %1469 = vmatprep.mubr.bf16.mxu0 0
        %1470 = vmatmul.mubr.bf16.gmra.mrb[0].mxu0 %v1432
        %v1471 = vpop.f32.mrb[0].mxu0
        %v1472 = vadd.f32 %v497, %v1471
        %v1473 = vpop.f32.mrb[0].mxu0
        %v1474 = vpop.f32.mrb[0].mxu0
        %v1475 = vpop.f32.mrb[0].mxu0
        %1476 = vdwg.mxu0
        %v1477 = vsel %vm728, %v1472, -inf
        %1478 = vmax.xlane.f32.xlu0 %v1477
        %v1479 = vpop.xlane.xlu0 %1478
        %v1480 = vsub.f32 %v1472, %v1479
        %v1481 = vmul.f32 %v1480, 1.442695
        %v1482 = vpow.pop %v1481
        %v1483 = vsel %vm728, %v1482, 0.0
        %1484 = vadd.xlane.f32.xlu0 %v1483
        %v1485 = vpop.xlane.xlu0 %1484
        %v1486 = vrcp.pop %v1485
        %v1487 = vmul.f32 %v1482, %v1486
        %v1488 = vpack.c.bf16 %v1487, %v1487
        %v1489 = vpack.c.bf16 %v1424, %v1424
        %v1491 = vsel %vm728, %v1488, 0
        %v1494 = vsel %vm791, %v1489, 0
        %1496 = vmatprep.subr.bf16.mxu0 0
        %1497 = vmatpush1.bf16.msra.mxu0 %v1494
        %1498 = vmatprep.subr.bf16.mxu0 0
        %1499 = vmatpush1.bf16.msra.mxu0 0
        %1500 = vmatprep.subr.bf16.mxu0 0
        %1501 = vmatpush1.bf16.msra.mxu0 0
        %1502 = vmatprep.subr.bf16.mxu0 0
        %1503 = vmatpush1.bf16.msra.mxu0 0
        %1504 = vmatprep.subr.bf16.mxu0 0
        %1505 = vmatpush1.bf16.msra.mxu0 0
        %1506 = vmatprep.subr.bf16.mxu0 0
        %1507 = vmatpush1.bf16.msra.mxu0 0
        %1508 = vmatprep.subr.bf16.mxu0 0
        %1509 = vmatpush1.bf16.msra.mxu0 0
        %1510 = vmatprep.subr.bf16.mxu0 0
        %1511 = vmatpush1.bf16.msra.mxu0 0
        %1512 = vmatprep.subr.bf16.mxu0 0
        %1513 = vmatpush1.bf16.msra.mxu0 0
        %1514 = vmatprep.subr.bf16.mxu0 0
        %1515 = vmatpush1.bf16.msra.mxu0 0
        %1516 = vmatprep.subr.bf16.mxu0 0
        %1517 = vmatpush1.bf16.msra.mxu0 0
        %1518 = vmatprep.subr.bf16.mxu0 0
        %1519 = vmatpush1.bf16.msra.mxu0 0
        %1520 = vmatprep.subr.bf16.mxu0 0
        %1521 = vmatpush1.bf16.msra.mxu0 0
        %1522 = vmatprep.subr.bf16.mxu0 0
        %1523 = vmatpush1.bf16.msra.mxu0 0
        %1524 = vmatprep.subr.bf16.mxu0 0
        %1525 = vmatpush1.bf16.msra.mxu0 0
        %1526 = vmatprep.subr.bf16.mxu0 0
        %1527 = vmatpush1.bf16.msra.mxu0 0
        %1528 = vmatprep.mubr.bf16.mxu0 0
        %1529 = vmatmul.mubr.bf16.gmra.mrb[0].mxu0 %v1491
        %v1530 = vpop.f32.mrb[0].mxu0
        %v1531 = vadd.f32 0.0, %v1530
        %v1532 = vpop.f32.mrb[0].mxu0
        %v1533 = vpop.f32.mrb[0].mxu0
        %v1534 = vpop.f32.mrb[0].mxu0
        %1535 = vdwg.mxu0
        %v1536 = vpack.c.bf16 %v1531, %v1531
        %s1537 = scalar_lea.vmem %s5, 8
        %v1538 = vld [vmem:[%s1537] sm:$0xf]
        %v1540 = vsel %vm728, %v1536, 0
        %v1543 = vsel %vm791, %v1538, 0
        %1545 = vmatprep.subr.bf16.mxu0 0
        %1546 = vmatpush1.bf16.msra.mxu0 %v1543
        %1547 = vmatprep.subr.bf16.mxu0 0
        %1548 = vmatpush1.bf16.msra.mxu0 0
        %1549 = vmatprep.subr.bf16.mxu0 0
        %1550 = vmatpush1.bf16.msra.mxu0 0
        %1551 = vmatprep.subr.bf16.mxu0 0
        %1552 = vmatpush1.bf16.msra.mxu0 0
        %1553 = vmatprep.subr.bf16.mxu0 0
        %1554 = vmatpush1.bf16.msra.mxu0 0
        %1555 = vmatprep.subr.bf16.mxu0 0
        %1556 = vmatpush1.bf16.msra.mxu0 0
        %1557 = vmatprep.subr.bf16.mxu0 0
        %1558 = vmatpush1.bf16.msra.mxu0 0
        %1559 = vmatprep.subr.bf16.mxu0 0
        %1560 = vmatpush1.bf16.msra.mxu0 0
        %1561 = vmatprep.subr.bf16.mxu0 0
        %1562 = vmatpush1.bf16.msra.mxu0 0
        %1563 = vmatprep.subr.bf16.mxu0 0
        %1564 = vmatpush1.bf16.msra.mxu0 0
        %1565 = vmatprep.subr.bf16.mxu0 0
        %1566 = vmatpush1.bf16.msra.mxu0 0
        %1567 = vmatprep.subr.bf16.mxu0 0
        %1568 = vmatpush1.bf16.msra.mxu0 0
        %1569 = vmatprep.subr.bf16.mxu0 0
        %1570 = vmatpush1.bf16.msra.mxu0 0
        %1571 = vmatprep.subr.bf16.mxu0 0
        %1572 = vmatpush1.bf16.msra.mxu0 0
        %1573 = vmatprep.subr.bf16.mxu0 0
        %1574 = vmatpush1.bf16.msra.mxu0 0
        %1575 = vmatprep.subr.bf16.mxu0 0
        %1576 = vmatpush1.bf16.msra.mxu0 0
        %1577 = vmatprep.mubr.bf16.mxu0 0
        %1578 = vmatmul.mubr.bf16.gmra.mrb[0].mxu0 %v1540
        %v1579 = vpop.f32.mrb[0].mxu0
        %v1580 = vadd.f32 0.0, %v1579
        %v1581 = vpop.f32.mrb[0].mxu0
        %v1582 = vpop.f32.mrb[0].mxu0
        %v1583 = vpop.f32.mrb[0].mxu0
        %1584 = vdwg.mxu0
        %v1585 = vadd.f32 %v1229, %v1580
        %s1586 = scalar_lea.vmem %s3, 48
        %v1587 = vld [vmem:[%s1586] sm:$0xf]
        %v1588 = vld [vmem:[%s1586 + $0x4] sm:$0xf]
        %v1589 = vld [vmem:[%s1586 + $0x8] sm:$0xf]
        %v1590 = vld [vmem:[%s1586 + $0xc] sm:$0xf]
        %s1591 = scalar_lea.vmem %s4, 3
        %v1592 = vld [vmem:[%s1591] sm:$0x1]
        %v1594 = vlaneseq
        %v1595 = vshrl.u32 %v1594, 7
        %v1596 = vsub.s32 0, %v1595
        %v1597 = vrot.slane %v1592, %v1596
        %v1603 = vunpack.c.l.b16 %v1587
        %v1604 = vunpack.c.l.b16 %v1588
        %v1605 = vunpack.c.l.b16 %v1589
        %v1606 = vunpack.c.l.b16 %v1590
        %v1607 = vpack.c.b16 %v1604, %v1603
        %v1608 = vpack.c.b16 %v1606, %v1605
        %1611 = vmatprep.subr.bf16.mxu0 0
        %1612 = vmatpush1.bf16.msra.mxu0 %v1607
        %1613 = vmatprep.subr.bf16.mxu0 0
        %1614 = vmatpush1.bf16.msra.mxu0 %v1608
        %1615 = vmatprep.subr.bf16.mxu0 0
        %1616 = vmatpush1.bf16.msra.mxu0 0
        %1617 = vmatprep.subr.bf16.mxu0 0
        %1618 = vmatpush1.bf16.msra.mxu0 0
        %1619 = vmatprep.subr.bf16.mxu0 0
        %1620 = vmatpush1.bf16.msra.mxu0 0
        %1621 = vmatprep.subr.bf16.mxu0 0
        %1622 = vmatpush1.bf16.msra.mxu0 0
        %1623 = vmatprep.subr.bf16.mxu0 0
        %1624 = vmatpush1.bf16.msra.mxu0 0
        %1625 = vmatprep.subr.bf16.mxu0 0
        %1626 = vmatpush1.bf16.msra.mxu0 0
        %1627 = vmatprep.subr.bf16.mxu0 0
        %1628 = vmatpush1.bf16.msra.mxu0 0
        %1629 = vmatprep.subr.bf16.mxu0 0
        %1630 = vmatpush1.bf16.msra.mxu0 0
        %1631 = vmatprep.subr.bf16.mxu0 0
        %1632 = vmatpush1.bf16.msra.mxu0 0
        %1633 = vmatprep.subr.bf16.mxu0 0
        %1634 = vmatpush1.bf16.msra.mxu0 0
        %1635 = vmatprep.subr.bf16.mxu0 0
        %1636 = vmatpush1.bf16.msra.mxu0 0
        %1637 = vmatprep.subr.bf16.mxu0 0
        %1638 = vmatpush1.bf16.msra.mxu0 0
        %1639 = vmatprep.subr.bf16.mxu0 0
        %1640 = vmatpush1.bf16.msra.mxu0 0
        %1641 = vmatprep.subr.bf16.mxu0 0
        %1642 = vmatpush1.bf16.msra.mxu0 0
        %1643 = vmatprep.mubr.bf16.mxu0 0
        %1644 = vmatmul.mubr.bf16.gmra.mrb[0].mxu0 %v554
        %v1645 = vpop.f32.mrb[0].mxu0
        %v1646 = vadd.f32 %v1597, %v1645
        %v1647 = vpop.f32.mrb[0].mxu0
        %v1648 = vpop.f32.mrb[0].mxu0
        %v1649 = vpop.f32.mrb[0].mxu0
        %1650 = vdwg.mxu0
        %s1651 = scalar_lea.vmem %s3, 112
        %v1652 = vld [vmem:[%s1651] sm:$0xf]
        %v1653 = vld [vmem:[%s1651 + $0x4] sm:$0xf]
        %v1654 = vld [vmem:[%s1651 + $0x8] sm:$0xf]
        %v1655 = vld [vmem:[%s1651 + $0xc] sm:$0xf]
        %s1656 = scalar_lea.vmem %s4, 7
        %v1657 = vld [vmem:[%s1656] sm:$0x1]
        %v1659 = vlaneseq
        %v1660 = vshrl.u32 %v1659, 7
        %v1661 = vsub.s32 0, %v1660
        %v1662 = vrot.slane %v1657, %v1661
        %v1668 = vunpack.c.l.b16 %v1652
        %v1669 = vunpack.c.l.b16 %v1653
        %v1670 = vunpack.c.l.b16 %v1654
        %v1671 = vunpack.c.l.b16 %v1655
        %v1672 = vpack.c.b16 %v1669, %v1668
        %v1673 = vpack.c.b16 %v1671, %v1670
        %1676 = vmatprep.subr.bf16.mxu0 0
        %1677 = vmatpush1.bf16.msra.mxu0 %v1672
        %1678 = vmatprep.subr.bf16.mxu0 0
        %1679 = vmatpush1.bf16.msra.mxu0 %v1673
        %1680 = vmatprep.subr.bf16.mxu0 0
        %1681 = vmatpush1.bf16.msra.mxu0 0
        %1682 = vmatprep.subr.bf16.mxu0 0
        %1683 = vmatpush1.bf16.msra.mxu0 0
        %1684 = vmatprep.subr.bf16.mxu0 0
        %1685 = vmatpush1.bf16.msra.mxu0 0
        %1686 = vmatprep.subr.bf16.mxu0 0
        %1687 = vmatpush1.bf16.msra.mxu0 0
        %1688 = vmatprep.subr.bf16.mxu0 0
        %1689 = vmatpush1.bf16.msra.mxu0 0
        %1690 = vmatprep.subr.bf16.mxu0 0
        %1691 = vmatpush1.bf16.msra.mxu0 0
        %1692 = vmatprep.subr.bf16.mxu0 0
        %1693 = vmatpush1.bf16.msra.mxu0 0
        %1694 = vmatprep.subr.bf16.mxu0 0
        %1695 = vmatpush1.bf16.msra.mxu0 0
        %1696 = vmatprep.subr.bf16.mxu0 0
        %1697 = vmatpush1.bf16.msra.mxu0 0
        %1698 = vmatprep.subr.bf16.mxu0 0
        %1699 = vmatpush1.bf16.msra.mxu0 0
        %1700 = vmatprep.subr.bf16.mxu0 0
        %1701 = vmatpush1.bf16.msra.mxu0 0
        %1702 = vmatprep.subr.bf16.mxu0 0
        %1703 = vmatpush1.bf16.msra.mxu0 0
        %1704 = vmatprep.subr.bf16.mxu0 0
        %1705 = vmatpush1.bf16.msra.mxu0 0
        %1706 = vmatprep.subr.bf16.mxu0 0
        %1707 = vmatpush1.bf16.msra.mxu0 0
        %1708 = vmatprep.mubr.bf16.mxu0 0
        %1709 = vmatmul.mubr.bf16.gmra.mrb[0].mxu0 %v554
        %v1710 = vpop.f32.mrb[0].mxu0
        %v1711 = vadd.f32 %v1662, %v1710
        %v1712 = vpop.f32.mrb[0].mxu0
        %v1713 = vpop.f32.mrb[0].mxu0
        %v1714 = vpop.f32.mrb[0].mxu0
        %1715 = vdwg.mxu0
        %s1716 = scalar_lea.vmem %s3, 176
        %v1717 = vld [vmem:[%s1716] sm:$0xf]
        %v1718 = vld [vmem:[%s1716 + $0x4] sm:$0xf]
        %v1719 = vld [vmem:[%s1716 + $0x8] sm:$0xf]
        %v1720 = vld [vmem:[%s1716 + $0xc] sm:$0xf]
        %s1721 = scalar_lea.vmem %s4, 11
        %v1722 = vld [vmem:[%s1721] sm:$0x1]
        %v1724 = vlaneseq
        %v1725 = vshrl.u32 %v1724, 7
        %v1726 = vsub.s32 0, %v1725
        %v1727 = vrot.slane %v1722, %v1726
        %v1733 = vunpack.c.l.b16 %v1717
        %v1734 = vunpack.c.l.b16 %v1718
        %v1735 = vunpack.c.l.b16 %v1719
        %v1736 = vunpack.c.l.b16 %v1720
        %v1737 = vpack.c.b16 %v1734, %v1733
        %v1738 = vpack.c.b16 %v1736, %v1735
        %1741 = vmatprep.subr.bf16.mxu0 0
        %1742 = vmatpush1.bf16.msra.mxu0 %v1737
        %1743 = vmatprep.subr.bf16.mxu0 0
        %1744 = vmatpush1.bf16.msra.mxu0 %v1738
        %1745 = vmatprep.subr.bf16.mxu0 0
        %1746 = vmatpush1.bf16.msra.mxu0 0
        %1747 = vmatprep.subr.bf16.mxu0 0
        %1748 = vmatpush1.bf16.msra.mxu0 0
        %1749 = vmatprep.subr.bf16.mxu0 0
        %1750 = vmatpush1.bf16.msra.mxu0 0
        %1751 = vmatprep.subr.bf16.mxu0 0
        %1752 = vmatpush1.bf16.msra.mxu0 0
        %1753 = vmatprep.subr.bf16.mxu0 0
        %1754 = vmatpush1.bf16.msra.mxu0 0
        %1755 = vmatprep.subr.bf16.mxu0 0
        %1756 = vmatpush1.bf16.msra.mxu0 0
        %1757 = vmatprep.subr.bf16.mxu0 0
        %1758 = vmatpush1.bf16.msra.mxu0 0
        %1759 = vmatprep.subr.bf16.mxu0 0
        %1760 = vmatpush1.bf16.msra.mxu0 0
        %1761 = vmatprep.subr.bf16.mxu0 0
        %1762 = vmatpush1.bf16.msra.mxu0 0
        %1763 = vmatprep.subr.bf16.mxu0 0
        %1764 = vmatpush1.bf16.msra.mxu0 0
        %1765 = vmatprep.subr.bf16.mxu0 0
        %1766 = vmatpush1.bf16.msra.mxu0 0
        %1767 = vmatprep.subr.bf16.mxu0 0
        %1768 = vmatpush1.bf16.msra.mxu0 0
        %1769 = vmatprep.subr.bf16.mxu0 0
        %1770 = vmatpush1.bf16.msra.mxu0 0
        %1771 = vmatprep.subr.bf16.mxu0 0
        %1772 = vmatpush1.bf16.msra.mxu0 0
        %1773 = vmatprep.mubr.bf16.mxu0 0
        %1774 = vmatmul.mubr.bf16.gmra.mrb[0].mxu0 %v554
        %v1775 = vpop.f32.mrb[0].mxu0
        %v1776 = vadd.f32 %v1727, %v1775
        %v1777 = vpop.f32.mrb[0].mxu0
        %v1778 = vpop.f32.mrb[0].mxu0
        %v1779 = vpop.f32.mrb[0].mxu0
        %1780 = vdwg.mxu0
        %v1781 = vpack.c.bf16 %v1646, %v1646
        %v1782 = vpack.c.bf16 %v1711, %v1711
        %v1784 = vsel %vm728, %v1781, 0
        %v1787 = vsel %vm728, %v1782, 0
        %1789 = vmatprep.subr.bf16.mxu0 0
        %1790 = vmatpush1.bf16.xpose.msra.mxu0 %v1787
        %1791 = vmatprep.subr.bf16.mxu0 0
        %1792 = vmatpush1.bf16.xpose.msra.mxu0 0
        %1793 = vmatprep.subr.bf16.mxu0 0
        %1794 = vmatpush1.bf16.xpose.msra.mxu0 0
        %1795 = vmatprep.subr.bf16.mxu0 0
        %1796 = vmatpush1.bf16.xpose.msra.mxu0 0
        %1797 = vmatprep.subr.bf16.mxu0 0
        %1798 = vmatpush1.bf16.xpose.msra.mxu0 0
        %1799 = vmatprep.subr.bf16.mxu0 0
        %1800 = vmatpush1.bf16.xpose.msra.mxu0 0
        %1801 = vmatprep.subr.bf16.mxu0 0
        %1802 = vmatpush1.bf16.xpose.msra.mxu0 0
        %1803 = vmatprep.subr.bf16.mxu0 0
        %1804 = vmatpush1.bf16.xpose.msra.mxu0 0
        %1805 = vmatprep.subr.bf16.mxu0 0
        %1806 = vmatpush1.bf16.xpose.msra.mxu0 0
        %1807 = vmatprep.subr.bf16.mxu0 0
        %1808 = vmatpush1.bf16.xpose.msra.mxu0 0
        %1809 = vmatprep.subr.bf16.mxu0 0
        %1810 = vmatpush1.bf16.xpose.msra.mxu0 0
        %1811 = vmatprep.subr.bf16.mxu0 0
        %1812 = vmatpush1.bf16.xpose.msra.mxu0 0
        %1813 = vmatprep.subr.bf16.mxu0 0
        %1814 = vmatpush1.bf16.xpose.msra.mxu0 0
        %1815 = vmatprep.subr.bf16.mxu0 0
        %1816 = vmatpush1.bf16.xpose.msra.mxu0 0
        %1817 = vmatprep.subr.bf16.mxu0 0
        %1818 = vmatpush1.bf16.xpose.msra.mxu0 0
        %1819 = vmatprep.subr.bf16.mxu0 0
        %1820 = vmatpush1.bf16.xpose.msra.mxu0 0
        %1821 = vmatprep.mubr.bf16.mxu0 0
        %1822 = vmatmul.mubr.bf16.gmra.mrb[0].mxu0 %v1784
        %v1823 = vpop.f32.mrb[0].mxu0
        %v1824 = vadd.f32 %v497, %v1823
        %v1825 = vpop.f32.mrb[0].mxu0
        %v1826 = vpop.f32.mrb[0].mxu0
        %v1827 = vpop.f32.mrb[0].mxu0
        %1828 = vdwg.mxu0
        %v1829 = vsel %vm728, %v1824, -inf
        %1830 = vmax.xlane.f32.xlu0 %v1829
        %v1831 = vpop.xlane.xlu0 %1830
        %v1832 = vsub.f32 %v1824, %v1831
        %v1833 = vmul.f32 %v1832, 1.442695
        %v1834 = vpow.pop %v1833
        %v1835 = vsel %vm728, %v1834, 0.0
        %1836 = vadd.xlane.f32.xlu0 %v1835
        %v1837 = vpop.xlane.xlu0 %1836
        %v1838 = vrcp.pop %v1837
        %v1839 = vmul.f32 %v1834, %v1838
        %v1840 = vpack.c.bf16 %v1839, %v1839
        %v1841 = vpack.c.bf16 %v1776, %v1776
        %v1843 = vsel %vm728, %v1840, 0
        %v1846 = vsel %vm791, %v1841, 0
        %1848 = vmatprep.subr.bf16.mxu0 0
        %1849 = vmatpush1.bf16.msra.mxu0 %v1846
        %1850 = vmatprep.subr.bf16.mxu0 0
        %1851 = vmatpush1.bf16.msra.mxu0 0
        %1852 = vmatprep.subr.bf16.mxu0 0
        %1853 = vmatpush1.bf16.msra.mxu0 0
        %1854 = vmatprep.subr.bf16.mxu0 0
        %1855 = vmatpush1.bf16.msra.mxu0 0
        %1856 = vmatprep.subr.bf16.mxu0 0
        %1857 = vmatpush1.bf16.msra.mxu0 0
        %1858 = vmatprep.subr.bf16.mxu0 0
        %1859 = vmatpush1.bf16.msra.mxu0 0
        %1860 = vmatprep.subr.bf16.mxu0 0
        %1861 = vmatpush1.bf16.msra.mxu0 0
        %1862 = vmatprep.subr.bf16.mxu0 0
        %1863 = vmatpush1.bf16.msra.mxu0 0
        %1864 = vmatprep.subr.bf16.mxu0 0
        %1865 = vmatpush1.bf16.msra.mxu0 0
        %1866 = vmatprep.subr.bf16.mxu0 0
        %1867 = vmatpush1.bf16.msra.mxu0 0
        %1868 = vmatprep.subr.bf16.mxu0 0
        %1869 = vmatpush1.bf16.msra.mxu0 0
        %1870 = vmatprep.subr.bf16.mxu0 0
        %1871 = vmatpush1.bf16.msra.mxu0 0
        %1872 = vmatprep.subr.bf16.mxu0 0
        %1873 = vmatpush1.bf16.msra.mxu0 0
        %1874 = vmatprep.subr.bf16.mxu0 0
        %1875 = vmatpush1.bf16.msra.mxu0 0
        %1876 = vmatprep.subr.bf16.mxu0 0
        %1877 = vmatpush1.bf16.msra.mxu0 0
        %1878 = vmatprep.subr.bf16.mxu0 0
        %1879 = vmatpush1.bf16.msra.mxu0 0
        %1880 = vmatprep.mubr.bf16.mxu0 0
        %1881 = vmatmul.mubr.bf16.gmra.mrb[0].mxu0 %v1843
        %v1882 = vpop.f32.mrb[0].mxu0
        %v1883 = vadd.f32 0.0, %v1882
        %v1884 = vpop.f32.mrb[0].mxu0
        %v1885 = vpop.f32.mrb[0].mxu0
        %v1886 = vpop.f32.mrb[0].mxu0
        %1887 = vdwg.mxu0
        %v1888 = vpack.c.bf16 %v1883, %v1883
        %s1889 = scalar_lea.vmem %s5, 12
        %v1890 = vld [vmem:[%s1889] sm:$0xf]
        %v1892 = vsel %vm728, %v1888, 0
        %v1895 = vsel %vm791, %v1890, 0
        %1897 = vmatprep.subr.bf16.mxu0 0
        %1898 = vmatpush1.bf16.msra.mxu0 %v1895
        %1899 = vmatprep.subr.bf16.mxu0 0
        %1900 = vmatpush1.bf16.msra.mxu0 0
        %1901 = vmatprep.subr.bf16.mxu0 0
        %1902 = vmatpush1.bf16.msra.mxu0 0
        %1903 = vmatprep.subr.bf16.mxu0 0
        %1904 = vmatpush1.bf16.msra.mxu0 0
        %1905 = vmatprep.subr.bf16.mxu0 0
        %1906 = vmatpush1.bf16.msra.mxu0 0
        %1907 = vmatprep.subr.bf16.mxu0 0
        %1908 = vmatpush1.bf16.msra.mxu0 0
        %1909 = vmatprep.subr.bf16.mxu0 0
        %1910 = vmatpush1.bf16.msra.mxu0 0
        %1911 = vmatprep.subr.bf16.mxu0 0
        %1912 = vmatpush1.bf16.msra.mxu0 0
        %1913 = vmatprep.subr.bf16.mxu0 0
        %1914 = vmatpush1.bf16.msra.mxu0 0
        %1915 = vmatprep.subr.bf16.mxu0 0
        %1916 = vmatpush1.bf16.msra.mxu0 0
        %1917 = vmatprep.subr.bf16.mxu0 0
        %1918 = vmatpush1.bf16.msra.mxu0 0
        %1919 = vmatprep.subr.bf16.mxu0 0
        %1920 = vmatpush1.bf16.msra.mxu0 0
        %1921 = vmatprep.subr.bf16.mxu0 0
        %1922 = vmatpush1.bf16.msra.mxu0 0
        %1923 = vmatprep.subr.bf16.mxu0 0
        %1924 = vmatpush1.bf16.msra.mxu0 0
        %1925 = vmatprep.subr.bf16.mxu0 0
        %1926 = vmatpush1.bf16.msra.mxu0 0
        %1927 = vmatprep.subr.bf16.mxu0 0
        %1928 = vmatpush1.bf16.msra.mxu0 0
        %1929 = vmatprep.mubr.bf16.mxu0 0
        %1930 = vmatmul.mubr.bf16.gmra.mrb[0].mxu0 %v1892
        %v1931 = vpop.f32.mrb[0].mxu0
        %v1932 = vadd.f32 0.0, %v1931
        %v1933 = vpop.f32.mrb[0].mxu0
        %v1934 = vpop.f32.mrb[0].mxu0
        %v1935 = vpop.f32.mrb[0].mxu0
        %1936 = vdwg.mxu0
        %v1937 = vadd.f32 %v1585, %v1932
        %v1938 = vadd.f32 %v491, %v1937
        %v1939 = vld [vmem:[%s6] sm:$0x1]
        %v1941 = vlaneseq
        %v1942 = vshrl.u32 %v1941, 7
        %v1943 = vsub.s32 0, %v1942
        %v1944 = vrot.slane %v1939, %v1943
        %v1946 = vadd.f32 %v1938, %v1944
        %v1947 = vld [vmem:[%s7] sm:$0x1]
        %v1948 = vld [vmem:[%s8] sm:$0x1]
        %v1949 = vsel %vm500, %v1946, 0.0
        %1950 = vadd.xlane.f32.xlu0 %v1949
        %v1951 = vpop.xlane.xlu0 %1950
        %v1952 = vmul.f32 %v1951, %v504
        %v1953 = vsub.f32 %v1946, %v1952
        %v1954 = vmul.f32 %v1953, %v1953
        %v1955 = vsel %vm500, %v1954, 0.0
        %1956 = vadd.xlane.f32.xlu0 %v1955
        %v1957 = vpop.xlane.xlu0 %1956
        %v1958 = vmul.f32 %v1957, %v504
        %v1959 = vadd.f32 %v1958, 1e-05
        %v1960 = vrsqrt.pop %v1959
        %v1961 = vmul.f32 %v1953, %v1960
        %v1963 = vlaneseq
        %v1964 = vshrl.u32 %v1963, 7
        %v1965 = vsub.s32 0, %v1964
        %v1966 = vrot.slane %v1947, %v1965
        %v1968 = vmul.f32 %v1961, %v1966
        %v1970 = vlaneseq
        %v1971 = vshrl.u32 %v1970, 7
        %v1972 = vsub.s32 0, %v1971
        %v1973 = vrot.slane %v1948, %v1972
        %v1975 = vadd.f32 %v1968, %v1973
        %v1976 = vpack.c.bf16 %v1975, %v1975
        %v1977 = vld [vmem:[%s9] sm:$0xf]
        %v1978 = vld [vmem:[%s9 + $0x4] sm:$0xf]
        %v1979 = vld [vmem:[%s9 + $0x8] sm:$0xf]
        %v1980 = vld [vmem:[%s9 + $0xc] sm:$0xf]
        %v1981 = vld [vmem:[%s10] sm:$0x1]
        %v1983 = vlaneseq
        %v1984 = vshrl.u32 %v1983, 7
        %v1985 = vsub.s32 0, %v1984
        %v1986 = vrot.slane %v1981, %v1985
        %v1992 = vunpack.c.l.b16 %v1977
        %v1993 = vunpack.c.l.b16 %v1978
        %v1994 = vunpack.c.l.b16 %v1979
        %v1995 = vunpack.c.l.b16 %v1980
        %v1996 = vpack.c.b16 %v1993, %v1992
        %v1997 = vpack.c.b16 %v1995, %v1994
        %v2001 = vsel %vm500, %v1976, 0
        %2003 = vmatprep.subr.bf16.mxu0 0
        %2004 = vmatpush1.bf16.msra.mxu0 %v1996
        %2005 = vmatprep.subr.bf16.mxu0 0
        %2006 = vmatpush1.bf16.msra.mxu0 %v1997
        %2007 = vmatprep.subr.bf16.mxu0 0
        %2008 = vmatpush1.bf16.msra.mxu0 0
        %2009 = vmatprep.subr.bf16.mxu0 0
        %2010 = vmatpush1.bf16.msra.mxu0 0
        %2011 = vmatprep.subr.bf16.mxu0 0
        %2012 = vmatpush1.bf16.msra.mxu0 0
        %2013 = vmatprep.subr.bf16.mxu0 0
        %2014 = vmatpush1.bf16.msra.mxu0 0
        %2015 = vmatprep.subr.bf16.mxu0 0
        %2016 = vmatpush1.bf16.msra.mxu0 0
        %2017 = vmatprep.subr.bf16.mxu0 0
        %2018 = vmatpush1.bf16.msra.mxu0 0
        %2019 = vmatprep.subr.bf16.mxu0 0
        %2020 = vmatpush1.bf16.msra.mxu0 0
        %2021 = vmatprep.subr.bf16.mxu0 0
        %2022 = vmatpush1.bf16.msra.mxu0 0
        %2023 = vmatprep.subr.bf16.mxu0 0
        %2024 = vmatpush1.bf16.msra.mxu0 0
        %2025 = vmatprep.subr.bf16.mxu0 0
        %2026 = vmatpush1.bf16.msra.mxu0 0
        %2027 = vmatprep.subr.bf16.mxu0 0
        %2028 = vmatpush1.bf16.msra.mxu0 0
        %2029 = vmatprep.subr.bf16.mxu0 0
        %2030 = vmatpush1.bf16.msra.mxu0 0
        %2031 = vmatprep.subr.bf16.mxu0 0
        %2032 = vmatpush1.bf16.msra.mxu0 0
        %2033 = vmatprep.subr.bf16.mxu0 0
        %2034 = vmatpush1.bf16.msra.mxu0 0
        %2035 = vmatprep.mubr.bf16.mxu0 0
        %2036 = vmatmul.mubr.bf16.gmra.mrb[0].mxu0 %v2001
        %v2037 = vpop.f32.mrb[0].mxu0
        %v2038 = vadd.f32 %v1986, %v2037
        %v2039 = vpop.f32.mrb[0].mxu0
        %v2040 = vpop.f32.mrb[0].mxu0
        %v2041 = vpop.f32.mrb[0].mxu0
        %2042 = vdwg.mxu0
        %v2043 = vmul.f32 %v2038, 1.702
        %v2044 = vxor.u32 %v2043, 2147483648
        %v2045 = vmul.f32 %v2044, 1.442695
        %v2046 = vpow.pop %v2045
        %v2047 = vadd.f32 %v2046, 1.0
        %v2048 = vrcp.pop %v2047
        %v2049 = vmul.f32 1.0, %v2048
        %v2050 = vmul.f32 %v2038, %v2049
        %v2051 = vpack.c.bf16 %v2050, %v2050
        %v2052 = vld [vmem:[%s11] sm:$0xf]
        %v2053 = vld [vmem:[%s11 + $0x4] sm:$0xf]
        %v2054 = vld [vmem:[%s11 + $0x8] sm:$0xf]
        %v2055 = vld [vmem:[%s11 + $0xc] sm:$0xf]
        %v2056 = vld [vmem:[%s11 + $0x10] sm:$0xf]
        %v2057 = vld [vmem:[%s11 + $0x14] sm:$0xf]
        %v2058 = vld [vmem:[%s11 + $0x18] sm:$0xf]
        %v2059 = vld [vmem:[%s11 + $0x1c] sm:$0xf]
        %v2068 = vunpack.c.l.b16 %v2052
        %v2069 = vunpack.c.l.b16 %v2053
        %v2070 = vunpack.c.l.b16 %v2054
        %v2071 = vunpack.c.l.b16 %v2055
        %v2072 = vunpack.c.l.b16 %v2056
        %v2073 = vunpack.c.l.b16 %v2057
        %v2074 = vunpack.c.l.b16 %v2058
        %v2075 = vunpack.c.l.b16 %v2059
        %v2076 = vpack.c.b16 %v2069, %v2068
        %v2077 = vpack.c.b16 %v2071, %v2070
        %v2078 = vpack.c.b16 %v2073, %v2072
        %v2079 = vpack.c.b16 %v2075, %v2074
        %vm2084 = vcmask 523264
        %v2086 = vsel %vm2084, %v2051, 0
        %2088 = vmatprep.subr.bf16.mxu0 0
        %2089 = vmatpush1.bf16.msra.mxu0 %v2076
        %2090 = vmatprep.subr.bf16.mxu0 0
        %2091 = vmatpush1.bf16.msra.mxu0 %v2077
        %2092 = vmatprep.subr.bf16.mxu0 0
        %2093 = vmatpush1.bf16.msra.mxu0 %v2078
        %2094 = vmatprep.subr.bf16.mxu0 0
        %2095 = vmatpush1.bf16.msra.mxu0 %v2079
        %2096 = vmatprep.subr.bf16.mxu0 0
        %2097 = vmatpush1.bf16.msra.mxu0 0
        %2098 = vmatprep.subr.bf16.mxu0 0
        %2099 = vmatpush1.bf16.msra.mxu0 0
        %2100 = vmatprep.subr.bf16.mxu0 0
        %2101 = vmatpush1.bf16.msra.mxu0 0
        %2102 = vmatprep.subr.bf16.mxu0 0
        %2103 = vmatpush1.bf16.msra.mxu0 0
        %2104 = vmatprep.subr.bf16.mxu0 0
        %2105 = vmatpush1.bf16.msra.mxu0 0
        %2106 = vmatprep.subr.bf16.mxu0 0
        %2107 = vmatpush1.bf16.msra.mxu0 0
        %2108 = vmatprep.subr.bf16.mxu0 0
        %2109 = vmatpush1.bf16.msra.mxu0 0
        %2110 = vmatprep.subr.bf16.mxu0 0
        %2111 = vmatpush1.bf16.msra.mxu0 0
        %2112 = vmatprep.subr.bf16.mxu0 0
        %2113 = vmatpush1.bf16.msra.mxu0 0
        %2114 = vmatprep.subr.bf16.mxu0 0
        %2115 = vmatpush1.bf16.msra.mxu0 0
        %2116 = vmatprep.subr.bf16.mxu0 0
        %2117 = vmatpush1.bf16.msra.mxu0 0
        %2118 = vmatprep.subr.bf16.mxu0 0
        %2119 = vmatpush1.bf16.msra.mxu0 0
        %2120 = vmatprep.mubr.bf16.mxu0 0
        %2121 = vmatmul.mubr.bf16.gmra.mrb[0].mxu0 %v2086
        %v2122 = vpop.f32.mrb[0].mxu0
        %v2123 = vadd.f32 0.0, %v2122
        %v2124 = vpop.f32.mrb[0].mxu0
        %v2125 = vpop.f32.mrb[0].mxu0
        %v2126 = vpop.f32.mrb[0].mxu0
        %2127 = vdwg.mxu0
        %v2128 = vadd.f32 %v1946, %v2123
        %v2129 = vld [vmem:[%s12] sm:$0x1]
        %v2131 = vlaneseq
        %v2132 = vshrl.u32 %v2131, 7
        %v2133 = vsub.s32 0, %v2132
        %v2134 = vrot.slane %v2129, %v2133
        %v2136 = vadd.f32 %v2128, %v2134
        %s2137 = scalar_lea.vmem %s1, 1
        %v2138 = vld [vmem:[%s2137] sm:$0x1]
        %s2139 = scalar_lea.vmem %s2, 1
        %v2140 = vld [vmem:[%s2139] sm:$0x1]
        %v2141 = vsel %vm500, %v2136, 0.0
        %2142 = vadd.xlane.f32.xlu0 %v2141
        %v2143 = vpop.xlane.xlu0 %2142
        %v2144 = vmul.f32 %v2143, %v504
        %v2145 = vsub.f32 %v2136, %v2144
        %v2146 = vmul.f32 %v2145, %v2145
        %v2147 = vsel %vm500, %v2146, 0.0
        %2148 = vadd.xlane.f32.xlu0 %v2147
        %v2149 = vpop.xlane.xlu0 %2148
        %v2150 = vmul.f32 %v2149, %v504
        %v2151 = vadd.f32 %v2150, 1e-05
        %v2152 = vrsqrt.pop %v2151
        %v2153 = vmul.f32 %v2145, %v2152
        %v2155 = vlaneseq
        %v2156 = vshrl.u32 %v2155, 7
        %v2157 = vsub.s32 0, %v2156
        %v2158 = vrot.slane %v2138, %v2157
        %v2160 = vmul.f32 %v2153, %v2158
        %v2162 = vlaneseq
        %v2163 = vshrl.u32 %v2162, 7
        %v2164 = vsub.s32 0, %v2163
        %v2165 = vrot.slane %v2140, %v2164
        %v2167 = vadd.f32 %v2160, %v2165
        %v2168 = vpack.c.bf16 %v2167, %v2167
        %s2169 = scalar_lea.vmem %s3, 192
        %v2170 = vld [vmem:[%s2169] sm:$0xf]
        %v2171 = vld [vmem:[%s2169 + $0x4] sm:$0xf]
        %v2172 = vld [vmem:[%s2169 + $0x8] sm:$0xf]
        %v2173 = vld [vmem:[%s2169 + $0xc] sm:$0xf]
        %s2174 = scalar_lea.vmem %s4, 12
        %v2175 = vld [vmem:[%s2174] sm:$0x1]
        %v2177 = vlaneseq
        %v2178 = vshrl.u32 %v2177, 7
        %v2179 = vsub.s32 0, %v2178
        %v2180 = vrot.slane %v2175, %v2179
        %v2186 = vunpack.c.l.b16 %v2170
        %v2187 = vunpack.c.l.b16 %v2171
        %v2188 = vunpack.c.l.b16 %v2172
        %v2189 = vunpack.c.l.b16 %v2173
        %v2190 = vpack.c.b16 %v2187, %v2186
        %v2191 = vpack.c.b16 %v2189, %v2188
        %v2195 = vsel %vm500, %v2168, 0
        %2197 = vmatprep.subr.bf16.mxu0 0
        %2198 = vmatpush1.bf16.msra.mxu0 %v2190
        %2199 = vmatprep.subr.bf16.mxu0 0
        %2200 = vmatpush1.bf16.msra.mxu0 %v2191
        %2201 = vmatprep.subr.bf16.mxu0 0
        %2202 = vmatpush1.bf16.msra.mxu0 0
        %2203 = vmatprep.subr.bf16.mxu0 0
        %2204 = vmatpush1.bf16.msra.mxu0 0
        %2205 = vmatprep.subr.bf16.mxu0 0
        %2206 = vmatpush1.bf16.msra.mxu0 0
        %2207 = vmatprep.subr.bf16.mxu0 0
        %2208 = vmatpush1.bf16.msra.mxu0 0
        %2209 = vmatprep.subr.bf16.mxu0 0
        %2210 = vmatpush1.bf16.msra.mxu0 0
        %2211 = vmatprep.subr.bf16.mxu0 0
        %2212 = vmatpush1.bf16.msra.mxu0 0
        %2213 = vmatprep.subr.bf16.mxu0 0
        %2214 = vmatpush1.bf16.msra.mxu0 0
        %2215 = vmatprep.subr.bf16.mxu0 0
        %2216 = vmatpush1.bf16.msra.mxu0 0
        %2217 = vmatprep.subr.bf16.mxu0 0
        %2218 = vmatpush1.bf16.msra.mxu0 0
        %2219 = vmatprep.subr.bf16.mxu0 0
        %2220 = vmatpush1.bf16.msra.mxu0 0
        %2221 = vmatprep.subr.bf16.mxu0 0
        %2222 = vmatpush1.bf16.msra.mxu0 0
        %2223 = vmatprep.subr.bf16.mxu0 0
        %2224 = vmatpush1.bf16.msra.mxu0 0
        %2225 = vmatprep.subr.bf16.mxu0 0
        %2226 = vmatpush1.bf16.msra.mxu0 0
        %2227 = vmatprep.subr.bf16.mxu0 0
        %2228 = vmatpush1.bf16.msra.mxu0 0
        %2229 = vmatprep.mubr.bf16.mxu0 0
        %2230 = vmatmul.mubr.bf16.gmra.mrb[0].mxu0 %v2195
        %v2231 = vpop.f32.mrb[0].mxu0
        %v2232 = vadd.f32 %v2180, %v2231
        %v2233 = vpop.f32.mrb[0].mxu0
        %v2234 = vpop.f32.mrb[0].mxu0
        %v2235 = vpop.f32.mrb[0].mxu0
        %2236 = vdwg.mxu0
        %s2237 = scalar_lea.vmem %s3, 256
        %v2238 = vld [vmem:[%s2237] sm:$0xf]
        %v2239 = vld [vmem:[%s2237 + $0x4] sm:$0xf]
        %v2240 = vld [vmem:[%s2237 + $0x8] sm:$0xf]
        %v2241 = vld [vmem:[%s2237 + $0xc] sm:$0xf]
        %s2242 = scalar_lea.vmem %s4, 16
        %v2243 = vld [vmem:[%s2242] sm:$0x1]
        %v2245 = vlaneseq
        %v2246 = vshrl.u32 %v2245, 7
        %v2247 = vsub.s32 0, %v2246
        %v2248 = vrot.slane %v2243, %v2247
        %v2254 = vunpack.c.l.b16 %v2238
        %v2255 = vunpack.c.l.b16 %v2239
        %v2256 = vunpack.c.l.b16 %v2240
        %v2257 = vunpack.c.l.b16 %v2241
        %v2258 = vpack.c.b16 %v2255, %v2254
        %v2259 = vpack.c.b16 %v2257, %v2256
        %2262 = vmatprep.subr.bf16.mxu0 0
        %2263 = vmatpush1.bf16.msra.mxu0 %v2258
        %2264 = vmatprep.subr.bf16.mxu0 0
        %2265 = vmatpush1.bf16.msra.mxu0 %v2259
        %2266 = vmatprep.subr.bf16.mxu0 0
        %2267 = vmatpush1.bf16.msra.mxu0 0
        %2268 = vmatprep.subr.bf16.mxu0 0
        %2269 = vmatpush1.bf16.msra.mxu0 0
        %2270 = vmatprep.subr.bf16.mxu0 0
        %2271 = vmatpush1.bf16.msra.mxu0 0
        %2272 = vmatprep.subr.bf16.mxu0 0
        %2273 = vmatpush1.bf16.msra.mxu0 0
        %2274 = vmatprep.subr.bf16.mxu0 0
        %2275 = vmatpush1.bf16.msra.mxu0 0
        %2276 = vmatprep.subr.bf16.mxu0 0
        %2277 = vmatpush1.bf16.msra.mxu0 0
        %2278 = vmatprep.subr.bf16.mxu0 0
        %2279 = vmatpush1.bf16.msra.mxu0 0
        %2280 = vmatprep.subr.bf16.mxu0 0
        %2281 = vmatpush1.bf16.msra.mxu0 0
        %2282 = vmatprep.subr.bf16.mxu0 0
        %2283 = vmatpush1.bf16.msra.mxu0 0
        %2284 = vmatprep.subr.bf16.mxu0 0
        %2285 = vmatpush1.bf16.msra.mxu0 0
        %2286 = vmatprep.subr.bf16.mxu0 0
        %2287 = vmatpush1.bf16.msra.mxu0 0
        %2288 = vmatprep.subr.bf16.mxu0 0
        %2289 = vmatpush1.bf16.msra.mxu0 0
        %2290 = vmatprep.subr.bf16.mxu0 0
        %2291 = vmatpush1.bf16.msra.mxu0 0
        %2292 = vmatprep.subr.bf16.mxu0 0
        %2293 = vmatpush1.bf16.msra.mxu0 0
        %2294 = vmatprep.mubr.bf16.mxu0 0
        %2295 = vmatmul.mubr.bf16.gmra.mrb[0].mxu0 %v2195
        %v2296 = vpop.f32.mrb[0].mxu0
        %v2297 = vadd.f32 %v2248, %v2296
        %v2298 = vpop.f32.mrb[0].mxu0
        %v2299 = vpop.f32.mrb[0].mxu0
        %v2300 = vpop.f32.mrb[0].mxu0
        %2301 = vdwg.mxu0
        %s2302 = scalar_lea.vmem %s3, 320
        %v2303 = vld [vmem:[%s2302] sm:$0xf]
        %v2304 = vld [vmem:[%s2302 + $0x4] sm:$0xf]
        %v2305 = vld [vmem:[%s2302 + $0x8] sm:$0xf]
        %v2306 = vld [vmem:[%s2302 + $0xc] sm:$0xf]
        %s2307 = scalar_lea.vmem %s4, 20
        %v2308 = vld [vmem:[%s2307] sm:$0x1]
        %v2310 = vlaneseq
        %v2311 = vshrl.u32 %v2310, 7
        %v2312 = vsub.s32 0, %v2311
        %v2313 = vrot.slane %v2308, %v2312
        %v2319 = vunpack.c.l.b16 %v2303
        %v2320 = vunpack.c.l.b16 %v2304
        %v2321 = vunpack.c.l.b16 %v2305
        %v2322 = vunpack.c.l.b16 %v2306
        %v2323 = vpack.c.b16 %v2320, %v2319
        %v2324 = vpack.c.b16 %v2322, %v2321
        %2327 = vmatprep.subr.bf16.mxu0 0
        %2328 = vmatpush1.bf16.msra.mxu0 %v2323
        %2329 = vmatprep.subr.bf16.mxu0 0
        %2330 = vmatpush1.bf16.msra.mxu0 %v2324
        %2331 = vmatprep.subr.bf16.mxu0 0
        %2332 = vmatpush1.bf16.msra.mxu0 0
        %2333 = vmatprep.subr.bf16.mxu0 0
        %2334 = vmatpush1.bf16.msra.mxu0 0
        %2335 = vmatprep.subr.bf16.mxu0 0
        %2336 = vmatpush1.bf16.msra.mxu0 0
        %2337 = vmatprep.subr.bf16.mxu0 0
        %2338 = vmatpush1.bf16.msra.mxu0 0
        %2339 = vmatprep.subr.bf16.mxu0 0
        %2340 = vmatpush1.bf16.msra.mxu0 0
        %2341 = vmatprep.subr.bf16.mxu0 0
        %2342 = vmatpush1.bf16.msra.mxu0 0
        %2343 = vmatprep.subr.bf16.mxu0 0
        %2344 = vmatpush1.bf16.msra.mxu0 0
        %2345 = vmatprep.subr.bf16.mxu0 0
        %2346 = vmatpush1.bf16.msra.mxu0 0
        %2347 = vmatprep.subr.bf16.mxu0 0
        %2348 = vmatpush1.bf16.msra.mxu0 0
        %2349 = vmatprep.subr.bf16.mxu0 0
        %2350 = vmatpush1.bf16.msra.mxu0 0
        %2351 = vmatprep.subr.bf16.mxu0 0
        %2352 = vmatpush1.bf16.msra.mxu0 0
        %2353 = vmatprep.subr.bf16.mxu0 0
        %2354 = vmatpush1.bf16.msra.mxu0 0
        %2355 = vmatprep.subr.bf16.mxu0 0
        %2356 = vmatpush1.bf16.msra.mxu0 0
        %2357 = vmatprep.subr.bf16.mxu0 0
        %2358 = vmatpush1.bf16.msra.mxu0 0
        %2359 = vmatprep.mubr.bf16.mxu0 0
        %2360 = vmatmul.mubr.bf16.gmra.mrb[0].mxu0 %v2195
        %v2361 = vpop.f32.mrb[0].mxu0
        %v2362 = vadd.f32 %v2313, %v2361
        %v2363 = vpop.f32.mrb[0].mxu0
        %v2364 = vpop.f32.mrb[0].mxu0
        %v2365 = vpop.f32.mrb[0].mxu0
        %2366 = vdwg.mxu0
        %v2367 = vpack.c.bf16 %v2232, %v2232
        %v2368 = vpack.c.bf16 %v2297, %v2297
        %v2370 = vsel %vm728, %v2367, 0
        %v2373 = vsel %vm728, %v2368, 0
        %2375 = vmatprep.subr.bf16.mxu0 0
        %2376 = vmatpush1.bf16.xpose.msra.mxu0 %v2373
        %2377 = vmatprep.subr.bf16.mxu0 0
        %2378 = vmatpush1.bf16.xpose.msra.mxu0 0
        %2379 = vmatprep.subr.bf16.mxu0 0
        %2380 = vmatpush1.bf16.xpose.msra.mxu0 0
        %2381 = vmatprep.subr.bf16.mxu0 0
        %2382 = vmatpush1.bf16.xpose.msra.mxu0 0
        %2383 = vmatprep.subr.bf16.mxu0 0
        %2384 = vmatpush1.bf16.xpose.msra.mxu0 0
        %2385 = vmatprep.subr.bf16.mxu0 0
        %2386 = vmatpush1.bf16.xpose.msra.mxu0 0
        %2387 = vmatprep.subr.bf16.mxu0 0
        %2388 = vmatpush1.bf16.xpose.msra.mxu0 0
        %2389 = vmatprep.subr.bf16.mxu0 0
        %2390 = vmatpush1.bf16.xpose.msra.mxu0 0
        %2391 = vmatprep.subr.bf16.mxu0 0
        %2392 = vmatpush1.bf16.xpose.msra.mxu0 0
        %2393 = vmatprep.subr.bf16.mxu0 0
        %2394 = vmatpush1.bf16.xpose.msra.mxu0 0
        %2395 = vmatprep.subr.bf16.mxu0 0
        %2396 = vmatpush1.bf16.xpose.msra.mxu0 0
        %2397 = vmatprep.subr.bf16.mxu0 0
        %2398 = vmatpush1.bf16.xpose.msra.mxu0 0
        %2399 = vmatprep.subr.bf16.mxu0 0
        %2400 = vmatpush1.bf16.xpose.msra.mxu0 0
        %2401 = vmatprep.subr.bf16.mxu0 0
        %2402 = vmatpush1.bf16.xpose.msra.mxu0 0
        %2403 = vmatprep.subr.bf16.mxu0 0
        %2404 = vmatpush1.bf16.xpose.msra.mxu0 0
        %2405 = vmatprep.subr.bf16.mxu0 0
        %2406 = vmatpush1.bf16.xpose.msra.mxu0 0
        %2407 = vmatprep.mubr.bf16.mxu0 0
        %2408 = vmatmul.mubr.bf16.gmra.mrb[0].mxu0 %v2370
        %v2409 = vpop.f32.mrb[0].mxu0
        %v2410 = vadd.f32 %v497, %v2409
        %v2411 = vpop.f32.mrb[0].mxu0
        %v2412 = vpop.f32.mrb[0].mxu0
        %v2413 = vpop.f32.mrb[0].mxu0
        %2414 = vdwg.mxu0
        %v2415 = vsel %vm728, %v2410, -inf
        %2416 = vmax.xlane.f32.xlu0 %v2415
        %v2417 = vpop.xlane.xlu0 %2416
        %v2418 = vsub.f32 %v2410, %v2417
        %v2419 = vmul.f32 %v2418, 1.442695
        %v2420 = vpow.pop %v2419
        %v2421 = vsel %vm728, %v2420, 0.0
        %2422 = vadd.xlane.f32.xlu0 %v2421
        %v2423 = vpop.xlane.xlu0 %2422
        %v2424 = vrcp.pop %v2423
        %v2425 = vmul.f32 %v2420, %v2424
        %v2426 = vpack.c.bf16 %v2425, %v2425
        %v2427 = vpack.c.bf16 %v2362, %v2362
        %v2429 = vsel %vm728, %v2426, 0
        %v2432 = vsel %vm791, %v2427, 0
        %2434 = vmatprep.subr.bf16.mxu0 0
        %2435 = vmatpush1.bf16.msra.mxu0 %v2432
        %2436 = vmatprep.subr.bf16.mxu0 0
        %2437 = vmatpush1.bf16.msra.mxu0 0
        %2438 = vmatprep.subr.bf16.mxu0 0
        %2439 = vmatpush1.bf16.msra.mxu0 0
        %2440 = vmatprep.subr.bf16.mxu0 0
        %2441 = vmatpush1.bf16.msra.mxu0 0
        %2442 = vmatprep.subr.bf16.mxu0 0
        %2443 = vmatpush1.bf16.msra.mxu0 0
        %2444 = vmatprep.subr.bf16.mxu0 0
        %2445 = vmatpush1.bf16.msra.mxu0 0
        %2446 = vmatprep.subr.bf16.mxu0 0
        %2447 = vmatpush1.bf16.msra.mxu0 0
        %2448 = vmatprep.subr.bf16.mxu0 0
        %2449 = vmatpush1.bf16.msra.mxu0 0
        %2450 = vmatprep.subr.bf16.mxu0 0
        %2451 = vmatpush1.bf16.msra.mxu0 0
        %2452 = vmatprep.subr.bf16.mxu0 0
        %2453 = vmatpush1.bf16.msra.mxu0 0
        %2454 = vmatprep.subr.bf16.mxu0 0
        %2455 = vmatpush1.bf16.msra.mxu0 0
        %2456 = vmatprep.subr.bf16.mxu0 0
        %2457 = vmatpush1.bf16.msra.mxu0 0
        %2458 = vmatprep.subr.bf16.mxu0 0
        %2459 = vmatpush1.bf16.msra.mxu0 0
        %2460 = vmatprep.subr.bf16.mxu0 0
        %2461 = vmatpush1.bf16.msra.mxu0 0
        %2462 = vmatprep.subr.bf16.mxu0 0
        %2463 = vmatpush1.bf16.msra.mxu0 0
        %2464 = vmatprep.subr.bf16.mxu0 0
        %2465 = vmatpush1.bf16.msra.mxu0 0
        %2466 = vmatprep.mubr.bf16.mxu0 0
        %2467 = vmatmul.mubr.bf16.gmra.mrb[0].mxu0 %v2429
        %v2468 = vpop.f32.mrb[0].mxu0
        %v2469 = vadd.f32 0.0, %v2468
        %v2470 = vpop.f32.mrb[0].mxu0
        %v2471 = vpop.f32.mrb[0].mxu0
        %v2472 = vpop.f32.mrb[0].mxu0
        %2473 = vdwg.mxu0
        %v2474 = vpack.c.bf16 %v2469, %v2469
        %s2475 = scalar_lea.vmem %s5, 16
        %v2476 = vld [vmem:[%s2475] sm:$0xf]
        %s2477 = scalar_lea.vmem %s3, 208
        %v2478 = vld [vmem:[%s2477] sm:$0xf]
        %v2479 = vld [vmem:[%s2477 + $0x4] sm:$0xf]
        %v2480 = vld [vmem:[%s2477 + $0x8] sm:$0xf]
        %v2481 = vld [vmem:[%s2477 + $0xc] sm:$0xf]
        %s2482 = scalar_lea.vmem %s4, 13
        %v2483 = vld [vmem:[%s2482] sm:$0x1]
        %v2485 = vlaneseq
        %v2486 = vshrl.u32 %v2485, 7
        %v2487 = vsub.s32 0, %v2486
        %v2488 = vrot.slane %v2483, %v2487
        %v2494 = vunpack.c.l.b16 %v2478
        %v2495 = vunpack.c.l.b16 %v2479
        %v2496 = vunpack.c.l.b16 %v2480
        %v2497 = vunpack.c.l.b16 %v2481
        %v2498 = vpack.c.b16 %v2495, %v2494
        %v2499 = vpack.c.b16 %v2497, %v2496
        %2502 = vmatprep.subr.bf16.mxu0 0
        %2503 = vmatpush1.bf16.msra.mxu0 %v2498
        %2504 = vmatprep.subr.bf16.mxu0 0
        %2505 = vmatpush1.bf16.msra.mxu0 %v2499
        %2506 = vmatprep.subr.bf16.mxu0 0
        %2507 = vmatpush1.bf16.msra.mxu0 0
        %2508 = vmatprep.subr.bf16.mxu0 0
        %2509 = vmatpush1.bf16.msra.mxu0 0
        %2510 = vmatprep.subr.bf16.mxu0 0
        %2511 = vmatpush1.bf16.msra.mxu0 0
        %2512 = vmatprep.subr.bf16.mxu0 0
        %2513 = vmatpush1.bf16.msra.mxu0 0
        %2514 = vmatprep.subr.bf16.mxu0 0
        %2515 = vmatpush1.bf16.msra.mxu0 0
        %2516 = vmatprep.subr.bf16.mxu0 0
        %2517 = vmatpush1.bf16.msra.mxu0 0
        %2518 = vmatprep.subr.bf16.mxu0 0
        %2519 = vmatpush1.bf16.msra.mxu0 0
        %2520 = vmatprep.subr.bf16.mxu0 0
        %2521 = vmatpush1.bf16.msra.mxu0 0
        %2522 = vmatprep.subr.bf16.mxu0 0
        %2523 = vmatpush1.bf16.msra.mxu0 0
        %2524 = vmatprep.subr.bf16.mxu0 0
        %2525 = vmatpush1.bf16.msra.mxu0 0
        %2526 = vmatprep.subr.bf16.mxu0 0
        %2527 = vmatpush1.bf16.msra.mxu0 0
        %2528 = vmatprep.subr.bf16.mxu0 0
        %2529 = vmatpush1.bf16.msra.mxu0 0
        %2530 = vmatprep.subr.bf16.mxu0 0
        %2531 = vmatpush1.bf16.msra.mxu0 0
        %2532 = vmatprep.subr.bf16.mxu0 0
        %2533 = vmatpush1.bf16.msra.mxu0 0
        %2534 = vmatprep.mubr.bf16.mxu0 0
        %2535 = vmatmul.mubr.bf16.gmra.mrb[0].mxu0 %v2195
        %v2536 = vpop.f32.mrb[0].mxu0
        %v2537 = vadd.f32 %v2488, %v2536
        %v2538 = vpop.f32.mrb[0].mxu0
        %v2539 = vpop.f32.mrb[0].mxu0
        %v2540 = vpop.f32.mrb[0].mxu0
        %2541 = vdwg.mxu0
        %s2542 = scalar_lea.vmem %s3, 272
        %v2543 = vld [vmem:[%s2542] sm:$0xf]
        %v2544 = vld [vmem:[%s2542 + $0x4] sm:$0xf]
        %v2545 = vld [vmem:[%s2542 + $0x8] sm:$0xf]
        %v2546 = vld [vmem:[%s2542 + $0xc] sm:$0xf]
        %s2547 = scalar_lea.vmem %s4, 17
        %v2548 = vld [vmem:[%s2547] sm:$0x1]
        %v2550 = vlaneseq
        %v2551 = vshrl.u32 %v2550, 7
        %v2552 = vsub.s32 0, %v2551
        %v2553 = vrot.slane %v2548, %v2552
        %v2559 = vunpack.c.l.b16 %v2543
        %v2560 = vunpack.c.l.b16 %v2544
        %v2561 = vunpack.c.l.b16 %v2545
        %v2562 = vunpack.c.l.b16 %v2546
        %v2563 = vpack.c.b16 %v2560, %v2559
        %v2564 = vpack.c.b16 %v2562, %v2561
        %2567 = vmatprep.subr.bf16.mxu0 0
        %2568 = vmatpush1.bf16.msra.mxu0 %v2563
        %2569 = vmatprep.subr.bf16.mxu0 0
        %2570 = vmatpush1.bf16.msra.mxu0 %v2564
        %2571 = vmatprep.subr.bf16.mxu0 0
        %2572 = vmatpush1.bf16.msra.mxu0 0
        %2573 = vmatprep.subr.bf16.mxu0 0
        %2574 = vmatpush1.bf16.msra.mxu0 0
        %2575 = vmatprep.subr.bf16.mxu0 0
        %2576 = vmatpush1.bf16.msra.mxu0 0
        %2577 = vmatprep.subr.bf16.mxu0 0
        %2578 = vmatpush1.bf16.msra.mxu0 0
        %2579 = vmatprep.subr.bf16.mxu0 0
        %2580 = vmatpush1.bf16.msra.mxu0 0
        %2581 = vmatprep.subr.bf16.mxu0 0
        %2582 = vmatpush1.bf16.msra.mxu0 0
        %2583 = vmatprep.subr.bf16.mxu0 0
        %2584 = vmatpush1.bf16.msra.mxu0 0
        %2585 = vmatprep.subr.bf16.mxu0 0
        %2586 = vmatpush1.bf16.msra.mxu0 0
        %2587 = vmatprep.subr.bf16.mxu0 0
        %2588 = vmatpush1.bf16.msra.mxu0 0
        %2589 = vmatprep.subr.bf16.mxu0 0
        %2590 = vmatpush1.bf16.msra.mxu0 0
        %2591 = vmatprep.subr.bf16.mxu0 0
        %2592 = vmatpush1.bf16.msra.mxu0 0
        %2593 = vmatprep.subr.bf16.mxu0 0
        %2594 = vmatpush1.bf16.msra.mxu0 0
        %2595 = vmatprep.subr.bf16.mxu0 0
        %2596 = vmatpush1.bf16.msra.mxu0 0
        %2597 = vmatprep.subr.bf16.mxu0 0
        %2598 = vmatpush1.bf16.msra.mxu0 0
        %2599 = vmatprep.mubr.bf16.mxu0 0
        %2600 = vmatmul.mubr.bf16.gmra.mrb[0].mxu0 %v2195
        %v2601 = vpop.f32.mrb[0].mxu0
        %v2602 = vadd.f32 %v2553, %v2601
        %v2603 = vpop.f32.mrb[0].mxu0
        %v2604 = vpop.f32.mrb[0].mxu0
        %v2605 = vpop.f32.mrb[0].mxu0
        %2606 = vdwg.mxu0
        %s2607 = scalar_lea.vmem %s3, 336
        %v2608 = vld [vmem:[%s2607] sm:$0xf]
        %v2609 = vld [vmem:[%s2607 + $0x4] sm:$0xf]
        %v2610 = vld [vmem:[%s2607 + $0x8] sm:$0xf]
        %v2611 = vld [vmem:[%s2607 + $0xc] sm:$0xf]
        %s2612 = scalar_lea.vmem %s4, 21
        %v2613 = vld [vmem:[%s2612] sm:$0x1]
        %v2615 = vlaneseq
        %v2616 = vshrl.u32 %v2615, 7
        %v2617 = vsub.s32 0, %v2616
        %v2618 = vrot.slane %v2613, %v2617
        %v2624 = vunpack.c.l.b16 %v2608
        %v2625 = vunpack.c.l.b16 %v2609
        %v2626 = vunpack.c.l.b16 %v2610
        %v2627 = vunpack.c.l.b16 %v2611
        %v2628 = vpack.c.b16 %v2625, %v2624
        %v2629 = vpack.c.b16 %v2627, %v2626
        %2632 = vmatprep.subr.bf16.mxu0 0
        %2633 = vmatpush1.bf16.msra.mxu0 %v2628
        %2634 = vmatprep.subr.bf16.mxu0 0
        %2635 = vmatpush1.bf16.msra.mxu0 %v2629
        %2636 = vmatprep.subr.bf16.mxu0 0
        %2637 = vmatpush1.bf16.msra.mxu0 0
        %2638 = vmatprep.subr.bf16.mxu0 0
        %2639 = vmatpush1.bf16.msra.mxu0 0
        %2640 = vmatprep.subr.bf16.mxu0 0
        %2641 = vmatpush1.bf16.msra.mxu0 0
        %2642 = vmatprep.subr.bf16.mxu0 0
        %2643 = vmatpush1.bf16.msra.mxu0 0
        %2644 = vmatprep.subr.bf16.mxu0 0
        %2645 = vmatpush1.bf16.msra.mxu0 0
        %2646 = vmatprep.subr.bf16.mxu0 0
        %2647 = vmatpush1.bf16.msra.mxu0 0
        %2648 = vmatprep.subr.bf16.mxu0 0
        %2649 = vmatpush1.bf16.msra.mxu0 0
        %2650 = vmatprep.subr.bf16.mxu0 0
        %2651 = vmatpush1.bf16.msra.mxu0 0
        %2652 = vmatprep.subr.bf16.mxu0 0
        %2653 = vmatpush1.bf16.msra.mxu0 0
        %2654 = vmatprep.subr.bf16.mxu0 0
        %2655 = vmatpush1.bf16.msra.mxu0 0
        %2656 = vmatprep.subr.bf16.mxu0 0
        %2657 = vmatpush1.bf16.msra.mxu0 0
        %2658 = vmatprep.subr.bf16.mxu0 0
        %2659 = vmatpush1.bf16.msra.mxu0 0
        %2660 = vmatprep.subr.bf16.mxu0 0
        %2661 = vmatpush1.bf16.msra.mxu0 0
        %2662 = vmatprep.subr.bf16.mxu0 0
        %2663 = vmatpush1.bf16.msra.mxu0 0
        %2664 = vmatprep.mubr.bf16.mxu0 0
        %2665 = vmatmul.mubr.bf16.gmra.mrb[0].mxu0 %v2195
        %v2666 = vpop.f32.mrb[0].mxu0
        %v2667 = vadd.f32 %v2618, %v2666
        %v2668 = vpop.f32.mrb[0].mxu0
        %v2669 = vpop.f32.mrb[0].mxu0
        %v2670 = vpop.f32.mrb[0].mxu0
        %2671 = vdwg.mxu0
        %v2672 = vpack.c.bf16 %v2537, %v2537
        %v2673 = vpack.c.bf16 %v2602, %v2602
        %v2675 = vsel %vm728, %v2672, 0
        %v2678 = vsel %vm728, %v2673, 0
        %2680 = vmatprep.subr.bf16.mxu0 0
        %2681 = vmatpush1.bf16.xpose.msra.mxu0 %v2678
        %2682 = vmatprep.subr.bf16.mxu0 0
        %2683 = vmatpush1.bf16.xpose.msra.mxu0 0
        %2684 = vmatprep.subr.bf16.mxu0 0
        %2685 = vmatpush1.bf16.xpose.msra.mxu0 0
        %2686 = vmatprep.subr.bf16.mxu0 0
        %2687 = vmatpush1.bf16.xpose.msra.mxu0 0
        %2688 = vmatprep.subr.bf16.mxu0 0
        %2689 = vmatpush1.bf16.xpose.msra.mxu0 0
        %2690 = vmatprep.subr.bf16.mxu0 0
        %2691 = vmatpush1.bf16.xpose.msra.mxu0 0
        %2692 = vmatprep.subr.bf16.mxu0 0
        %2693 = vmatpush1.bf16.xpose.msra.mxu0 0
        %2694 = vmatprep.subr.bf16.mxu0 0
        %2695 = vmatpush1.bf16.xpose.msra.mxu0 0
        %2696 = vmatprep.subr.bf16.mxu0 0
        %2697 = vmatpush1.bf16.xpose.msra.mxu0 0
        %2698 = vmatprep.subr.bf16.mxu0 0
        %2699 = vmatpush1.bf16.xpose.msra.mxu0 0
        %2700 = vmatprep.subr.bf16.mxu0 0
        %2701 = vmatpush1.bf16.xpose.msra.mxu0 0
        %2702 = vmatprep.subr.bf16.mxu0 0
        %2703 = vmatpush1.bf16.xpose.msra.mxu0 0
        %2704 = vmatprep.subr.bf16.mxu0 0
        %2705 = vmatpush1.bf16.xpose.msra.mxu0 0
        %2706 = vmatprep.subr.bf16.mxu0 0
        %2707 = vmatpush1.bf16.xpose.msra.mxu0 0
        %2708 = vmatprep.subr.bf16.mxu0 0
        %2709 = vmatpush1.bf16.xpose.msra.mxu0 0
        %2710 = vmatprep.subr.bf16.mxu0 0
        %2711 = vmatpush1.bf16.xpose.msra.mxu0 0
        %2712 = vmatprep.mubr.bf16.mxu0 0
        %2713 = vmatmul.mubr.bf16.gmra.mrb[0].mxu0 %v2675
        %v2714 = vpop.f32.mrb[0].mxu0
        %v2715 = vadd.f32 %v497, %v2714
        %v2716 = vpop.f32.mrb[0].mxu0
        %v2717 = vpop.f32.mrb[0].mxu0
        %v2718 = vpop.f32.mrb[0].mxu0
        %2719 = vdwg.mxu0
        %v2720 = vsel %vm728, %v2715, -inf
        %2721 = vmax.xlane.f32.xlu0 %v2720
        %v2722 = vpop.xlane.xlu0 %2721
        %v2723 = vsub.f32 %v2715, %v2722
        %v2724 = vmul.f32 %v2723, 1.442695
        %v2725 = vpow.pop %v2724
        %v2726 = vsel %vm728, %v2725, 0.0
        %2727 = vadd.xlane.f32.xlu0 %v2726
        %v2728 = vpop.xlane.xlu0 %2727
        %v2729 = vrcp.pop %v2728
        %v2730 = vmul.f32 %v2725, %v2729
        %v2731 = vpack.c.bf16 %v2730, %v2730
        %v2732 = vpack.c.bf16 %v2667, %v2667
        %v2734 = vsel %vm728, %v2731, 0
        %v2737 = vsel %vm791, %v2732, 0
        %2739 = vmatprep.subr.bf16.mxu0 0
        %2740 = vmatpush1.bf16.msra.mxu0 %v2737
        %2741 = vmatprep.subr.bf16.mxu0 0
        %2742 = vmatpush1.bf16.msra.mxu0 0
        %2743 = vmatprep.subr.bf16.mxu0 0
        %2744 = vmatpush1.bf16.msra.mxu0 0
        %2745 = vmatprep.subr.bf16.mxu0 0
        %2746 = vmatpush1.bf16.msra.mxu0 0
        %2747 = vmatprep.subr.bf16.mxu0 0
        %2748 = vmatpush1.bf16.msra.mxu0 0
        %2749 = vmatprep.subr.bf16.mxu0 0
        %2750 = vmatpush1.bf16.msra.mxu0 0
        %2751 = vmatprep.subr.bf16.mxu0 0
        %2752 = vmatpush1.bf16.msra.mxu0 0
        %2753 = vmatprep.subr.bf16.mxu0 0
        %2754 = vmatpush1.bf16.msra.mxu0 0
        %2755 = vmatprep.subr.bf16.mxu0 0
        %2756 = vmatpush1.bf16.msra.mxu0 0
        %2757 = vmatprep.subr.bf16.mxu0 0
        %2758 = vmatpush1.bf16.msra.mxu0 0
        %2759 = vmatprep.subr.bf16.mxu0 0
        %2760 = vmatpush1.bf16.msra.mxu0 0
        %2761 = vmatprep.subr.bf16.mxu0 0
        %2762 = vmatpush1.bf16.msra.mxu0 0
        %2763 = vmatprep.subr.bf16.mxu0 0
        %2764 = vmatpush1.bf16.msra.mxu0 0
        %2765 = vmatprep.subr.bf16.mxu0 0
        %2766 = vmatpush1.bf16.msra.mxu0 0
        %2767 = vmatprep.subr.bf16.mxu0 0
        %2768 = vmatpush1.bf16.msra.mxu0 0
        %2769 = vmatprep.subr.bf16.mxu0 0
        %2770 = vmatpush1.bf16.msra.mxu0 0
        %2771 = vmatprep.mubr.bf16.mxu0 0
        %2772 = vmatmul.mubr.bf16.gmra.mrb[0].mxu0 %v2734
        %v2773 = vpop.f32.mrb[0].mxu0
        %v2774 = vadd.f32 0.0, %v2773
        %v2775 = vpop.f32.mrb[0].mxu0
        %v2776 = vpop.f32.mrb[0].mxu0
        %v2777 = vpop.f32.mrb[0].mxu0
        %2778 = vdwg.mxu0
        %v2779 = vpack.c.bf16 %v2774, %v2774
        %s2780 = scalar_lea.vmem %s5, 20
        %v2781 = vld [vmem:[%s2780] sm:$0xf]
        %v2783 = vsel %vm728, %v2779, 0
        %v2786 = vsel %vm791, %v2781, 0
        %2788 = vmatprep.subr.bf16.mxu0 0
        %2789 = vmatpush1.bf16.msra.mxu0 %v2786
        %2790 = vmatprep.subr.bf16.mxu0 0
        %2791 = vmatpush1.bf16.msra.mxu0 0
        %2792 = vmatprep.subr.bf16.mxu0 0
        %2793 = vmatpush1.bf16.msra.mxu0 0
        %2794 = vmatprep.subr.bf16.mxu0 0
        %2795 = vmatpush1.bf16.msra.mxu0 0
        %2796 = vmatprep.subr.bf16.mxu0 0
        %2797 = vmatpush1.bf16.msra.mxu0 0
        %2798 = vmatprep.subr.bf16.mxu0 0
        %2799 = vmatpush1.bf16.msra.mxu0 0
        %2800 = vmatprep.subr.bf16.mxu0 0
        %2801 = vmatpush1.bf16.msra.mxu0 0
        %2802 = vmatprep.subr.bf16.mxu0 0
        %2803 = vmatpush1.bf16.msra.mxu0 0
        %2804 = vmatprep.subr.bf16.mxu0 0
        %2805 = vmatpush1.bf16.msra.mxu0 0
        %2806 = vmatprep.subr.bf16.mxu0 0
        %2807 = vmatpush1.bf16.msra.mxu0 0
        %2808 = vmatprep.subr.bf16.mxu0 0
        %2809 = vmatpush1.bf16.msra.mxu0 0
        %2810 = vmatprep.subr.bf16.mxu0 0
        %2811 = vmatpush1.bf16.msra.mxu0 0
        %2812 = vmatprep.subr.bf16.mxu0 0
        %2813 = vmatpush1.bf16.msra.mxu0 0
        %2814 = vmatprep.subr.bf16.mxu0 0
        %2815 = vmatpush1.bf16.msra.mxu0 0
        %2816 = vmatprep.subr.bf16.mxu0 0
        %2817 = vmatpush1.bf16.msra.mxu0 0
        %2818 = vmatprep.subr.bf16.mxu0 0
        %2819 = vmatpush1.bf16.msra.mxu0 0
        %2820 = vmatprep.mubr.bf16.mxu0 0
        %2821 = vmatmul.mubr.bf16.gmra.mrb[0].mxu0 %v2783
        %v2822 = vpop.f32.mrb[0].mxu0
        %v2823 = vadd.f32 0.0, %v2822
        %v2824 = vpop.f32.mrb[0].mxu0
        %v2825 = vpop.f32.mrb[0].mxu0
        %v2826 = vpop.f32.mrb[0].mxu0
        %2827 = vdwg.mxu0
        %v2829 = vsel %vm728, %v2474, 0
        %v2832 = vsel %vm791, %v2476, 0
        %2834 = vmatprep.subr.bf16.mxu0 0
        %2835 = vmatpush1.bf16.msra.mxu0 %v2832
        %2836 = vmatprep.subr.bf16.mxu0 0
        %2837 = vmatpush1.bf16.msra.mxu0 0
        %2838 = vmatprep.subr.bf16.mxu0 0
        %2839 = vmatpush1.bf16.msra.mxu0 0
        %2840 = vmatprep.subr.bf16.mxu0 0
        %2841 = vmatpush1.bf16.msra.mxu0 0
        %2842 = vmatprep.subr.bf16.mxu0 0
        %2843 = vmatpush1.bf16.msra.mxu0 0
        %2844 = vmatprep.subr.bf16.mxu0 0
        %2845 = vmatpush1.bf16.msra.mxu0 0
        %2846 = vmatprep.subr.bf16.mxu0 0
        %2847 = vmatpush1.bf16.msra.mxu0 0
        %2848 = vmatprep.subr.bf16.mxu0 0
        %2849 = vmatpush1.bf16.msra.mxu0 0
        %2850 = vmatprep.subr.bf16.mxu0 0
        %2851 = vmatpush1.bf16.msra.mxu0 0
        %2852 = vmatprep.subr.bf16.mxu0 0
        %2853 = vmatpush1.bf16.msra.mxu0 0
        %2854 = vmatprep.subr.bf16.mxu0 0
        %2855 = vmatpush1.bf16.msra.mxu0 0
        %2856 = vmatprep.subr.bf16.mxu0 0
        %2857 = vmatpush1.bf16.msra.mxu0 0
        %2858 = vmatprep.subr.bf16.mxu0 0
        %2859 = vmatpush1.bf16.msra.mxu0 0
        %2860 = vmatprep.subr.bf16.mxu0 0
        %2861 = vmatpush1.bf16.msra.mxu0 0
        %2862 = vmatprep.subr.bf16.mxu0 0
        %2863 = vmatpush1.bf16.msra.mxu0 0
        %2864 = vmatprep.subr.bf16.mxu0 0
        %2865 = vmatpush1.bf16.msra.mxu0 0
        %2866 = vmatprep.mubr.bf16.mxu0 0
        %2867 = vmatmul.mubr.bf16.gmra.mrb[0].mxu0 %v2829
        %v2868 = vpop.f32.mrb[0].mxu0
        %v2869 = vadd.f32 %v2823, %v2868
        %v2870 = vpop.f32.mrb[0].mxu0
        %v2871 = vpop.f32.mrb[0].mxu0
        %v2872 = vpop.f32.mrb[0].mxu0
        %2873 = vdwg.mxu0
        %s2874 = scalar_lea.vmem %s3, 224
        %v2875 = vld [vmem:[%s2874] sm:$0xf]
        %v2876 = vld [vmem:[%s2874 + $0x4] sm:$0xf]
        %v2877 = vld [vmem:[%s2874 + $0x8] sm:$0xf]
        %v2878 = vld [vmem:[%s2874 + $0xc] sm:$0xf]
        %s2879 = scalar_lea.vmem %s4, 14
        %v2880 = vld [vmem:[%s2879] sm:$0x1]
        %v2882 = vlaneseq
        %v2883 = vshrl.u32 %v2882, 7
        %v2884 = vsub.s32 0, %v2883
        %v2885 = vrot.slane %v2880, %v2884
        %v2891 = vunpack.c.l.b16 %v2875
        %v2892 = vunpack.c.l.b16 %v2876
        %v2893 = vunpack.c.l.b16 %v2877
        %v2894 = vunpack.c.l.b16 %v2878
        %v2895 = vpack.c.b16 %v2892, %v2891
        %v2896 = vpack.c.b16 %v2894, %v2893
        %2899 = vmatprep.subr.bf16.mxu0 0
        %2900 = vmatpush1.bf16.msra.mxu0 %v2895
        %2901 = vmatprep.subr.bf16.mxu0 0
        %2902 = vmatpush1.bf16.msra.mxu0 %v2896
        %2903 = vmatprep.subr.bf16.mxu0 0
        %2904 = vmatpush1.bf16.msra.mxu0 0
        %2905 = vmatprep.subr.bf16.mxu0 0
        %2906 = vmatpush1.bf16.msra.mxu0 0
        %2907 = vmatprep.subr.bf16.mxu0 0
        %2908 = vmatpush1.bf16.msra.mxu0 0
        %2909 = vmatprep.subr.bf16.mxu0 0
        %2910 = vmatpush1.bf16.msra.mxu0 0
        %2911 = vmatprep.subr.bf16.mxu0 0
        %2912 = vmatpush1.bf16.msra.mxu0 0
        %2913 = vmatprep.subr.bf16.mxu0 0
        %2914 = vmatpush1.bf16.msra.mxu0 0
        %2915 = vmatprep.subr.bf16.mxu0 0
        %2916 = vmatpush1.bf16.msra.mxu0 0
        %2917 = vmatprep.subr.bf16.mxu0 0
        %2918 = vmatpush1.bf16.msra.mxu0 0
        %2919 = vmatprep.subr.bf16.mxu0 0
        %2920 = vmatpush1.bf16.msra.mxu0 0
        %2921 = vmatprep.subr.bf16.mxu0 0
        %2922 = vmatpush1.bf16.msra.mxu0 0
        %2923 = vmatprep.subr.bf16.mxu0 0
        %2924 = vmatpush1.bf16.msra.mxu0 0
        %2925 = vmatprep.subr.bf16.mxu0 0
        %2926 = vmatpush1.bf16.msra.mxu0 0
        %2927 = vmatprep.subr.bf16.mxu0 0
        %2928 = vmatpush1.bf16.msra.mxu0 0
        %2929 = vmatprep.subr.bf16.mxu0 0
        %2930 = vmatpush1.bf16.msra.mxu0 0
        %2931 = vmatprep.mubr.bf16.mxu0 0
        %2932 = vmatmul.mubr.bf16.gmra.mrb[0].mxu0 %v2195
        %v2933 = vpop.f32.mrb[0].mxu0
        %v2934 = vadd.f32 %v2885, %v2933
        %v2935 = vpop.f32.mrb[0].mxu0
        %v2936 = vpop.f32.mrb[0].mxu0
        %v2937 = vpop.f32.mrb[0].mxu0
        %2938 = vdwg.mxu0
        %s2939 = scalar_lea.vmem %s3, 288
        %v2940 = vld [vmem:[%s2939] sm:$0xf]
        %v2941 = vld [vmem:[%s2939 + $0x4] sm:$0xf]
        %v2942 = vld [vmem:[%s2939 + $0x8] sm:$0xf]
        %v2943 = vld [vmem:[%s2939 + $0xc] sm:$0xf]
        %s2944 = scalar_lea.vmem %s4, 18
        %v2945 = vld [vmem:[%s2944] sm:$0x1]
        %v2947 = vlaneseq
        %v2948 = vshrl.u32 %v2947, 7
        %v2949 = vsub.s32 0, %v2948
        %v2950 = vrot.slane %v2945, %v2949
        %v2956 = vunpack.c.l.b16 %v2940
        %v2957 = vunpack.c.l.b16 %v2941
        %v2958 = vunpack.c.l.b16 %v2942
        %v2959 = vunpack.c.l.b16 %v2943
        %v2960 = vpack.c.b16 %v2957, %v2956
        %v2961 = vpack.c.b16 %v2959, %v2958
        %2964 = vmatprep.subr.bf16.mxu0 0
        %2965 = vmatpush1.bf16.msra.mxu0 %v2960
        %2966 = vmatprep.subr.bf16.mxu0 0
        %2967 = vmatpush1.bf16.msra.mxu0 %v2961
        %2968 = vmatprep.subr.bf16.mxu0 0
        %2969 = vmatpush1.bf16.msra.mxu0 0
        %2970 = vmatprep.subr.bf16.mxu0 0
        %2971 = vmatpush1.bf16.msra.mxu0 0
        %2972 = vmatprep.subr.bf16.mxu0 0
        %2973 = vmatpush1.bf16.msra.mxu0 0
        %2974 = vmatprep.subr.bf16.mxu0 0
        %2975 = vmatpush1.bf16.msra.mxu0 0
        %2976 = vmatprep.subr.bf16.mxu0 0
        %2977 = vmatpush1.bf16.msra.mxu0 0
        %2978 = vmatprep.subr.bf16.mxu0 0
        %2979 = vmatpush1.bf16.msra.mxu0 0
        %2980 = vmatprep.subr.bf16.mxu0 0
        %2981 = vmatpush1.bf16.msra.mxu0 0
        %2982 = vmatprep.subr.bf16.mxu0 0
        %2983 = vmatpush1.bf16.msra.mxu0 0
        %2984 = vmatprep.subr.bf16.mxu0 0
        %2985 = vmatpush1.bf16.msra.mxu0 0
        %2986 = vmatprep.subr.bf16.mxu0 0
        %2987 = vmatpush1.bf16.msra.mxu0 0
        %2988 = vmatprep.subr.bf16.mxu0 0
        %2989 = vmatpush1.bf16.msra.mxu0 0
        %2990 = vmatprep.subr.bf16.mxu0 0
        %2991 = vmatpush1.bf16.msra.mxu0 0
        %2992 = vmatprep.subr.bf16.mxu0 0
        %2993 = vmatpush1.bf16.msra.mxu0 0
        %2994 = vmatprep.subr.bf16.mxu0 0
        %2995 = vmatpush1.bf16.msra.mxu0 0
        %2996 = vmatprep.mubr.bf16.mxu0 0
        %2997 = vmatmul.mubr.bf16.gmra.mrb[0].mxu0 %v2195
        %v2998 = vpop.f32.mrb[0].mxu0
        %v2999 = vadd.f32 %v2950, %v2998
        %v3000 = vpop.f32.mrb[0].mxu0
        %v3001 = vpop.f32.mrb[0].mxu0
        %v3002 = vpop.f32.mrb[0].mxu0
        %3003 = vdwg.mxu0
        %s3004 = scalar_lea.vmem %s3, 352
        %v3005 = vld [vmem:[%s3004] sm:$0xf]
        %v3006 = vld [vmem:[%s3004 + $0x4] sm:$0xf]
        %v3007 = vld [vmem:[%s3004 + $0x8] sm:$0xf]
        %v3008 = vld [vmem:[%s3004 + $0xc] sm:$0xf]
        %s3009 = scalar_lea.vmem %s4, 22
        %v3010 = vld [vmem:[%s3009] sm:$0x1]
        %v3012 = vlaneseq
        %v3013 = vshrl.u32 %v3012, 7
        %v3014 = vsub.s32 0, %v3013
        %v3015 = vrot.slane %v3010, %v3014
        %v3021 = vunpack.c.l.b16 %v3005
        %v3022 = vunpack.c.l.b16 %v3006
        %v3023 = vunpack.c.l.b16 %v3007
        %v3024 = vunpack.c.l.b16 %v3008
        %v3025 = vpack.c.b16 %v3022, %v3021
        %v3026 = vpack.c.b16 %v3024, %v3023
        %3029 = vmatprep.subr.bf16.mxu0 0
        %3030 = vmatpush1.bf16.msra.mxu0 %v3025
        %3031 = vmatprep.subr.bf16.mxu0 0
        %3032 = vmatpush1.bf16.msra.mxu0 %v3026
        %3033 = vmatprep.subr.bf16.mxu0 0
        %3034 = vmatpush1.bf16.msra.mxu0 0
        %3035 = vmatprep.subr.bf16.mxu0 0
        %3036 = vmatpush1.bf16.msra.mxu0 0
        %3037 = vmatprep.subr.bf16.mxu0 0
        %3038 = vmatpush1.bf16.msra.mxu0 0
        %3039 = vmatprep.subr.bf16.mxu0 0
        %3040 = vmatpush1.bf16.msra.mxu0 0
        %3041 = vmatprep.subr.bf16.mxu0 0
        %3042 = vmatpush1.bf16.msra.mxu0 0
        %3043 = vmatprep.subr.bf16.mxu0 0
        %3044 = vmatpush1.bf16.msra.mxu0 0
        %3045 = vmatprep.subr.bf16.mxu0 0
        %3046 = vmatpush1.bf16.msra.mxu0 0
        %3047 = vmatprep.subr.bf16.mxu0 0
        %3048 = vmatpush1.bf16.msra.mxu0 0
        %3049 = vmatprep.subr.bf16.mxu0 0
        %3050 = vmatpush1.bf16.msra.mxu0 0
        %3051 = vmatprep.subr.bf16.mxu0 0
        %3052 = vmatpush1.bf16.msra.mxu0 0
        %3053 = vmatprep.subr.bf16.mxu0 0
        %3054 = vmatpush1.bf16.msra.mxu0 0
        %3055 = vmatprep.subr.bf16.mxu0 0
        %3056 = vmatpush1.bf16.msra.mxu0 0
        %3057 = vmatprep.subr.bf16.mxu0 0
        %3058 = vmatpush1.bf16.msra.mxu0 0
        %3059 = vmatprep.subr.bf16.mxu0 0
        %3060 = vmatpush1.bf16.msra.mxu0 0
        %3061 = vmatprep.mubr.bf16.mxu0 0
        %3062 = vmatmul.mubr.bf16.gmra.mrb[0].mxu0 %v2195
        %v3063 = vpop.f32.mrb[0].mxu0
        %v3064 = vadd.f32 %v3015, %v3063
        %v3065 = vpop.f32.mrb[0].mxu0
        %v3066 = vpop.f32.mrb[0].mxu0
        %v3067 = vpop.f32.mrb[0].mxu0
        %3068 = vdwg.mxu0
        %v3069 = vpack.c.bf16 %v2934, %v2934
        %v3070 = vpack.c.bf16 %v2999, %v2999
        %v3072 = vsel %vm728, %v3069, 0
        %v3075 = vsel %vm728, %v3070, 0
        %3077 = vmatprep.subr.bf16.mxu0 0
        %3078 = vmatpush1.bf16.xpose.msra.mxu0 %v3075
        %3079 = vmatprep.subr.bf16.mxu0 0
        %3080 = vmatpush1.bf16.xpose.msra.mxu0 0
        %3081 = vmatprep.subr.bf16.mxu0 0
        %3082 = vmatpush1.bf16.xpose.msra.mxu0 0
        %3083 = vmatprep.subr.bf16.mxu0 0
        %3084 = vmatpush1.bf16.xpose.msra.mxu0 0
        %3085 = vmatprep.subr.bf16.mxu0 0
        %3086 = vmatpush1.bf16.xpose.msra.mxu0 0
        %3087 = vmatprep.subr.bf16.mxu0 0
        %3088 = vmatpush1.bf16.xpose.msra.mxu0 0
        %3089 = vmatprep.subr.bf16.mxu0 0
        %3090 = vmatpush1.bf16.xpose.msra.mxu0 0
        %3091 = vmatprep.subr.bf16.mxu0 0
        %3092 = vmatpush1.bf16.xpose.msra.mxu0 0
        %3093 = vmatprep.subr.bf16.mxu0 0
        %3094 = vmatpush1.bf16.xpose.msra.mxu0 0
        %3095 = vmatprep.subr.bf16.mxu0 0
        %3096 = vmatpush1.bf16.xpose.msra.mxu0 0
        %3097 = vmatprep.subr.bf16.mxu0 0
        %3098 = vmatpush1.bf16.xpose.msra.mxu0 0
        %3099 = vmatprep.subr.bf16.mxu0 0
        %3100 = vmatpush1.bf16.xpose.msra.mxu0 0
        %3101 = vmatprep.subr.bf16.mxu0 0
        %3102 = vmatpush1.bf16.xpose.msra.mxu0 0
        %3103 = vmatprep.subr.bf16.mxu0 0
        %3104 = vmatpush1.bf16.xpose.msra.mxu0 0
        %3105 = vmatprep.subr.bf16.mxu0 0
        %3106 = vmatpush1.bf16.xpose.msra.mxu0 0
        %3107 = vmatprep.subr.bf16.mxu0 0
        %3108 = vmatpush1.bf16.xpose.msra.mxu0 0
        %3109 = vmatprep.mubr.bf16.mxu0 0
        %3110 = vmatmul.mubr.bf16.gmra.mrb[0].mxu0 %v3072
        %v3111 = vpop.f32.mrb[0].mxu0
        %v3112 = vadd.f32 %v497, %v3111
        %v3113 = vpop.f32.mrb[0].mxu0
        %v3114 = vpop.f32.mrb[0].mxu0
        %v3115 = vpop.f32.mrb[0].mxu0
        %3116 = vdwg.mxu0
        %v3117 = vsel %vm728, %v3112, -inf
        %3118 = vmax.xlane.f32.xlu0 %v3117
        %v3119 = vpop.xlane.xlu0 %3118
        %v3120 = vsub.f32 %v3112, %v3119
        %v3121 = vmul.f32 %v3120, 1.442695
        %v3122 = vpow.pop %v3121
        %v3123 = vsel %vm728, %v3122, 0.0
        %3124 = vadd.xlane.f32.xlu0 %v3123
        %v3125 = vpop.xlane.xlu0 %3124
        %v3126 = vrcp.pop %v3125
        %v3127 = vmul.f32 %v3122, %v3126
        %v3128 = vpack.c.bf16 %v3127, %v3127
        %v3129 = vpack.c.bf16 %v3064, %v3064
        %v3131 = vsel %vm728, %v3128, 0
        %v3134 = vsel %vm791, %v3129, 0
        %3136 = vmatprep.subr.bf16.mxu0 0
        %3137 = vmatpush1.bf16.msra.mxu0 %v3134
        %3138 = vmatprep.subr.bf16.mxu0 0
        %3139 = vmatpush1.bf16.msra.mxu0 0
        %3140 = vmatprep.subr.bf16.mxu0 0
        %3141 = vmatpush1.bf16.msra.mxu0 0
        %3142 = vmatprep.subr.bf16.mxu0 0
        %3143 = vmatpush1.bf16.msra.mxu0 0
        %3144 = vmatprep.subr.bf16.mxu0 0
        %3145 = vmatpush1.bf16.msra.mxu0 0
        %3146 = vmatprep.subr.bf16.mxu0 0
        %3147 = vmatpush1.bf16.msra.mxu0 0
        %3148 = vmatprep.subr.bf16.mxu0 0
        %3149 = vmatpush1.bf16.msra.mxu0 0
        %3150 = vmatprep.subr.bf16.mxu0 0
        %3151 = vmatpush1.bf16.msra.mxu0 0
        %3152 = vmatprep.subr.bf16.mxu0 0
        %3153 = vmatpush1.bf16.msra.mxu0 0
        %3154 = vmatprep.subr.bf16.mxu0 0
        %3155 = vmatpush1.bf16.msra.mxu0 0
        %3156 = vmatprep.subr.bf16.mxu0 0
        %3157 = vmatpush1.bf16.msra.mxu0 0
        %3158 = vmatprep.subr.bf16.mxu0 0
        %3159 = vmatpush1.bf16.msra.mxu0 0
        %3160 = vmatprep.subr.bf16.mxu0 0
        %3161 = vmatpush1.bf16.msra.mxu0 0
        %3162 = vmatprep.subr.bf16.mxu0 0
        %3163 = vmatpush1.bf16.msra.mxu0 0
        %3164 = vmatprep.subr.bf16.mxu0 0
        %3165 = vmatpush1.bf16.msra.mxu0 0
        %3166 = vmatprep.subr.bf16.mxu0 0
        %3167 = vmatpush1.bf16.msra.mxu0 0
        %3168 = vmatprep.mubr.bf16.mxu0 0
        %3169 = vmatmul.mubr.bf16.gmra.mrb[0].mxu0 %v3131
        %v3170 = vpop.f32.mrb[0].mxu0
        %v3171 = vadd.f32 0.0, %v3170
        %v3172 = vpop.f32.mrb[0].mxu0
        %v3173 = vpop.f32.mrb[0].mxu0
        %v3174 = vpop.f32.mrb[0].mxu0
        %3175 = vdwg.mxu0
        %v3176 = vpack.c.bf16 %v3171, %v3171
        %s3177 = scalar_lea.vmem %s5, 24
        %v3178 = vld [vmem:[%s3177] sm:$0xf]
        %v3180 = vsel %vm728, %v3176, 0
        %v3183 = vsel %vm791, %v3178, 0
        %3185 = vmatprep.subr.bf16.mxu0 0
        %3186 = vmatpush1.bf16.msra.mxu0 %v3183
        %3187 = vmatprep.subr.bf16.mxu0 0
        %3188 = vmatpush1.bf16.msra.mxu0 0
        %3189 = vmatprep.subr.bf16.mxu0 0
        %3190 = vmatpush1.bf16.msra.mxu0 0
        %3191 = vmatprep.subr.bf16.mxu0 0
        %3192 = vmatpush1.bf16.msra.mxu0 0
        %3193 = vmatprep.subr.bf16.mxu0 0
        %3194 = vmatpush1.bf16.msra.mxu0 0
        %3195 = vmatprep.subr.bf16.mxu0 0
        %3196 = vmatpush1.bf16.msra.mxu0 0
        %3197 = vmatprep.subr.bf16.mxu0 0
        %3198 = vmatpush1.bf16.msra.mxu0 0
        %3199 = vmatprep.subr.bf16.mxu0 0
        %3200 = vmatpush1.bf16.msra.mxu0 0
        %3201 = vmatprep.subr.bf16.mxu0 0
        %3202 = vmatpush1.bf16.msra.mxu0 0
        %3203 = vmatprep.subr.bf16.mxu0 0
        %3204 = vmatpush1.bf16.msra.mxu0 0
        %3205 = vmatprep.subr.bf16.mxu0 0
        %3206 = vmatpush1.bf16.msra.mxu0 0
        %3207 = vmatprep.subr.bf16.mxu0 0
        %3208 = vmatpush1.bf16.msra.mxu0 0
        %3209 = vmatprep.subr.bf16.mxu0 0
        %3210 = vmatpush1.bf16.msra.mxu0 0
        %3211 = vmatprep.subr.bf16.mxu0 0
        %3212 = vmatpush1.bf16.msra.mxu0 0
        %3213 = vmatprep.subr.bf16.mxu0 0
        %3214 = vmatpush1.bf16.msra.mxu0 0
        %3215 = vmatprep.subr.bf16.mxu0 0
        %3216 = vmatpush1.bf16.msra.mxu0 0
        %3217 = vmatprep.mubr.bf16.mxu0 0
        %3218 = vmatmul.mubr.bf16.gmra.mrb[0].mxu0 %v3180
        %v3219 = vpop.f32.mrb[0].mxu0
        %v3220 = vadd.f32 0.0, %v3219
        %v3221 = vpop.f32.mrb[0].mxu0
        %v3222 = vpop.f32.mrb[0].mxu0
        %v3223 = vpop.f32.mrb[0].mxu0
        %3224 = vdwg.mxu0
        %v3225 = vadd.f32 %v2869, %v3220
        %s3226 = scalar_lea.vmem %s3, 240
        %v3227 = vld [vmem:[%s3226] sm:$0xf]
        %v3228 = vld [vmem:[%s3226 + $0x4] sm:$0xf]
        %v3229 = vld [vmem:[%s3226 + $0x8] sm:$0xf]
        %v3230 = vld [vmem:[%s3226 + $0xc] sm:$0xf]
        %s3231 = scalar_lea.vmem %s4, 15
        %v3232 = vld [vmem:[%s3231] sm:$0x1]
        %v3234 = vlaneseq
        %v3235 = vshrl.u32 %v3234, 7
        %v3236 = vsub.s32 0, %v3235
        %v3237 = vrot.slane %v3232, %v3236
        %v3243 = vunpack.c.l.b16 %v3227
        %v3244 = vunpack.c.l.b16 %v3228
        %v3245 = vunpack.c.l.b16 %v3229
        %v3246 = vunpack.c.l.b16 %v3230
        %v3247 = vpack.c.b16 %v3244, %v3243
        %v3248 = vpack.c.b16 %v3246, %v3245
        %3251 = vmatprep.subr.bf16.mxu0 0
        %3252 = vmatpush1.bf16.msra.mxu0 %v3247
        %3253 = vmatprep.subr.bf16.mxu0 0
        %3254 = vmatpush1.bf16.msra.mxu0 %v3248
        %3255 = vmatprep.subr.bf16.mxu0 0
        %3256 = vmatpush1.bf16.msra.mxu0 0
        %3257 = vmatprep.subr.bf16.mxu0 0
        %3258 = vmatpush1.bf16.msra.mxu0 0
        %3259 = vmatprep.subr.bf16.mxu0 0
        %3260 = vmatpush1.bf16.msra.mxu0 0
        %3261 = vmatprep.subr.bf16.mxu0 0
        %3262 = vmatpush1.bf16.msra.mxu0 0
        %3263 = vmatprep.subr.bf16.mxu0 0
        %3264 = vmatpush1.bf16.msra.mxu0 0
        %3265 = vmatprep.subr.bf16.mxu0 0
        %3266 = vmatpush1.bf16.msra.mxu0 0
        %3267 = vmatprep.subr.bf16.mxu0 0
        %3268 = vmatpush1.bf16.msra.mxu0 0
        %3269 = vmatprep.subr.bf16.mxu0 0
        %3270 = vmatpush1.bf16.msra.mxu0 0
        %3271 = vmatprep.subr.bf16.mxu0 0
        %3272 = vmatpush1.bf16.msra.mxu0 0
        %3273 = vmatprep.subr.bf16.mxu0 0
        %3274 = vmatpush1.bf16.msra.mxu0 0
        %3275 = vmatprep.subr.bf16.mxu0 0
        %3276 = vmatpush1.bf16.msra.mxu0 0
        %3277 = vmatprep.subr.bf16.mxu0 0
        %3278 = vmatpush1.bf16.msra.mxu0 0
        %3279 = vmatprep.subr.bf16.mxu0 0
        %3280 = vmatpush1.bf16.msra.mxu0 0
        %3281 = vmatprep.subr.bf16.mxu0 0
        %3282 = vmatpush1.bf16.msra.mxu0 0
        %3283 = vmatprep.mubr.bf16.mxu0 0
        %3284 = vmatmul.mubr.bf16.gmra.mrb[0].mxu0 %v2195
        %v3285 = vpop.f32.mrb[0].mxu0
        %v3286 = vadd.f32 %v3237, %v3285
        %v3287 = vpop.f32.mrb[0].mxu0
        %v3288 = vpop.f32.mrb[0].mxu0
        %v3289 = vpop.f32.mrb[0].mxu0
        %3290 = vdwg.mxu0
        %s3291 = scalar_lea.vmem %s3, 304
        %v3292 = vld [vmem:[%s3291] sm:$0xf]
        %v3293 = vld [vmem:[%s3291 + $0x4] sm:$0xf]
        %v3294 = vld [vmem:[%s3291 + $0x8] sm:$0xf]
        %v3295 = vld [vmem:[%s3291 + $0xc] sm:$0xf]
        %s3296 = scalar_lea.vmem %s4, 19
        %v3297 = vld [vmem:[%s3296] sm:$0x1]
        %v3299 = vlaneseq
        %v3300 = vshrl.u32 %v3299, 7
        %v3301 = vsub.s32 0, %v3300
        %v3302 = vrot.slane %v3297, %v3301
        %v3308 = vunpack.c.l.b16 %v3292
        %v3309 = vunpack.c.l.b16 %v3293
        %v3310 = vunpack.c.l.b16 %v3294
        %v3311 = vunpack.c.l.b16 %v3295
        %v3312 = vpack.c.b16 %v3309, %v3308
        %v3313 = vpack.c.b16 %v3311, %v3310
        %3316 = vmatprep.subr.bf16.mxu0 0
        %3317 = vmatpush1.bf16.msra.mxu0 %v3312
        %3318 = vmatprep.subr.bf16.mxu0 0
        %3319 = vmatpush1.bf16.msra.mxu0 %v3313
        %3320 = vmatprep.subr.bf16.mxu0 0
        %3321 = vmatpush1.bf16.msra.mxu0 0
        %3322 = vmatprep.subr.bf16.mxu0 0
        %3323 = vmatpush1.bf16.msra.mxu0 0
        %3324 = vmatprep.subr.bf16.mxu0 0
        %3325 = vmatpush1.bf16.msra.mxu0 0
        %3326 = vmatprep.subr.bf16.mxu0 0
        %3327 = vmatpush1.bf16.msra.mxu0 0
        %3328 = vmatprep.subr.bf16.mxu0 0
        %3329 = vmatpush1.bf16.msra.mxu0 0
        %3330 = vmatprep.subr.bf16.mxu0 0
        %3331 = vmatpush1.bf16.msra.mxu0 0
        %3332 = vmatprep.subr.bf16.mxu0 0
        %3333 = vmatpush1.bf16.msra.mxu0 0
        %3334 = vmatprep.subr.bf16.mxu0 0
        %3335 = vmatpush1.bf16.msra.mxu0 0
        %3336 = vmatprep.subr.bf16.mxu0 0
        %3337 = vmatpush1.bf16.msra.mxu0 0
        %3338 = vmatprep.subr.bf16.mxu0 0
        %3339 = vmatpush1.bf16.msra.mxu0 0
        %3340 = vmatprep.subr.bf16.mxu0 0
        %3341 = vmatpush1.bf16.msra.mxu0 0
        %3342 = vmatprep.subr.bf16.mxu0 0
        %3343 = vmatpush1.bf16.msra.mxu0 0
        %3344 = vmatprep.subr.bf16.mxu0 0
        %3345 = vmatpush1.bf16.msra.mxu0 0
        %3346 = vmatprep.subr.bf16.mxu0 0
        %3347 = vmatpush1.bf16.msra.mxu0 0
        %3348 = vmatprep.mubr.bf16.mxu0 0
        %3349 = vmatmul.mubr.bf16.gmra.mrb[0].mxu0 %v2195
        %v3350 = vpop.f32.mrb[0].mxu0
        %v3351 = vadd.f32 %v3302, %v3350
        %v3352 = vpop.f32.mrb[0].mxu0
        %v3353 = vpop.f32.mrb[0].mxu0
        %v3354 = vpop.f32.mrb[0].mxu0
        %3355 = vdwg.mxu0
        %s3356 = scalar_lea.vmem %s3, 368
        %v3357 = vld [vmem:[%s3356] sm:$0xf]
        %v3358 = vld [vmem:[%s3356 + $0x4] sm:$0xf]
        %v3359 = vld [vmem:[%s3356 + $0x8] sm:$0xf]
        %v3360 = vld [vmem:[%s3356 + $0xc] sm:$0xf]
        %s3361 = scalar_lea.vmem %s4, 23
        %v3362 = vld [vmem:[%s3361] sm:$0x1]
        %v3364 = vlaneseq
        %v3365 = vshrl.u32 %v3364, 7
        %v3366 = vsub.s32 0, %v3365
        %v3367 = vrot.slane %v3362, %v3366
        %v3373 = vunpack.c.l.b16 %v3357
        %v3374 = vunpack.c.l.b16 %v3358
        %v3375 = vunpack.c.l.b16 %v3359
        %v3376 = vunpack.c.l.b16 %v3360
        %v3377 = vpack.c.b16 %v3374, %v3373
        %v3378 = vpack.c.b16 %v3376, %v3375
        %3381 = vmatprep.subr.bf16.mxu0 0
        %3382 = vmatpush1.bf16.msra.mxu0 %v3377
        %3383 = vmatprep.subr.bf16.mxu0 0
        %3384 = vmatpush1.bf16.msra.mxu0 %v3378
        %3385 = vmatprep.subr.bf16.mxu0 0
        %3386 = vmatpush1.bf16.msra.mxu0 0
        %3387 = vmatprep.subr.bf16.mxu0 0
        %3388 = vmatpush1.bf16.msra.mxu0 0
        %3389 = vmatprep.subr.bf16.mxu0 0
        %3390 = vmatpush1.bf16.msra.mxu0 0
        %3391 = vmatprep.subr.bf16.mxu0 0
        %3392 = vmatpush1.bf16.msra.mxu0 0
        %3393 = vmatprep.subr.bf16.mxu0 0
        %3394 = vmatpush1.bf16.msra.mxu0 0
        %3395 = vmatprep.subr.bf16.mxu0 0
        %3396 = vmatpush1.bf16.msra.mxu0 0
        %3397 = vmatprep.subr.bf16.mxu0 0
        %3398 = vmatpush1.bf16.msra.mxu0 0
        %3399 = vmatprep.subr.bf16.mxu0 0
        %3400 = vmatpush1.bf16.msra.mxu0 0
        %3401 = vmatprep.subr.bf16.mxu0 0
        %3402 = vmatpush1.bf16.msra.mxu0 0
        %3403 = vmatprep.subr.bf16.mxu0 0
        %3404 = vmatpush1.bf16.msra.mxu0 0
        %3405 = vmatprep.subr.bf16.mxu0 0
        %3406 = vmatpush1.bf16.msra.mxu0 0
        %3407 = vmatprep.subr.bf16.mxu0 0
        %3408 = vmatpush1.bf16.msra.mxu0 0
        %3409 = vmatprep.subr.bf16.mxu0 0
        %3410 = vmatpush1.bf16.msra.mxu0 0
        %3411 = vmatprep.subr.bf16.mxu0 0
        %3412 = vmatpush1.bf16.msra.mxu0 0
        %3413 = vmatprep.mubr.bf16.mxu0 0
        %3414 = vmatmul.mubr.bf16.gmra.mrb[0].mxu0 %v2195
        %v3415 = vpop.f32.mrb[0].mxu0
        %v3416 = vadd.f32 %v3367, %v3415
        %v3417 = vpop.f32.mrb[0].mxu0
        %v3418 = vpop.f32.mrb[0].mxu0
        %v3419 = vpop.f32.mrb[0].mxu0
        %3420 = vdwg.mxu0
        %v3421 = vpack.c.bf16 %v3286, %v3286
        %v3422 = vpack.c.bf16 %v3351, %v3351
        %v3424 = vsel %vm728, %v3421, 0
        %v3427 = vsel %vm728, %v3422, 0
        %3429 = vmatprep.subr.bf16.mxu0 0
        %3430 = vmatpush1.bf16.xpose.msra.mxu0 %v3427
        %3431 = vmatprep.subr.bf16.mxu0 0
        %3432 = vmatpush1.bf16.xpose.msra.mxu0 0
        %3433 = vmatprep.subr.bf16.mxu0 0
        %3434 = vmatpush1.bf16.xpose.msra.mxu0 0
        %3435 = vmatprep.subr.bf16.mxu0 0
        %3436 = vmatpush1.bf16.xpose.msra.mxu0 0
        %3437 = vmatprep.subr.bf16.mxu0 0
        %3438 = vmatpush1.bf16.xpose.msra.mxu0 0
        %3439 = vmatprep.subr.bf16.mxu0 0
        %3440 = vmatpush1.bf16.xpose.msra.mxu0 0
        %3441 = vmatprep.subr.bf16.mxu0 0
        %3442 = vmatpush1.bf16.xpose.msra.mxu0 0
        %3443 = vmatprep.subr.bf16.mxu0 0
        %3444 = vmatpush1.bf16.xpose.msra.mxu0 0
        %3445 = vmatprep.subr.bf16.mxu0 0
        %3446 = vmatpush1.bf16.xpose.msra.mxu0 0
        %3447 = vmatprep.subr.bf16.mxu0 0
        %3448 = vmatpush1.bf16.xpose.msra.mxu0 0
        %3449 = vmatprep.subr.bf16.mxu0 0
        %3450 = vmatpush1.bf16.xpose.msra.mxu0 0
        %3451 = vmatprep.subr.bf16.mxu0 0
        %3452 = vmatpush1.bf16.xpose.msra.mxu0 0
        %3453 = vmatprep.subr.bf16.mxu0 0
        %3454 = vmatpush1.bf16.xpose.msra.mxu0 0
        %3455 = vmatprep.subr.bf16.mxu0 0
        %3456 = vmatpush1.bf16.xpose.msra.mxu0 0
        %3457 = vmatprep.subr.bf16.mxu0 0
        %3458 = vmatpush1.bf16.xpose.msra.mxu0 0
        %3459 = vmatprep.subr.bf16.mxu0 0
        %3460 = vmatpush1.bf16.xpose.msra.mxu0 0
        %3461 = vmatprep.mubr.bf16.mxu0 0
        %3462 = vmatmul.mubr.bf16.gmra.mrb[0].mxu0 %v3424
        %v3463 = vpop.f32.mrb[0].mxu0
        %v3464 = vadd.f32 %v497, %v3463
        %v3465 = vpop.f32.mrb[0].mxu0
        %v3466 = vpop.f32.mrb[0].mxu0
        %v3467 = vpop.f32.mrb[0].mxu0
        %3468 = vdwg.mxu0
        %v3469 = vsel %vm728, %v3464, -inf
        %3470 = vmax.xlane.f32.xlu0 %v3469
        %v3471 = vpop.xlane.xlu0 %3470
        %v3472 = vsub.f32 %v3464, %v3471
        %v3473 = vmul.f32 %v3472, 1.442695
        %v3474 = vpow.pop %v3473
        %v3475 = vsel %vm728, %v3474, 0.0
        %3476 = vadd.xlane.f32.xlu0 %v3475
        %v3477 = vpop.xlane.xlu0 %3476
        %v3478 = vrcp.pop %v3477
        %v3479 = vmul.f32 %v3474, %v3478
        %v3480 = vpack.c.bf16 %v3479, %v3479
        %v3481 = vpack.c.bf16 %v3416, %v3416
        %v3483 = vsel %vm728, %v3480, 0
        %v3486 = vsel %vm791, %v3481, 0
        %3488 = vmatprep.subr.bf16.mxu0 0
        %3489 = vmatpush1.bf16.msra.mxu0 %v3486
        %3490 = vmatprep.subr.bf16.mxu0 0
        %3491 = vmatpush1.bf16.msra.mxu0 0
        %3492 = vmatprep.subr.bf16.mxu0 0
        %3493 = vmatpush1.bf16.msra.mxu0 0
        %3494 = vmatprep.subr.bf16.mxu0 0
        %3495 = vmatpush1.bf16.msra.mxu0 0
        %3496 = vmatprep.subr.bf16.mxu0 0
        %3497 = vmatpush1.bf16.msra.mxu0 0
        %3498 = vmatprep.subr.bf16.mxu0 0
        %3499 = vmatpush1.bf16.msra.mxu0 0
        %3500 = vmatprep.subr.bf16.mxu0 0
        %3501 = vmatpush1.bf16.msra.mxu0 0
        %3502 = vmatprep.subr.bf16.mxu0 0
        %3503 = vmatpush1.bf16.msra.mxu0 0
        %3504 = vmatprep.subr.bf16.mxu0 0
        %3505 = vmatpush1.bf16.msra.mxu0 0
        %3506 = vmatprep.subr.bf16.mxu0 0
        %3507 = vmatpush1.bf16.msra.mxu0 0
        %3508 = vmatprep.subr.bf16.mxu0 0
        %3509 = vmatpush1.bf16.msra.mxu0 0
        %3510 = vmatprep.subr.bf16.mxu0 0
        %3511 = vmatpush1.bf16.msra.mxu0 0
        %3512 = vmatprep.subr.bf16.mxu0 0
        %3513 = vmatpush1.bf16.msra.mxu0 0
        %3514 = vmatprep.subr.bf16.mxu0 0
        %3515 = vmatpush1.bf16.msra.mxu0 0
        %3516 = vmatprep.subr.bf16.mxu0 0
        %3517 = vmatpush1.bf16.msra.mxu0 0
        %3518 = vmatprep.subr.bf16.mxu0 0
        %3519 = vmatpush1.bf16.msra.mxu0 0
        %3520 = vmatprep.mubr.bf16.mxu0 0
        %3521 = vmatmul.mubr.bf16.gmra.mrb[0].mxu0 %v3483
        %v3522 = vpop.f32.mrb[0].mxu0
        %v3523 = vadd.f32 0.0, %v3522
        %v3524 = vpop.f32.mrb[0].mxu0
        %v3525 = vpop.f32.mrb[0].mxu0
        %v3526 = vpop.f32.mrb[0].mxu0
        %3527 = vdwg.mxu0
        %v3528 = vpack.c.bf16 %v3523, %v3523
        %s3529 = scalar_lea.vmem %s5, 28
        %v3530 = vld [vmem:[%s3529] sm:$0xf]
        %v3532 = vsel %vm728, %v3528, 0
        %v3535 = vsel %vm791, %v3530, 0
        %3537 = vmatprep.subr.bf16.mxu0 0
        %3538 = vmatpush1.bf16.msra.mxu0 %v3535
        %3539 = vmatprep.subr.bf16.mxu0 0
        %3540 = vmatpush1.bf16.msra.mxu0 0
        %3541 = vmatprep.subr.bf16.mxu0 0
        %3542 = vmatpush1.bf16.msra.mxu0 0
        %3543 = vmatprep.subr.bf16.mxu0 0
        %3544 = vmatpush1.bf16.msra.mxu0 0
        %3545 = vmatprep.subr.bf16.mxu0 0
        %3546 = vmatpush1.bf16.msra.mxu0 0
        %3547 = vmatprep.subr.bf16.mxu0 0
        %3548 = vmatpush1.bf16.msra.mxu0 0
        %3549 = vmatprep.subr.bf16.mxu0 0
        %3550 = vmatpush1.bf16.msra.mxu0 0
        %3551 = vmatprep.subr.bf16.mxu0 0
        %3552 = vmatpush1.bf16.msra.mxu0 0
        %3553 = vmatprep.subr.bf16.mxu0 0
        %3554 = vmatpush1.bf16.msra.mxu0 0
        %3555 = vmatprep.subr.bf16.mxu0 0
        %3556 = vmatpush1.bf16.msra.mxu0 0
        %3557 = vmatprep.subr.bf16.mxu0 0
        %3558 = vmatpush1.bf16.msra.mxu0 0
        %3559 = vmatprep.subr.bf16.mxu0 0
        %3560 = vmatpush1.bf16.msra.mxu0 0
        %3561 = vmatprep.subr.bf16.mxu0 0
        %3562 = vmatpush1.bf16.msra.mxu0 0
        %3563 = vmatprep.subr.bf16.mxu0 0
        %3564 = vmatpush1.bf16.msra.mxu0 0
        %3565 = vmatprep.subr.bf16.mxu0 0
        %3566 = vmatpush1.bf16.msra.mxu0 0
        %3567 = vmatprep.subr.bf16.mxu0 0
        %3568 = vmatpush1.bf16.msra.mxu0 0
        %3569 = vmatprep.mubr.bf16.mxu0 0
        %3570 = vmatmul.mubr.bf16.gmra.mrb[0].mxu0 %v3532
        %v3571 = vpop.f32.mrb[0].mxu0
        %v3572 = vadd.f32 0.0, %v3571
        %v3573 = vpop.f32.mrb[0].mxu0
        %v3574 = vpop.f32.mrb[0].mxu0
        %v3575 = vpop.f32.mrb[0].mxu0
        %3576 = vdwg.mxu0
        %v3577 = vadd.f32 %v3225, %v3572
        %v3578 = vadd.f32 %v2136, %v3577
        %s3579 = scalar_lea.vmem %s6, 1
        %v3580 = vld [vmem:[%s3579] sm:$0x1]
        %v3582 = vlaneseq
        %v3583 = vshrl.u32 %v3582, 7
        %v3584 = vsub.s32 0, %v3583
        %v3585 = vrot.slane %v3580, %v3584
        %v3587 = vadd.f32 %v3578, %v3585
        %s3588 = scalar_lea.vmem %s7, 1
        %v3589 = vld [vmem:[%s3588] sm:$0x1]
        %s3590 = scalar_lea.vmem %s8, 1
        %v3591 = vld [vmem:[%s3590] sm:$0x1]
        %v3592 = vsel %vm500, %v3587, 0.0
        %3593 = vadd.xlane.f32.xlu0 %v3592
        %v3594 = vpop.xlane.xlu0 %3593
        %v3595 = vmul.f32 %v3594, %v504
        %v3596 = vsub.f32 %v3587, %v3595
        %v3597 = vmul.f32 %v3596, %v3596
        %v3598 = vsel %vm500, %v3597, 0.0
        %3599 = vadd.xlane.f32.xlu0 %v3598
        %v3600 = vpop.xlane.xlu0 %3599
        %v3601 = vmul.f32 %v3600, %v504
        %v3602 = vadd.f32 %v3601, 1e-05
        %v3603 = vrsqrt.pop %v3602
        %v3604 = vmul.f32 %v3596, %v3603
        %v3606 = vlaneseq
        %v3607 = vshrl.u32 %v3606, 7
        %v3608 = vsub.s32 0, %v3607
        %v3609 = vrot.slane %v3589, %v3608
        %v3611 = vmul.f32 %v3604, %v3609
        %v3613 = vlaneseq
        %v3614 = vshrl.u32 %v3613, 7
        %v3615 = vsub.s32 0, %v3614
        %v3616 = vrot.slane %v3591, %v3615
        %v3618 = vadd.f32 %v3611, %v3616
        %v3619 = vpack.c.bf16 %v3618, %v3618
        %s3620 = scalar_lea.vmem %s9, 16
        %v3621 = vld [vmem:[%s3620] sm:$0xf]
        %v3622 = vld [vmem:[%s3620 + $0x4] sm:$0xf]
        %v3623 = vld [vmem:[%s3620 + $0x8] sm:$0xf]
        %v3624 = vld [vmem:[%s3620 + $0xc] sm:$0xf]
        %s3625 = scalar_lea.vmem %s10, 1
        %v3626 = vld [vmem:[%s3625] sm:$0x1]
        %v3628 = vlaneseq
        %v3629 = vshrl.u32 %v3628, 7
        %v3630 = vsub.s32 0, %v3629
        %v3631 = vrot.slane %v3626, %v3630
        %v3637 = vunpack.c.l.b16 %v3621
        %v3638 = vunpack.c.l.b16 %v3622
        %v3639 = vunpack.c.l.b16 %v3623
        %v3640 = vunpack.c.l.b16 %v3624
        %v3641 = vpack.c.b16 %v3638, %v3637
        %v3642 = vpack.c.b16 %v3640, %v3639
        %v3646 = vsel %vm500, %v3619, 0
        %3648 = vmatprep.subr.bf16.mxu0 0
        %3649 = vmatpush1.bf16.msra.mxu0 %v3641
        %3650 = vmatprep.subr.bf16.mxu0 0
        %3651 = vmatpush1.bf16.msra.mxu0 %v3642
        %3652 = vmatprep.subr.bf16.mxu0 0
        %3653 = vmatpush1.bf16.msra.mxu0 0
        %3654 = vmatprep.subr.bf16.mxu0 0
        %3655 = vmatpush1.bf16.msra.mxu0 0
        %3656 = vmatprep.subr.bf16.mxu0 0
        %3657 = vmatpush1.bf16.msra.mxu0 0
        %3658 = vmatprep.subr.bf16.mxu0 0
        %3659 = vmatpush1.bf16.msra.mxu0 0
        %3660 = vmatprep.subr.bf16.mxu0 0
        %3661 = vmatpush1.bf16.msra.mxu0 0
        %3662 = vmatprep.subr.bf16.mxu0 0
        %3663 = vmatpush1.bf16.msra.mxu0 0
        %3664 = vmatprep.subr.bf16.mxu0 0
        %3665 = vmatpush1.bf16.msra.mxu0 0
        %3666 = vmatprep.subr.bf16.mxu0 0
        %3667 = vmatpush1.bf16.msra.mxu0 0
        %3668 = vmatprep.subr.bf16.mxu0 0
        %3669 = vmatpush1.bf16.msra.mxu0 0
        %3670 = vmatprep.subr.bf16.mxu0 0
        %3671 = vmatpush1.bf16.msra.mxu0 0
        %3672 = vmatprep.subr.bf16.mxu0 0
        %3673 = vmatpush1.bf16.msra.mxu0 0
        %3674 = vmatprep.subr.bf16.mxu0 0
        %3675 = vmatpush1.bf16.msra.mxu0 0
        %3676 = vmatprep.subr.bf16.mxu0 0
        %3677 = vmatpush1.bf16.msra.mxu0 0
        %3678 = vmatprep.subr.bf16.mxu0 0
        %3679 = vmatpush1.bf16.msra.mxu0 0
        %3680 = vmatprep.mubr.bf16.mxu0 0
        %3681 = vmatmul.mubr.bf16.gmra.mrb[0].mxu0 %v3646
        %v3682 = vpop.f32.mrb[0].mxu0
        %v3683 = vadd.f32 %v3631, %v3682
        %v3684 = vpop.f32.mrb[0].mxu0
        %v3685 = vpop.f32.mrb[0].mxu0
        %v3686 = vpop.f32.mrb[0].mxu0
        %3687 = vdwg.mxu0
        %v3688 = vmul.f32 %v3683, 1.702
        %v3689 = vxor.u32 %v3688, 2147483648
        %v3690 = vmul.f32 %v3689, 1.442695
        %v3691 = vpow.pop %v3690
        %v3692 = vadd.f32 %v3691, 1.0
        %v3693 = vrcp.pop %v3692
        %v3694 = vmul.f32 1.0, %v3693
        %v3695 = vmul.f32 %v3683, %v3694
        %v3696 = vpack.c.bf16 %v3695, %v3695
        %s3697 = scalar_lea.vmem %s11, 32
        %v3698 = vld [vmem:[%s3697] sm:$0xf]
        %v3699 = vld [vmem:[%s3697 + $0x4] sm:$0xf]
        %v3700 = vld [vmem:[%s3697 + $0x8] sm:$0xf]
        %v3701 = vld [vmem:[%s3697 + $0xc] sm:$0xf]
        %v3702 = vld [vmem:[%s3697 + $0x10] sm:$0xf]
        %v3703 = vld [vmem:[%s3697 + $0x14] sm:$0xf]
        %v3704 = vld [vmem:[%s3697 + $0x18] sm:$0xf]
        %v3705 = vld [vmem:[%s3697 + $0x1c] sm:$0xf]
        %v3714 = vunpack.c.l.b16 %v3698
        %v3715 = vunpack.c.l.b16 %v3699
        %v3716 = vunpack.c.l.b16 %v3700
        %v3717 = vunpack.c.l.b16 %v3701
        %v3718 = vunpack.c.l.b16 %v3702
        %v3719 = vunpack.c.l.b16 %v3703
        %v3720 = vunpack.c.l.b16 %v3704
        %v3721 = vunpack.c.l.b16 %v3705
        %v3722 = vpack.c.b16 %v3715, %v3714
        %v3723 = vpack.c.b16 %v3717, %v3716
        %v3724 = vpack.c.b16 %v3719, %v3718
        %v3725 = vpack.c.b16 %v3721, %v3720
        %v3731 = vsel %vm2084, %v3696, 0
        %3733 = vmatprep.subr.bf16.mxu0 0
        %3734 = vmatpush1.bf16.msra.mxu0 %v3722
        %3735 = vmatprep.subr.bf16.mxu0 0
        %3736 = vmatpush1.bf16.msra.mxu0 %v3723
        %3737 = vmatprep.subr.bf16.mxu0 0
        %3738 = vmatpush1.bf16.msra.mxu0 %v3724
        %3739 = vmatprep.subr.bf16.mxu0 0
        %3740 = vmatpush1.bf16.msra.mxu0 %v3725
        %3741 = vmatprep.subr.bf16.mxu0 0
        %3742 = vmatpush1.bf16.msra.mxu0 0
        %3743 = vmatprep.subr.bf16.mxu0 0
        %3744 = vmatpush1.bf16.msra.mxu0 0
        %3745 = vmatprep.subr.bf16.mxu0 0
        %3746 = vmatpush1.bf16.msra.mxu0 0
        %3747 = vmatprep.subr.bf16.mxu0 0
        %3748 = vmatpush1.bf16.msra.mxu0 0
        %3749 = vmatprep.subr.bf16.mxu0 0
        %3750 = vmatpush1.bf16.msra.mxu0 0
        %3751 = vmatprep.subr.bf16.mxu0 0
        %3752 = vmatpush1.bf16.msra.mxu0 0
        %3753 = vmatprep.subr.bf16.mxu0 0
        %3754 = vmatpush1.bf16.msra.mxu0 0
        %3755 = vmatprep.subr.bf16.mxu0 0
        %3756 = vmatpush1.bf16.msra.mxu0 0
        %3757 = vmatprep.subr.bf16.mxu0 0
        %3758 = vmatpush1.bf16.msra.mxu0 0
        %3759 = vmatprep.subr.bf16.mxu0 0
        %3760 = vmatpush1.bf16.msra.mxu0 0
        %3761 = vmatprep.subr.bf16.mxu0 0
        %3762 = vmatpush1.bf16.msra.mxu0 0
        %3763 = vmatprep.subr.bf16.mxu0 0
        %3764 = vmatpush1.bf16.msra.mxu0 0
        %3765 = vmatprep.mubr.bf16.mxu0 0
        %3766 = vmatmul.mubr.bf16.gmra.mrb[0].mxu0 %v3731
        %v3767 = vpop.f32.mrb[0].mxu0
        %v3768 = vadd.f32 0.0, %v3767
        %v3769 = vpop.f32.mrb[0].mxu0
        %v3770 = vpop.f32.mrb[0].mxu0
        %v3771 = vpop.f32.mrb[0].mxu0
        %3772 = vdwg.mxu0
        %v3773 = vadd.f32 %v3587, %v3768
        %s3774 = scalar_lea.vmem %s12, 1
        %v3775 = vld [vmem:[%s3774] sm:$0x1]
        %v3777 = vlaneseq
        %v3778 = vshrl.u32 %v3777, 7
        %v3779 = vsub.s32 0, %v3778
        %v3780 = vrot.slane %v3775, %v3779
        %v3782 = vadd.f32 %v3773, %v3780
        %v3783 = vld [vmem:[%s13] sm:$0x1]
        %v3784 = vld [vmem:[%s14] sm:$0x1]
        %v3785 = vsel %vm500, %v3782, 0.0
        %3786 = vadd.xlane.f32.xlu0 %v3785
        %v3787 = vpop.xlane.xlu0 %3786
        %v3788 = vmul.f32 %v3787, %v504
        %v3789 = vsub.f32 %v3782, %v3788
        %v3790 = vmul.f32 %v3789, %v3789
        %v3791 = vsel %vm500, %v3790, 0.0
        %3792 = vadd.xlane.f32.xlu0 %v3791
        %v3793 = vpop.xlane.xlu0 %3792
        %v3794 = vmul.f32 %v3793, %v504
        %v3795 = vadd.f32 %v3794, 1e-05
        %v3796 = vrsqrt.pop %v3795
        %v3797 = vmul.f32 %v3789, %v3796
        %v3799 = vlaneseq
        %v3800 = vshrl.u32 %v3799, 7
        %v3801 = vsub.s32 0, %v3800
        %v3802 = vrot.slane %v3783, %v3801
        %v3804 = vmul.f32 %v3797, %v3802
        %v3806 = vlaneseq
        %v3807 = vshrl.u32 %v3806, 7
        %v3808 = vsub.s32 0, %v3807
        %v3809 = vrot.slane %v3784, %v3808
        %v3811 = vadd.f32 %v3804, %v3809
        %3812 = vst.msk [vmem:[%s485] sm:$0xff] %vm500, %v3811
        %s3813 = sand.u32 %s357, 1
        %s3814 = scalar_lea.sflag [#allocation3], %s3813
        %s3815 = sand.u32 %s357, 1
        %s3816 = smul.addr %s3815, 8
        %s3817 = scalar_lea.vmem [#allocation2], %s3816
        // Predicated region
        $region81: #{tpu_custom_call.1} parent=79 // pred_check
          %p3818 = pneg %p367
        $region82: #{tpu_custom_call.1} parent=79 // pred_check_branch
          %3820 = sbr.rel (%p3818) target = $region84
        $region83: #{tpu_custom_call.1} parent=79 // pred_region
          %s3822 = ssub.s32 128, 128
          %3823 = vsyncadd %s3814, %s3822
          %s3824 = smul.addr %s29, 128
          %s3825 = scalar_lea.hbm %s15, %s3824
          %s3827 = sshll.u32 %s3817, 4
          %s3828 = int_to_ptr.vmem [resolvable:$true] %s3827
          %3830 = dma.vmem_to_hbm [thread:$0]  %s3828, 128, %s3825, %s3814
        $region84: #{tpu_custom_call.1} parent=79 // pred_fallthru
          _
      $region80: #{tpu_custom_call.1} parent=5 // pred_fallthru
        _
      %p3831 = scmp.le.s32.totalorder 2, %s24
      // Predicated region
      $region85: #{tpu_custom_call.1} parent=5 // pred_check
        %p3832 = pneg %p3831
      $region86: #{tpu_custom_call.1} parent=5 // pred_check_branch
        %3834 = sbr.rel (%p3832) target = $region88
      $region87: #{tpu_custom_call.1} parent=5 // pred_region
        %s3835 = ssub.s32 %s24, 2
        // Predicated region
        $region89: #{tpu_custom_call.1} parent=87 // pred_check
          %p3836 = pneg %p373
        $region90: #{tpu_custom_call.1} parent=87 // pred_check_branch
          %3838 = sbr.rel (%p3836) target = $region92
        $region91: #{tpu_custom_call.1} parent=87 // pred_region
          %s3839 = sand.u32 %s358, 1
          %s3840 = scalar_lea.sflag [#allocation3], %s3839
          %s3841 = sand.u32 %s358, 1
          %s3842 = smul.addr %s3841, 8
          %s3843 = scalar_lea.vmem [#allocation2], %s3842
          %3844 = dma.done %s3840, 128
        $region92: #{tpu_custom_call.1} parent=87 // pred_fallthru
          _
      $region88: #{tpu_custom_call.1} parent=5 // pred_fallthru
        _
    $region6: #{tpu_custom_call.1} parent=1 // loop_footer
      %s28 = sadd.s32 1, %s24
    $region7: #{tpu_custom_call.1} parent=1 // loop_footer_branch
      %23 = sbr.rel target = $region3
    $region8: #{tpu_custom_call.1} parent=1 // loop_exit
      _
    %3845 = vsyncpa [#allocation3], 1
    %s3846 = scalar_lea.sflag [#allocation3], 1
    %3847 = vsyncpa %s3846, 1

</llo_original>
